<compile_context>
chip_gen: v5e
topology: v5e:2x2
jax: 0.10.0
libtpu: 0.0.40
codegen_flags: <defaults>
</compile_context>

<pallas_src>
import jax
import jax.numpy as jnp
from jax.experimental import pallas as pl
from jax.experimental.pallas import tpu as pltpu

# ---- model dims (small, consistent with the forward) ------------------------
D = 32          # transformer width
H = 4           # attention heads
HD = D // H     # head dim
S = 8           # context length (seq)
L = 2           # transformer layers
MLP = 4 * D     # MLP hidden
E_OUT = 32      # text_projection output dim
LN_EPS = 1e-5


def _ln(x, g, b):
    """LayerNorm over the last axis; g/b have shape (1, D) and broadcast."""
    mu = jnp.mean(x, axis=-1, keepdims=True)
    var = jnp.mean((x - mu) ** 2, axis=-1, keepdims=True)
    return (x - mu) * jax.lax.rsqrt(var + LN_EPS) * g + b


# -----------------------------------------------------------------------------
# Fused kernel: positional add + L blocks + ln_final + EOT gather + projection
# -----------------------------------------------------------------------------
def fused_encoder_kernel(eot_ref,                      # scalar prefetch (SMEM), (B,) int32
                         x_ref, pos_ref,
                         g1_ref, b1_ref,
                         wq_ref, bq_ref, wk_ref, bk_ref, wv_ref, bv_ref,
                         wo_ref, bo_ref,
                         g2_ref, b2_ref,
                         w1_ref, b1m_ref, w2_ref, b2m_ref,
                         gf_ref, bf_ref, proj_ref,
                         o_ref,
                         xf_scratch):
    b = pl.program_id(0)
    x = x_ref[0] + pos_ref[...]                        # (S, D)  residual stream

    # causal mask, computed once per grid step (shared by all layers / heads)
    rows = jax.lax.broadcasted_iota(jnp.int32, (S, S), 0)
    cols = jax.lax.broadcasted_iota(jnp.int32, (S, S), 1)
    causal = (cols <= rows)[None]                      # (1, S, S), broadcast over heads
    scale = 1.0 / (HD ** 0.5)

    for l in range(L):                                 # static layer loop; weights resident
        # ---- pre-LN multi-head self-attention (head-batched dot_generals) ----
        hb = jnp.broadcast_to(_ln(x, g1_ref[l], b1_ref[l]), (H, S, D))
        q = jnp.einsum("hsd,hde->hse", hb, wq_ref[l],
                       preferred_element_type=jnp.float32) + bq_ref[l]   # (H, S, HD)
        k = jnp.einsum("hsd,hde->hse", hb, wk_ref[l],
                       preferred_element_type=jnp.float32) + bk_ref[l]
        v = jnp.einsum("hsd,hde->hse", hb, wv_ref[l],
                       preferred_element_type=jnp.float32) + bv_ref[l]

        s = jnp.einsum("hqe,hke->hqk", q, k,
                       preferred_element_type=jnp.float32) * scale       # (H, S, S)
        s = jnp.where(causal, s, -1e30)
        s = s - jnp.max(s, axis=-1, keepdims=True)
        p = jnp.exp(s)
        p = p * pl.reciprocal(jnp.sum(p, axis=-1, keepdims=True), approx=True)

        ctx = jnp.einsum("hqk,hke->hqe", p, v,
                         preferred_element_type=jnp.float32)             # (H, S, HD)
        attn = jnp.sum(jnp.einsum("hqe,hed->hqd", ctx, wo_ref[l],
                                  preferred_element_type=jnp.float32),
                       axis=0)                                            # (S, D)
        x = x + attn + bo_ref[l]

        # ---- MLP with QuickGELU ----
        h2 = _ln(x, g2_ref[l], b2_ref[l])
        m = jnp.dot(h2, w1_ref[l], preferred_element_type=jnp.float32) + b1m_ref[l]
        m = m * jax.nn.sigmoid(1.702 * m)
        x = x + jnp.dot(m, w2_ref[l], preferred_element_type=jnp.float32) + b2m_ref[l]

    # ---- ln_final + EOT-token gather (scalar-prefetch index) + projection ----
    xf_scratch[...] = _ln(x, gf_ref[...], bf_ref[...])                   # (S, D)
    sel = xf_scratch[pl.ds(eot_ref[b], 1), :]                            # (1, D)
    o_ref[0] = jnp.dot(sel, proj_ref[...], preferred_element_type=jnp.float32)


# -----------------------------------------------------------------------------
# Wrapper (single pallas_call; weights pre-split per head, stacked over L)
# -----------------------------------------------------------------------------
def _const(shape):
    return pl.BlockSpec(shape, lambda i, eot, _n=len(shape): (0,) * _n)


def nega_text_encoder(prompts, tokenized_prompts, params):
    """Mirrors NegaTextEncoder.forward (dtype = float32)."""
    if prompts.ndim == 4:                              # flatten(0, 1)
        prompts = prompts.reshape((-1,) + prompts.shape[2:])
    b = prompts.shape[0]

    # EOT index = argmax over token ids (glue); consumed in-kernel via scalar prefetch.
    eot = jnp.argmax(tokenized_prompts, axis=-1).astype(jnp.int32)

    # Stack per-layer weights along L and pre-split QKV / out-proj per head
    # (host-side, one-time; avoids all in-kernel lane slicing / relayouts).
    stk = lambda name: jnp.stack([lyr[name] for lyr in params["layers"]])
    wqkv, bqkv = stk("wqkv"), stk("bqkv")              # (L, D, 3D), (L, 1, 3D)

    def split_w(w_full):                               # (L, D, D) -> (L, H, D, HD)
        return w_full.reshape(L, D, H, HD).transpose(0, 2, 1, 3)

    def split_b(b_full):                               # (L, 1, D) -> (L, H, 1, HD)
        return b_full.reshape(L, H, HD)[:, :, None, :]

    wq, wk, wv = (split_w(wqkv[:, :, i * D:(i + 1) * D]) for i in range(3))
    bq, bk, bv = (split_b(bqkv[:, :, i * D:(i + 1) * D]) for i in range(3))
    wo_h = stk("wo").reshape(L, H, HD, D)              # rows = concatenated heads
    bo = stk("bo")
    g1, b1, g2, b2 = stk("g1"), stk("b1"), stk("g2"), stk("b2")
    w1, b1m, w2, b2m = stk("w1"), stk("b1m"), stk("w2"), stk("b2m")

    out = pl.pallas_call(
        fused_encoder_kernel,
        out_shape=jax.ShapeDtypeStruct((b, 1, E_OUT), jnp.float32),
        grid_spec=pltpu.PrefetchScalarGridSpec(
            num_scalar_prefetch=1,
            grid=(b,),
            in_specs=[
                pl.BlockSpec((1, S, D), lambda i, eot: (i, 0, 0)),   # prompts
                _const((S, D)),                                      # positional emb
                _const((L, 1, D)), _const((L, 1, D)),                # ln1 gamma/beta
                _const((L, H, D, HD)), _const((L, H, 1, HD)),        # Wq, bq (per head)
                _const((L, H, D, HD)), _const((L, H, 1, HD)),        # Wk, bk
                _const((L, H, D, HD)), _const((L, H, 1, HD)),        # Wv, bv
                _const((L, H, HD, D)), _const((L, 1, D)),            # out proj, bias
                _const((L, 1, D)), _const((L, 1, D)),                # ln2 gamma/beta
                _const((L, D, MLP)), _const((L, 1, MLP)),            # mlp fc
                _const((L, MLP, D)), _const((L, 1, D)),              # mlp proj
                _const((1, D)), _const((1, D)),                      # ln_final
                _const((D, E_OUT)),                                  # text_projection
            ],
            out_specs=pl.BlockSpec((1, 1, E_OUT), lambda i, eot: (i, 0, 0)),
            scratch_shapes=[pltpu.VMEM((S, D), jnp.float32)],
        ),
        compiler_params=pltpu.CompilerParams(
            dimension_semantics=("parallel",)),        # v7x: shard batch over both TCs
    )(eot, prompts, params["pos"],
      g1, b1, wq, bq, wk, bk, wv, bv, wo_h, bo,
      g2, b2, w1, b1m, w2, b2m,
      params["ln_f_g"], params["ln_f_b"], params["proj"])
    return out.reshape(b, E_OUT)


# -----------------------------------------------------------------------------
# Deterministic parameter init (synthetic CLIP text tower)
# -----------------------------------------------------------------------------
def init_params(key):
    ks = jax.random.split(key, 2 + L)
    params = {
        "pos": 0.01 * jax.random.normal(ks[0], (S, D), jnp.float32),
        "ln_f_g": jnp.ones((1, D), jnp.float32),
        "ln_f_b": jnp.zeros((1, D), jnp.float32),
        "proj": 0.02 * jax.random.normal(ks[1], (D, E_OUT), jnp.float32),
        "layers": [],
    }
    for l in range(L):
        lk = jax.random.split(ks[2 + l], 4)
        params["layers"].append({
            "g1": jnp.ones((1, D), jnp.float32),
            "b1": jnp.zeros((1, D), jnp.float32),
            "wqkv": 0.02 * jax.random.normal(lk[0], (D, 3 * D), jnp.float32),
            "bqkv": jnp.zeros((1, 3 * D), jnp.float32),
            "wo": 0.02 * jax.random.normal(lk[1], (D, D), jnp.float32),
            "bo": jnp.zeros((1, D), jnp.float32),
            "g2": jnp.ones((1, D), jnp.float32),
            "b2": jnp.zeros((1, D), jnp.float32),
            "w1": 0.02 * jax.random.normal(lk[2], (D, MLP), jnp.float32),
            "b1m": jnp.zeros((1, MLP), jnp.float32),
            "w2": 0.02 * jax.random.normal(lk[3], (MLP, D), jnp.float32),
            "b2m": jnp.zeros((1, D), jnp.float32),
        })
    return params


# -----------------------------------------------------------------------------
# Pure-JAX reference (same math) for a correctness check
# -----------------------------------------------------------------------------
def reference(prompts, tokenized_prompts, params):
    if prompts.ndim == 4:
        prompts = prompts.reshape((-1,) + prompts.shape[2:])
    x = prompts + params["pos"]
    causal = jnp.tril(jnp.ones((S, S), bool))
    for p in params["layers"]:
        h = _ln(x, p["g1"], p["b1"])
        qkv = h @ p["wqkv"] + p["bqkv"]
        q, k, v = jnp.split(qkv, 3, axis=-1)
        q = q.reshape(-1, S, H, HD).transpose(0, 2, 1, 3)
        k = k.reshape(-1, S, H, HD).transpose(0, 2, 1, 3)
        v = v.reshape(-1, S, H, HD).transpose(0, 2, 1, 3)
        s = jnp.einsum("bhqd,bhkd->bhqk", q, k) / (HD ** 0.5)
        s = jnp.where(causal, s, -1e30)
        pattn = jax.nn.softmax(s, axis=-1)
        ctx = jnp.einsum("bhqk,bhkd->bhqd", pattn, v)
        ctx = ctx.transpose(0, 2, 1, 3).reshape(-1, S, D)
        x = x + (ctx @ p["wo"] + p["bo"])
        h2 = _ln(x, p["g2"], p["b2"])
        m = h2 @ p["w1"] + p["b1m"]
        m = m * jax.nn.sigmoid(1.702 * m)
        x = x + (m @ p["w2"] + p["b2m"])
    x = _ln(x, params["ln_f_g"], params["ln_f_b"])
    eot = jnp.argmax(tokenized_prompts, axis=-1)
    sel = x[jnp.arange(x.shape[0]), eot]
    return sel @ params["proj"]


if __name__ == "__main__":
    key = jax.random.PRNGKey(0)
    k_param, k_prompt, k_tok = jax.random.split(key, 3)

    params = init_params(k_param)
    B = 2
    prompts = 0.02 * jax.random.normal(k_prompt, (B, S, D), jnp.float32)
    tokenized_prompts = jax.random.randint(k_tok, (B, S), 1, 1000, jnp.int32)

    out = nega_text_encoder(prompts, tokenized_prompts, params)
    out = jax.block_until_ready(out)

    ref = reference(prompts, tokenized_prompts, params)
    assert out.shape == (B, E_OUT)
    assert jnp.allclose(out, ref, atol=1e-2, rtol=1e-2), "mismatch vs reference"

    print("KERNEL_OK")
</pallas_src>

<mosaic_0001>
module attributes {stable_mosaic.version = 11 : i64} {
  func.func @fused_encoder_kernel(%arg0: i32, %arg1: memref<2xi32, #tpu.memory_space<smem>>, %arg2: memref<1x8x32xf32, #tpu.memory_space<vmem>>, %arg3: memref<8x32xf32, #tpu.memory_space<vmem>>, %arg4: memref<2x1x32xf32, #tpu.memory_space<vmem>>, %arg5: memref<2x1x32xf32, #tpu.memory_space<vmem>>, %arg6: memref<2x4x32x8xf32, #tpu.memory_space<vmem>>, %arg7: memref<2x4x1x8xf32, #tpu.memory_space<vmem>>, %arg8: memref<2x4x32x8xf32, #tpu.memory_space<vmem>>, %arg9: memref<2x4x1x8xf32, #tpu.memory_space<vmem>>, %arg10: memref<2x4x32x8xf32, #tpu.memory_space<vmem>>, %arg11: memref<2x4x1x8xf32, #tpu.memory_space<vmem>>, %arg12: memref<2x4x8x32xf32, #tpu.memory_space<vmem>>, %arg13: memref<2x1x32xf32, #tpu.memory_space<vmem>>, %arg14: memref<2x1x32xf32, #tpu.memory_space<vmem>>, %arg15: memref<2x1x32xf32, #tpu.memory_space<vmem>>, %arg16: memref<2x32x128xf32, #tpu.memory_space<vmem>>, %arg17: memref<2x1x128xf32, #tpu.memory_space<vmem>>, %arg18: memref<2x128x32xf32, #tpu.memory_space<vmem>>, %arg19: memref<2x1x32xf32, #tpu.memory_space<vmem>>, %arg20: memref<1x32xf32, #tpu.memory_space<vmem>>, %arg21: memref<1x32xf32, #tpu.memory_space<vmem>>, %arg22: memref<32x32xf32, #tpu.memory_space<vmem>>, %arg23: memref<1x1x32xf32, #tpu.memory_space<vmem>>, %arg24: memref<8x32xf32, #tpu.memory_space<vmem>>) attributes {dimension_semantics = [#tpu.dimension_semantics<parallel>], iteration_bounds = array<i64: 2>, scalar_prefetch = 1 : i64, scratch_operands = 1 : i64, tpu.core_type = #tpu.core_type<tc>, window_params = [{transform_indices = @transform_0, window_bounds = array<i64: 1, 8, 32>}, {pipeline_mode = #tpu.pipeline_mode<synchronous>, transform_indices = @transform_1, window_bounds = array<i64: 8, 32>}, {pipeline_mode = #tpu.pipeline_mode<synchronous>, transform_indices = @transform_2, window_bounds = array<i64: 2, 1, 32>}, {pipeline_mode = #tpu.pipeline_mode<synchronous>, transform_indices = @transform_3, window_bounds = array<i64: 2, 1, 32>}, {pipeline_mode = #tpu.pipeline_mode<synchronous>, transform_indices = @transform_4, window_bounds = array<i64: 2, 4, 32, 8>}, {pipeline_mode = #tpu.pipeline_mode<synchronous>, transform_indices = @transform_5, window_bounds = array<i64: 2, 4, 1, 8>}, {pipeline_mode = #tpu.pipeline_mode<synchronous>, transform_indices = @transform_6, window_bounds = array<i64: 2, 4, 32, 8>}, {pipeline_mode = #tpu.pipeline_mode<synchronous>, transform_indices = @transform_7, window_bounds = array<i64: 2, 4, 1, 8>}, {pipeline_mode = #tpu.pipeline_mode<synchronous>, transform_indices = @transform_8, window_bounds = array<i64: 2, 4, 32, 8>}, {pipeline_mode = #tpu.pipeline_mode<synchronous>, transform_indices = @transform_9, window_bounds = array<i64: 2, 4, 1, 8>}, {pipeline_mode = #tpu.pipeline_mode<synchronous>, transform_indices = @transform_10, window_bounds = array<i64: 2, 4, 8, 32>}, {pipeline_mode = #tpu.pipeline_mode<synchronous>, transform_indices = @transform_11, window_bounds = array<i64: 2, 1, 32>}, {pipeline_mode = #tpu.pipeline_mode<synchronous>, transform_indices = @transform_12, window_bounds = array<i64: 2, 1, 32>}, {pipeline_mode = #tpu.pipeline_mode<synchronous>, transform_indices = @transform_13, window_bounds = array<i64: 2, 1, 32>}, {pipeline_mode = #tpu.pipeline_mode<synchronous>, transform_indices = @transform_14, window_bounds = array<i64: 2, 32, 128>}, {pipeline_mode = #tpu.pipeline_mode<synchronous>, transform_indices = @transform_15, window_bounds = array<i64: 2, 1, 128>}, {pipeline_mode = #tpu.pipeline_mode<synchronous>, transform_indices = @transform_16, window_bounds = array<i64: 2, 128, 32>}, {pipeline_mode = #tpu.pipeline_mode<synchronous>, transform_indices = @transform_17, window_bounds = array<i64: 2, 1, 32>}, {pipeline_mode = #tpu.pipeline_mode<synchronous>, transform_indices = @transform_18, window_bounds = array<i64: 1, 32>}, {pipeline_mode = #tpu.pipeline_mode<synchronous>, transform_indices = @transform_19, window_bounds = array<i64: 1, 32>}, {pipeline_mode = #tpu.pipeline_mode<synchronous>, transform_indices = @transform_20, window_bounds = array<i64: 32, 32>}, {transform_indices = @transform_21, window_bounds = array<i64: 1, 1, 32>}]} {
    %c0 = arith.constant 0 : index
    %c0_0 = arith.constant 0 : index
    %c0_1 = arith.constant 0 : index
    %0 = vector.load %arg2[%c0, %c0_0, %c0_1] : memref<1x8x32xf32, #tpu.memory_space<vmem>>, vector<1x8x32xf32>
    %1 = vector.shape_cast %0 : vector<1x8x32xf32> to vector<8x32xf32>
    %c0_2 = arith.constant 0 : index
    %c0_3 = arith.constant 0 : index
    %2 = vector.load %arg3[%c0_2, %c0_3] : memref<8x32xf32, #tpu.memory_space<vmem>>, vector<8x32xf32>
    %3 = arith.addf %1, %2 : vector<8x32xf32>
    %4 = tpu.iota {dimensions = array<i32: 0>} : vector<8x8xi32>
    %5 = tpu.iota {dimensions = array<i32: 1>} : vector<8x8xi32>
    %6 = arith.cmpi sle, %5, %4 : vector<8x8xi32>
    %7 = vector.shape_cast %6 : vector<8x8xi1> to vector<1x8x8xi1>
    %c0_4 = arith.constant 0 : index
    %c0_5 = arith.constant 0 : index
    %c0_6 = arith.constant 0 : index
    %8 = vector.load %arg4[%c0_4, %c0_5, %c0_6] : memref<2x1x32xf32, #tpu.memory_space<vmem>>, vector<1x1x32xf32>
    %9 = vector.shape_cast %8 : vector<1x1x32xf32> to vector<1x32xf32>
    %c0_7 = arith.constant 0 : index
    %c0_8 = arith.constant 0 : index
    %c0_9 = arith.constant 0 : index
    %10 = vector.load %arg5[%c0_7, %c0_8, %c0_9] : memref<2x1x32xf32, #tpu.memory_space<vmem>>, vector<1x1x32xf32>
    %11 = vector.shape_cast %10 : vector<1x1x32xf32> to vector<1x32xf32>
    %cst = arith.constant dense<0.000000e+00> : vector<8xf32>
    %12 = vector.multi_reduction <add>, %3, %cst [1] : vector<8x32xf32> to vector<8xf32>
    %13 = vector.shape_cast %12 : vector<8xf32> to vector<8x1xf32>
    %cst_10 = arith.constant 3.200000e+01 : f32
    %14 = vector.broadcast %cst_10 : f32 to vector<8x1xf32>
    %15 = arith.divf %13, %14 : vector<8x1xf32>
    %16 = vector.broadcast %15 : vector<8x1xf32> to vector<8x32xf32>
    %17 = arith.subf %3, %16 : vector<8x32xf32>
    %18 = arith.mulf %17, %17 : vector<8x32xf32>
    %cst_11 = arith.constant dense<0.000000e+00> : vector<8xf32>
    %19 = vector.multi_reduction <add>, %18, %cst_11 [1] : vector<8x32xf32> to vector<8xf32>
    %20 = vector.shape_cast %19 : vector<8xf32> to vector<8x1xf32>
    %cst_12 = arith.constant 3.200000e+01 : f32
    %21 = vector.broadcast %cst_12 : f32 to vector<8x1xf32>
    %22 = arith.divf %20, %21 : vector<8x1xf32>
    %23 = vector.broadcast %15 : vector<8x1xf32> to vector<8x32xf32>
    %24 = arith.subf %3, %23 : vector<8x32xf32>
    %cst_13 = arith.constant 9.99999974E-6 : f32
    %25 = vector.broadcast %cst_13 : f32 to vector<8x1xf32>
    %26 = arith.addf %22, %25 : vector<8x1xf32>
    %27 = math.rsqrt %26 : vector<8x1xf32>
    %28 = vector.broadcast %27 : vector<8x1xf32> to vector<8x32xf32>
    %29 = arith.mulf %24, %28 : vector<8x32xf32>
    %30 = vector.broadcast %9 : vector<1x32xf32> to vector<8x32xf32>
    %31 = arith.mulf %29, %30 : vector<8x32xf32>
    %32 = vector.broadcast %11 : vector<1x32xf32> to vector<8x32xf32>
    %33 = arith.addf %31, %32 : vector<8x32xf32>
    %34 = vector.shape_cast %33 : vector<8x32xf32> to vector<1x8x32xf32>
    %35 = vector.broadcast %34 : vector<1x8x32xf32> to vector<4x8x32xf32>
    %c0_14 = arith.constant 0 : index
    %c0_15 = arith.constant 0 : index
    %c0_16 = arith.constant 0 : index
    %c0_17 = arith.constant 0 : index
    %36 = vector.load %arg6[%c0_14, %c0_15, %c0_16, %c0_17] : memref<2x4x32x8xf32, #tpu.memory_space<vmem>>, vector<1x4x32x8xf32>
    %37 = vector.shape_cast %36 : vector<1x4x32x8xf32> to vector<4x32x8xf32>
    "tpu.trace_start"() <{level = 10 : i32, message = "hsd,hde->hse"}> : () -> ()
    %cst_18 = arith.constant dense<0.000000e+00> : vector<4x8x8xf32>
    %38 = tpu.matmul %35, %37, %cst_18 {dimension_numbers = #tpu.dot_dimension_numbers<[2], [1], [1], [2], [0, 0, 0, 1, 1, 2], [0], [0]>} : vector<4x8x32xf32>, vector<4x32x8xf32>, vector<4x8x8xf32> -> vector<4x8x8xf32>
    "tpu.trace_stop"() : () -> ()
    %c0_19 = arith.constant 0 : index
    %c0_20 = arith.constant 0 : index
    %c0_21 = arith.constant 0 : index
    %c0_22 = arith.constant 0 : index
    %39 = vector.load %arg7[%c0_19, %c0_20, %c0_21, %c0_22] : memref<2x4x1x8xf32, #tpu.memory_space<vmem>>, vector<1x4x1x8xf32>
    %40 = vector.shape_cast %39 : vector<1x4x1x8xf32> to vector<4x1x8xf32>
    %41 = vector.broadcast %40 : vector<4x1x8xf32> to vector<4x8x8xf32>
    %42 = arith.addf %38, %41 : vector<4x8x8xf32>
    %c0_23 = arith.constant 0 : index
    %c0_24 = arith.constant 0 : index
    %c0_25 = arith.constant 0 : index
    %c0_26 = arith.constant 0 : index
    %43 = vector.load %arg8[%c0_23, %c0_24, %c0_25, %c0_26] : memref<2x4x32x8xf32, #tpu.memory_space<vmem>>, vector<1x4x32x8xf32>
    %44 = vector.shape_cast %43 : vector<1x4x32x8xf32> to vector<4x32x8xf32>
    "tpu.trace_start"() <{level = 10 : i32, message = "hsd,hde->hse"}> : () -> ()
    %cst_27 = arith.constant dense<0.000000e+00> : vector<4x8x8xf32>
    %45 = tpu.matmul %35, %44, %cst_27 {dimension_numbers = #tpu.dot_dimension_numbers<[2], [1], [1], [2], [0, 0, 0, 1, 1, 2], [0], [0]>} : vector<4x8x32xf32>, vector<4x32x8xf32>, vector<4x8x8xf32> -> vector<4x8x8xf32>
    "tpu.trace_stop"() : () -> ()
    %c0_28 = arith.constant 0 : index
    %c0_29 = arith.constant 0 : index
    %c0_30 = arith.constant 0 : index
    %c0_31 = arith.constant 0 : index
    %46 = vector.load %arg9[%c0_28, %c0_29, %c0_30, %c0_31] : memref<2x4x1x8xf32, #tpu.memory_space<vmem>>, vector<1x4x1x8xf32>
    %47 = vector.shape_cast %46 : vector<1x4x1x8xf32> to vector<4x1x8xf32>
    %48 = vector.broadcast %47 : vector<4x1x8xf32> to vector<4x8x8xf32>
    %49 = arith.addf %45, %48 : vector<4x8x8xf32>
    %c0_32 = arith.constant 0 : index
    %c0_33 = arith.constant 0 : index
    %c0_34 = arith.constant 0 : index
    %c0_35 = arith.constant 0 : index
    %50 = vector.load %arg10[%c0_32, %c0_33, %c0_34, %c0_35] : memref<2x4x32x8xf32, #tpu.memory_space<vmem>>, vector<1x4x32x8xf32>
    %51 = vector.shape_cast %50 : vector<1x4x32x8xf32> to vector<4x32x8xf32>
    "tpu.trace_start"() <{level = 10 : i32, message = "hsd,hde->hse"}> : () -> ()
    %cst_36 = arith.constant dense<0.000000e+00> : vector<4x8x8xf32>
    %52 = tpu.matmul %35, %51, %cst_36 {dimension_numbers = #tpu.dot_dimension_numbers<[2], [1], [1], [2], [0, 0, 0, 1, 1, 2], [0], [0]>} : vector<4x8x32xf32>, vector<4x32x8xf32>, vector<4x8x8xf32> -> vector<4x8x8xf32>
    "tpu.trace_stop"() : () -> ()
    %c0_37 = arith.constant 0 : index
    %c0_38 = arith.constant 0 : index
    %c0_39 = arith.constant 0 : index
    %c0_40 = arith.constant 0 : index
    %53 = vector.load %arg11[%c0_37, %c0_38, %c0_39, %c0_40] : memref<2x4x1x8xf32, #tpu.memory_space<vmem>>, vector<1x4x1x8xf32>
    %54 = vector.shape_cast %53 : vector<1x4x1x8xf32> to vector<4x1x8xf32>
    %55 = vector.broadcast %54 : vector<4x1x8xf32> to vector<4x8x8xf32>
    %56 = arith.addf %52, %55 : vector<4x8x8xf32>
    "tpu.trace_start"() <{level = 10 : i32, message = "hqe,hke->hqk"}> : () -> ()
    %cst_41 = arith.constant dense<0.000000e+00> : vector<4x8x8xf32>
    %57 = tpu.matmul %42, %49, %cst_41 {dimension_numbers = #tpu.dot_dimension_numbers<[2], [2], [1], [1], [0, 0, 0, 1, 1, 1], [0], [0]>} : vector<4x8x8xf32>, vector<4x8x8xf32>, vector<4x8x8xf32> -> vector<4x8x8xf32>
    "tpu.trace_stop"() : () -> ()
    %cst_42 = arith.constant 0.353553385 : f32
    %58 = vector.broadcast %cst_42 : f32 to vector<4x8x8xf32>
    %59 = arith.mulf %57, %58 : vector<4x8x8xf32>
    %cst_43 = arith.constant -1.000000e+30 : f32
    %60 = vector.shape_cast %7 : vector<1x8x8xi1> to vector<1x8x8xi1>
    %61 = vector.broadcast %60 : vector<1x8x8xi1> to vector<4x8x8xi1>
    %62 = vector.broadcast %cst_43 : f32 to vector<4x8x8xf32>
    %63 = arith.select %61, %59, %62 : vector<4x8x8xi1>, vector<4x8x8xf32>
    %cst_44 = arith.constant dense<0xFF800000> : vector<4x8xf32>
    %64 = vector.multi_reduction <maximumf>, %63, %cst_44 [2] : vector<4x8x8xf32> to vector<4x8xf32>
    %65 = vector.shape_cast %64 : vector<4x8xf32> to vector<4x8x1xf32>
    %66 = vector.broadcast %65 : vector<4x8x1xf32> to vector<4x8x8xf32>
    %67 = arith.subf %63, %66 : vector<4x8x8xf32>
    %68 = math.exp %67 : vector<4x8x8xf32>
    %cst_45 = arith.constant dense<0.000000e+00> : vector<4x8xf32>
    %69 = vector.multi_reduction <add>, %68, %cst_45 [2] : vector<4x8x8xf32> to vector<4x8xf32>
    %70 = vector.shape_cast %69 : vector<4x8xf32> to vector<4x8x1xf32>
    %71 = tpu.reciprocal %70 {approx = true} : vector<4x8x1xf32> -> vector<4x8x1xf32>
    %72 = vector.broadcast %71 : vector<4x8x1xf32> to vector<4x8x8xf32>
    %73 = arith.mulf %68, %72 : vector<4x8x8xf32>
    "tpu.trace_start"() <{level = 10 : i32, message = "hqk,hke->hqe"}> : () -> ()
    %cst_46 = arith.constant dense<0.000000e+00> : vector<4x8x8xf32>
    %74 = tpu.matmul %73, %56, %cst_46 {dimension_numbers = #tpu.dot_dimension_numbers<[2], [1], [1], [2], [0, 0, 0, 1, 1, 2], [0], [0]>} : vector<4x8x8xf32>, vector<4x8x8xf32>, vector<4x8x8xf32> -> vector<4x8x8xf32>
    "tpu.trace_stop"() : () -> ()
    %c0_47 = arith.constant 0 : index
    %c0_48 = arith.constant 0 : index
    %c0_49 = arith.constant 0 : index
    %c0_50 = arith.constant 0 : index
    %75 = vector.load %arg12[%c0_47, %c0_48, %c0_49, %c0_50] : memref<2x4x8x32xf32, #tpu.memory_space<vmem>>, vector<1x4x8x32xf32>
    %76 = vector.shape_cast %75 : vector<1x4x8x32xf32> to vector<4x8x32xf32>
    "tpu.trace_start"() <{level = 10 : i32, message = "hqe,hed->hqd"}> : () -> ()
    %cst_51 = arith.constant dense<0.000000e+00> : vector<4x8x32xf32>
    %77 = tpu.matmul %74, %76, %cst_51 {dimension_numbers = #tpu.dot_dimension_numbers<[2], [1], [1], [2], [0, 0, 0, 1, 1, 2], [0], [0]>} : vector<4x8x8xf32>, vector<4x8x32xf32>, vector<4x8x32xf32> -> vector<4x8x32xf32>
    "tpu.trace_stop"() : () -> ()
    %cst_52 = arith.constant dense<0.000000e+00> : vector<8x32xf32>
    %78 = vector.multi_reduction <add>, %77, %cst_52 [0] : vector<4x8x32xf32> to vector<8x32xf32>
    %79 = arith.addf %3, %78 : vector<8x32xf32>
    %c0_53 = arith.constant 0 : index
    %c0_54 = arith.constant 0 : index
    %c0_55 = arith.constant 0 : index
    %80 = vector.load %arg13[%c0_53, %c0_54, %c0_55] : memref<2x1x32xf32, #tpu.memory_space<vmem>>, vector<1x1x32xf32>
    %81 = vector.shape_cast %80 : vector<1x1x32xf32> to vector<1x32xf32>
    %82 = vector.broadcast %81 : vector<1x32xf32> to vector<8x32xf32>
    %83 = arith.addf %79, %82 : vector<8x32xf32>
    %c0_56 = arith.constant 0 : index
    %c0_57 = arith.constant 0 : index
    %c0_58 = arith.constant 0 : index
    %84 = vector.load %arg14[%c0_56, %c0_57, %c0_58] : memref<2x1x32xf32, #tpu.memory_space<vmem>>, vector<1x1x32xf32>
    %85 = vector.shape_cast %84 : vector<1x1x32xf32> to vector<1x32xf32>
    %c0_59 = arith.constant 0 : index
    %c0_60 = arith.constant 0 : index
    %c0_61 = arith.constant 0 : index
    %86 = vector.load %arg15[%c0_59, %c0_60, %c0_61] : memref<2x1x32xf32, #tpu.memory_space<vmem>>, vector<1x1x32xf32>
    %87 = vector.shape_cast %86 : vector<1x1x32xf32> to vector<1x32xf32>
    %cst_62 = arith.constant dense<0.000000e+00> : vector<8xf32>
    %88 = vector.multi_reduction <add>, %83, %cst_62 [1] : vector<8x32xf32> to vector<8xf32>
    %89 = vector.shape_cast %88 : vector<8xf32> to vector<8x1xf32>
    %cst_63 = arith.constant 3.200000e+01 : f32
    %90 = vector.broadcast %cst_63 : f32 to vector<8x1xf32>
    %91 = arith.divf %89, %90 : vector<8x1xf32>
    %92 = vector.broadcast %91 : vector<8x1xf32> to vector<8x32xf32>
    %93 = arith.subf %83, %92 : vector<8x32xf32>
    %94 = arith.mulf %93, %93 : vector<8x32xf32>
    %cst_64 = arith.constant dense<0.000000e+00> : vector<8xf32>
    %95 = vector.multi_reduction <add>, %94, %cst_64 [1] : vector<8x32xf32> to vector<8xf32>
    %96 = vector.shape_cast %95 : vector<8xf32> to vector<8x1xf32>
    %cst_65 = arith.constant 3.200000e+01 : f32
    %97 = vector.broadcast %cst_65 : f32 to vector<8x1xf32>
    %98 = arith.divf %96, %97 : vector<8x1xf32>
    %99 = vector.broadcast %91 : vector<8x1xf32> to vector<8x32xf32>
    %100 = arith.subf %83, %99 : vector<8x32xf32>
    %cst_66 = arith.constant 9.99999974E-6 : f32
    %101 = vector.broadcast %cst_66 : f32 to vector<8x1xf32>
    %102 = arith.addf %98, %101 : vector<8x1xf32>
    %103 = math.rsqrt %102 : vector<8x1xf32>
    %104 = vector.broadcast %103 : vector<8x1xf32> to vector<8x32xf32>
    %105 = arith.mulf %100, %104 : vector<8x32xf32>
    %106 = vector.broadcast %85 : vector<1x32xf32> to vector<8x32xf32>
    %107 = arith.mulf %105, %106 : vector<8x32xf32>
    %108 = vector.broadcast %87 : vector<1x32xf32> to vector<8x32xf32>
    %109 = arith.addf %107, %108 : vector<8x32xf32>
    %c0_67 = arith.constant 0 : index
    %c0_68 = arith.constant 0 : index
    %c0_69 = arith.constant 0 : index
    %110 = vector.load %arg16[%c0_67, %c0_68, %c0_69] : memref<2x32x128xf32, #tpu.memory_space<vmem>>, vector<1x32x128xf32>
    %111 = vector.shape_cast %110 : vector<1x32x128xf32> to vector<32x128xf32>
    %cst_70 = arith.constant dense<0.000000e+00> : vector<8x128xf32>
    %112 = tpu.matmul %109, %111, %cst_70 {dimension_numbers = #tpu.dot_dimension_numbers<[1], [0], [0], [1], [0, 0, 1, 1], [], []>} : vector<8x32xf32>, vector<32x128xf32>, vector<8x128xf32> -> vector<8x128xf32>
    %c0_71 = arith.constant 0 : index
    %c0_72 = arith.constant 0 : index
    %c0_73 = arith.constant 0 : index
    %113 = vector.load %arg17[%c0_71, %c0_72, %c0_73] : memref<2x1x128xf32, #tpu.memory_space<vmem>>, vector<1x1x128xf32>
    %114 = vector.shape_cast %113 : vector<1x1x128xf32> to vector<1x128xf32>
    %115 = vector.broadcast %114 : vector<1x128xf32> to vector<8x128xf32>
    %116 = arith.addf %112, %115 : vector<8x128xf32>
    %cst_74 = arith.constant 1.702000e+00 : f32
    %117 = vector.broadcast %cst_74 : f32 to vector<8x128xf32>
    %118 = arith.mulf %117, %116 : vector<8x128xf32>
    %119 = arith.negf %118 : vector<8x128xf32>
    %120 = math.exp %119 : vector<8x128xf32>
    %cst_75 = arith.constant 1.000000e+00 : f32
    %121 = vector.broadcast %cst_75 : f32 to vector<8x128xf32>
    %122 = arith.addf %121, %120 : vector<8x128xf32>
    %123 = arith.divf %121, %122 : vector<8x128xf32>
    %124 = arith.mulf %116, %123 : vector<8x128xf32>
    %c0_76 = arith.constant 0 : index
    %c0_77 = arith.constant 0 : index
    %c0_78 = arith.constant 0 : index
    %125 = vector.load %arg18[%c0_76, %c0_77, %c0_78] : memref<2x128x32xf32, #tpu.memory_space<vmem>>, vector<1x128x32xf32>
    %126 = vector.shape_cast %125 : vector<1x128x32xf32> to vector<128x32xf32>
    %cst_79 = arith.constant dense<0.000000e+00> : vector<8x32xf32>
    %127 = tpu.matmul %124, %126, %cst_79 {dimension_numbers = #tpu.dot_dimension_numbers<[1], [0], [0], [1], [0, 0, 1, 1], [], []>} : vector<8x128xf32>, vector<128x32xf32>, vector<8x32xf32> -> vector<8x32xf32>
    %128 = arith.addf %83, %127 : vector<8x32xf32>
    %c0_80 = arith.constant 0 : index
    %c0_81 = arith.constant 0 : index
    %c0_82 = arith.constant 0 : index
    %129 = vector.load %arg19[%c0_80, %c0_81, %c0_82] : memref<2x1x32xf32, #tpu.memory_space<vmem>>, vector<1x1x32xf32>
    %130 = vector.shape_cast %129 : vector<1x1x32xf32> to vector<1x32xf32>
    %131 = vector.broadcast %130 : vector<1x32xf32> to vector<8x32xf32>
    %132 = arith.addf %128, %131 : vector<8x32xf32>
    %c1 = arith.constant 1 : index
    %c0_83 = arith.constant 0 : index
    %c0_84 = arith.constant 0 : index
    %133 = vector.load %arg4[%c1, %c0_83, %c0_84] : memref<2x1x32xf32, #tpu.memory_space<vmem>>, vector<1x1x32xf32>
    %134 = vector.shape_cast %133 : vector<1x1x32xf32> to vector<1x32xf32>
    %c1_85 = arith.constant 1 : index
    %c0_86 = arith.constant 0 : index
    %c0_87 = arith.constant 0 : index
    %135 = vector.load %arg5[%c1_85, %c0_86, %c0_87] : memref<2x1x32xf32, #tpu.memory_space<vmem>>, vector<1x1x32xf32>
    %136 = vector.shape_cast %135 : vector<1x1x32xf32> to vector<1x32xf32>
    %cst_88 = arith.constant dense<0.000000e+00> : vector<8xf32>
    %137 = vector.multi_reduction <add>, %132, %cst_88 [1] : vector<8x32xf32> to vector<8xf32>
    %138 = vector.shape_cast %137 : vector<8xf32> to vector<8x1xf32>
    %cst_89 = arith.constant 3.200000e+01 : f32
    %139 = vector.broadcast %cst_89 : f32 to vector<8x1xf32>
    %140 = arith.divf %138, %139 : vector<8x1xf32>
    %141 = vector.broadcast %140 : vector<8x1xf32> to vector<8x32xf32>
    %142 = arith.subf %132, %141 : vector<8x32xf32>
    %143 = arith.mulf %142, %142 : vector<8x32xf32>
    %cst_90 = arith.constant dense<0.000000e+00> : vector<8xf32>
    %144 = vector.multi_reduction <add>, %143, %cst_90 [1] : vector<8x32xf32> to vector<8xf32>
    %145 = vector.shape_cast %144 : vector<8xf32> to vector<8x1xf32>
    %cst_91 = arith.constant 3.200000e+01 : f32
    %146 = vector.broadcast %cst_91 : f32 to vector<8x1xf32>
    %147 = arith.divf %145, %146 : vector<8x1xf32>
    %148 = vector.broadcast %140 : vector<8x1xf32> to vector<8x32xf32>
    %149 = arith.subf %132, %148 : vector<8x32xf32>
    %cst_92 = arith.constant 9.99999974E-6 : f32
    %150 = vector.broadcast %cst_92 : f32 to vector<8x1xf32>
    %151 = arith.addf %147, %150 : vector<8x1xf32>
    %152 = math.rsqrt %151 : vector<8x1xf32>
    %153 = vector.broadcast %152 : vector<8x1xf32> to vector<8x32xf32>
    %154 = arith.mulf %149, %153 : vector<8x32xf32>
    %155 = vector.broadcast %134 : vector<1x32xf32> to vector<8x32xf32>
    %156 = arith.mulf %154, %155 : vector<8x32xf32>
    %157 = vector.broadcast %136 : vector<1x32xf32> to vector<8x32xf32>
    %158 = arith.addf %156, %157 : vector<8x32xf32>
    %159 = vector.shape_cast %158 : vector<8x32xf32> to vector<1x8x32xf32>
    %160 = vector.broadcast %159 : vector<1x8x32xf32> to vector<4x8x32xf32>
    %c1_93 = arith.constant 1 : index
    %c0_94 = arith.constant 0 : index
    %c0_95 = arith.constant 0 : index
    %c0_96 = arith.constant 0 : index
    %161 = vector.load %arg6[%c1_93, %c0_94, %c0_95, %c0_96] : memref<2x4x32x8xf32, #tpu.memory_space<vmem>>, vector<1x4x32x8xf32>
    %162 = vector.shape_cast %161 : vector<1x4x32x8xf32> to vector<4x32x8xf32>
    "tpu.trace_start"() <{level = 10 : i32, message = "hsd,hde->hse"}> : () -> ()
    %cst_97 = arith.constant dense<0.000000e+00> : vector<4x8x8xf32>
    %163 = tpu.matmul %160, %162, %cst_97 {dimension_numbers = #tpu.dot_dimension_numbers<[2], [1], [1], [2], [0, 0, 0, 1, 1, 2], [0], [0]>} : vector<4x8x32xf32>, vector<4x32x8xf32>, vector<4x8x8xf32> -> vector<4x8x8xf32>
    "tpu.trace_stop"() : () -> ()
    %c1_98 = arith.constant 1 : index
    %c0_99 = arith.constant 0 : index
    %c0_100 = arith.constant 0 : index
    %c0_101 = arith.constant 0 : index
    %164 = vector.load %arg7[%c1_98, %c0_99, %c0_100, %c0_101] : memref<2x4x1x8xf32, #tpu.memory_space<vmem>>, vector<1x4x1x8xf32>
    %165 = vector.shape_cast %164 : vector<1x4x1x8xf32> to vector<4x1x8xf32>
    %166 = vector.broadcast %165 : vector<4x1x8xf32> to vector<4x8x8xf32>
    %167 = arith.addf %163, %166 : vector<4x8x8xf32>
    %c1_102 = arith.constant 1 : index
    %c0_103 = arith.constant 0 : index
    %c0_104 = arith.constant 0 : index
    %c0_105 = arith.constant 0 : index
    %168 = vector.load %arg8[%c1_102, %c0_103, %c0_104, %c0_105] : memref<2x4x32x8xf32, #tpu.memory_space<vmem>>, vector<1x4x32x8xf32>
    %169 = vector.shape_cast %168 : vector<1x4x32x8xf32> to vector<4x32x8xf32>
    "tpu.trace_start"() <{level = 10 : i32, message = "hsd,hde->hse"}> : () -> ()
    %cst_106 = arith.constant dense<0.000000e+00> : vector<4x8x8xf32>
    %170 = tpu.matmul %160, %169, %cst_106 {dimension_numbers = #tpu.dot_dimension_numbers<[2], [1], [1], [2], [0, 0, 0, 1, 1, 2], [0], [0]>} : vector<4x8x32xf32>, vector<4x32x8xf32>, vector<4x8x8xf32> -> vector<4x8x8xf32>
    "tpu.trace_stop"() : () -> ()
    %c1_107 = arith.constant 1 : index
    %c0_108 = arith.constant 0 : index
    %c0_109 = arith.constant 0 : index
    %c0_110 = arith.constant 0 : index
    %171 = vector.load %arg9[%c1_107, %c0_108, %c0_109, %c0_110] : memref<2x4x1x8xf32, #tpu.memory_space<vmem>>, vector<1x4x1x8xf32>
    %172 = vector.shape_cast %171 : vector<1x4x1x8xf32> to vector<4x1x8xf32>
    %173 = vector.broadcast %172 : vector<4x1x8xf32> to vector<4x8x8xf32>
    %174 = arith.addf %170, %173 : vector<4x8x8xf32>
    %c1_111 = arith.constant 1 : index
    %c0_112 = arith.constant 0 : index
    %c0_113 = arith.constant 0 : index
    %c0_114 = arith.constant 0 : index
    %175 = vector.load %arg10[%c1_111, %c0_112, %c0_113, %c0_114] : memref<2x4x32x8xf32, #tpu.memory_space<vmem>>, vector<1x4x32x8xf32>
    %176 = vector.shape_cast %175 : vector<1x4x32x8xf32> to vector<4x32x8xf32>
    "tpu.trace_start"() <{level = 10 : i32, message = "hsd,hde->hse"}> : () -> ()
    %cst_115 = arith.constant dense<0.000000e+00> : vector<4x8x8xf32>
    %177 = tpu.matmul %160, %176, %cst_115 {dimension_numbers = #tpu.dot_dimension_numbers<[2], [1], [1], [2], [0, 0, 0, 1, 1, 2], [0], [0]>} : vector<4x8x32xf32>, vector<4x32x8xf32>, vector<4x8x8xf32> -> vector<4x8x8xf32>
    "tpu.trace_stop"() : () -> ()
    %c1_116 = arith.constant 1 : index
    %c0_117 = arith.constant 0 : index
    %c0_118 = arith.constant 0 : index
    %c0_119 = arith.constant 0 : index
    %178 = vector.load %arg11[%c1_116, %c0_117, %c0_118, %c0_119] : memref<2x4x1x8xf32, #tpu.memory_space<vmem>>, vector<1x4x1x8xf32>
    %179 = vector.shape_cast %178 : vector<1x4x1x8xf32> to vector<4x1x8xf32>
    %180 = vector.broadcast %179 : vector<4x1x8xf32> to vector<4x8x8xf32>
    %181 = arith.addf %177, %180 : vector<4x8x8xf32>
    "tpu.trace_start"() <{level = 10 : i32, message = "hqe,hke->hqk"}> : () -> ()
    %cst_120 = arith.constant dense<0.000000e+00> : vector<4x8x8xf32>
    %182 = tpu.matmul %167, %174, %cst_120 {dimension_numbers = #tpu.dot_dimension_numbers<[2], [2], [1], [1], [0, 0, 0, 1, 1, 1], [0], [0]>} : vector<4x8x8xf32>, vector<4x8x8xf32>, vector<4x8x8xf32> -> vector<4x8x8xf32>
    "tpu.trace_stop"() : () -> ()
    %cst_121 = arith.constant 0.353553385 : f32
    %183 = vector.broadcast %cst_121 : f32 to vector<4x8x8xf32>
    %184 = arith.mulf %182, %183 : vector<4x8x8xf32>
    %cst_122 = arith.constant -1.000000e+30 : f32
    %185 = vector.shape_cast %7 : vector<1x8x8xi1> to vector<1x8x8xi1>
    %186 = vector.broadcast %185 : vector<1x8x8xi1> to vector<4x8x8xi1>
    %187 = vector.broadcast %cst_122 : f32 to vector<4x8x8xf32>
    %188 = arith.select %186, %184, %187 : vector<4x8x8xi1>, vector<4x8x8xf32>
    %cst_123 = arith.constant dense<0xFF800000> : vector<4x8xf32>
    %189 = vector.multi_reduction <maximumf>, %188, %cst_123 [2] : vector<4x8x8xf32> to vector<4x8xf32>
    %190 = vector.shape_cast %189 : vector<4x8xf32> to vector<4x8x1xf32>
    %191 = vector.broadcast %190 : vector<4x8x1xf32> to vector<4x8x8xf32>
    %192 = arith.subf %188, %191 : vector<4x8x8xf32>
    %193 = math.exp %192 : vector<4x8x8xf32>
    %cst_124 = arith.constant dense<0.000000e+00> : vector<4x8xf32>
    %194 = vector.multi_reduction <add>, %193, %cst_124 [2] : vector<4x8x8xf32> to vector<4x8xf32>
    %195 = vector.shape_cast %194 : vector<4x8xf32> to vector<4x8x1xf32>
    %196 = tpu.reciprocal %195 {approx = true} : vector<4x8x1xf32> -> vector<4x8x1xf32>
    %197 = vector.broadcast %196 : vector<4x8x1xf32> to vector<4x8x8xf32>
    %198 = arith.mulf %193, %197 : vector<4x8x8xf32>
    "tpu.trace_start"() <{level = 10 : i32, message = "hqk,hke->hqe"}> : () -> ()
    %cst_125 = arith.constant dense<0.000000e+00> : vector<4x8x8xf32>
    %199 = tpu.matmul %198, %181, %cst_125 {dimension_numbers = #tpu.dot_dimension_numbers<[2], [1], [1], [2], [0, 0, 0, 1, 1, 2], [0], [0]>} : vector<4x8x8xf32>, vector<4x8x8xf32>, vector<4x8x8xf32> -> vector<4x8x8xf32>
    "tpu.trace_stop"() : () -> ()
    %c1_126 = arith.constant 1 : index
    %c0_127 = arith.constant 0 : index
    %c0_128 = arith.constant 0 : index
    %c0_129 = arith.constant 0 : index
    %200 = vector.load %arg12[%c1_126, %c0_127, %c0_128, %c0_129] : memref<2x4x8x32xf32, #tpu.memory_space<vmem>>, vector<1x4x8x32xf32>
    %201 = vector.shape_cast %200 : vector<1x4x8x32xf32> to vector<4x8x32xf32>
    "tpu.trace_start"() <{level = 10 : i32, message = "hqe,hed->hqd"}> : () -> ()
    %cst_130 = arith.constant dense<0.000000e+00> : vector<4x8x32xf32>
    %202 = tpu.matmul %199, %201, %cst_130 {dimension_numbers = #tpu.dot_dimension_numbers<[2], [1], [1], [2], [0, 0, 0, 1, 1, 2], [0], [0]>} : vector<4x8x8xf32>, vector<4x8x32xf32>, vector<4x8x32xf32> -> vector<4x8x32xf32>
    "tpu.trace_stop"() : () -> ()
    %cst_131 = arith.constant dense<0.000000e+00> : vector<8x32xf32>
    %203 = vector.multi_reduction <add>, %202, %cst_131 [0] : vector<4x8x32xf32> to vector<8x32xf32>
    %204 = arith.addf %132, %203 : vector<8x32xf32>
    %c1_132 = arith.constant 1 : index
    %c0_133 = arith.constant 0 : index
    %c0_134 = arith.constant 0 : index
    %205 = vector.load %arg13[%c1_132, %c0_133, %c0_134] : memref<2x1x32xf32, #tpu.memory_space<vmem>>, vector<1x1x32xf32>
    %206 = vector.shape_cast %205 : vector<1x1x32xf32> to vector<1x32xf32>
    %207 = vector.broadcast %206 : vector<1x32xf32> to vector<8x32xf32>
    %208 = arith.addf %204, %207 : vector<8x32xf32>
    %c1_135 = arith.constant 1 : index
    %c0_136 = arith.constant 0 : index
    %c0_137 = arith.constant 0 : index
    %209 = vector.load %arg14[%c1_135, %c0_136, %c0_137] : memref<2x1x32xf32, #tpu.memory_space<vmem>>, vector<1x1x32xf32>
    %210 = vector.shape_cast %209 : vector<1x1x32xf32> to vector<1x32xf32>
    %c1_138 = arith.constant 1 : index
    %c0_139 = arith.constant 0 : index
    %c0_140 = arith.constant 0 : index
    %211 = vector.load %arg15[%c1_138, %c0_139, %c0_140] : memref<2x1x32xf32, #tpu.memory_space<vmem>>, vector<1x1x32xf32>
    %212 = vector.shape_cast %211 : vector<1x1x32xf32> to vector<1x32xf32>
    %cst_141 = arith.constant dense<0.000000e+00> : vector<8xf32>
    %213 = vector.multi_reduction <add>, %208, %cst_141 [1] : vector<8x32xf32> to vector<8xf32>
    %214 = vector.shape_cast %213 : vector<8xf32> to vector<8x1xf32>
    %cst_142 = arith.constant 3.200000e+01 : f32
    %215 = vector.broadcast %cst_142 : f32 to vector<8x1xf32>
    %216 = arith.divf %214, %215 : vector<8x1xf32>
    %217 = vector.broadcast %216 : vector<8x1xf32> to vector<8x32xf32>
    %218 = arith.subf %208, %217 : vector<8x32xf32>
    %219 = arith.mulf %218, %218 : vector<8x32xf32>
    %cst_143 = arith.constant dense<0.000000e+00> : vector<8xf32>
    %220 = vector.multi_reduction <add>, %219, %cst_143 [1] : vector<8x32xf32> to vector<8xf32>
    %221 = vector.shape_cast %220 : vector<8xf32> to vector<8x1xf32>
    %cst_144 = arith.constant 3.200000e+01 : f32
    %222 = vector.broadcast %cst_144 : f32 to vector<8x1xf32>
    %223 = arith.divf %221, %222 : vector<8x1xf32>
    %224 = vector.broadcast %216 : vector<8x1xf32> to vector<8x32xf32>
    %225 = arith.subf %208, %224 : vector<8x32xf32>
    %cst_145 = arith.constant 9.99999974E-6 : f32
    %226 = vector.broadcast %cst_145 : f32 to vector<8x1xf32>
    %227 = arith.addf %223, %226 : vector<8x1xf32>
    %228 = math.rsqrt %227 : vector<8x1xf32>
    %229 = vector.broadcast %228 : vector<8x1xf32> to vector<8x32xf32>
    %230 = arith.mulf %225, %229 : vector<8x32xf32>
    %231 = vector.broadcast %210 : vector<1x32xf32> to vector<8x32xf32>
    %232 = arith.mulf %230, %231 : vector<8x32xf32>
    %233 = vector.broadcast %212 : vector<1x32xf32> to vector<8x32xf32>
    %234 = arith.addf %232, %233 : vector<8x32xf32>
    %c1_146 = arith.constant 1 : index
    %c0_147 = arith.constant 0 : index
    %c0_148 = arith.constant 0 : index
    %235 = vector.load %arg16[%c1_146, %c0_147, %c0_148] : memref<2x32x128xf32, #tpu.memory_space<vmem>>, vector<1x32x128xf32>
    %236 = vector.shape_cast %235 : vector<1x32x128xf32> to vector<32x128xf32>
    %cst_149 = arith.constant dense<0.000000e+00> : vector<8x128xf32>
    %237 = tpu.matmul %234, %236, %cst_149 {dimension_numbers = #tpu.dot_dimension_numbers<[1], [0], [0], [1], [0, 0, 1, 1], [], []>} : vector<8x32xf32>, vector<32x128xf32>, vector<8x128xf32> -> vector<8x128xf32>
    %c1_150 = arith.constant 1 : index
    %c0_151 = arith.constant 0 : index
    %c0_152 = arith.constant 0 : index
    %238 = vector.load %arg17[%c1_150, %c0_151, %c0_152] : memref<2x1x128xf32, #tpu.memory_space<vmem>>, vector<1x1x128xf32>
    %239 = vector.shape_cast %238 : vector<1x1x128xf32> to vector<1x128xf32>
    %240 = vector.broadcast %239 : vector<1x128xf32> to vector<8x128xf32>
    %241 = arith.addf %237, %240 : vector<8x128xf32>
    %cst_153 = arith.constant 1.702000e+00 : f32
    %242 = vector.broadcast %cst_153 : f32 to vector<8x128xf32>
    %243 = arith.mulf %242, %241 : vector<8x128xf32>
    %244 = arith.negf %243 : vector<8x128xf32>
    %245 = math.exp %244 : vector<8x128xf32>
    %cst_154 = arith.constant 1.000000e+00 : f32
    %246 = vector.broadcast %cst_154 : f32 to vector<8x128xf32>
    %247 = arith.addf %246, %245 : vector<8x128xf32>
    %248 = arith.divf %246, %247 : vector<8x128xf32>
    %249 = arith.mulf %241, %248 : vector<8x128xf32>
    %c1_155 = arith.constant 1 : index
    %c0_156 = arith.constant 0 : index
    %c0_157 = arith.constant 0 : index
    %250 = vector.load %arg18[%c1_155, %c0_156, %c0_157] : memref<2x128x32xf32, #tpu.memory_space<vmem>>, vector<1x128x32xf32>
    %251 = vector.shape_cast %250 : vector<1x128x32xf32> to vector<128x32xf32>
    %cst_158 = arith.constant dense<0.000000e+00> : vector<8x32xf32>
    %252 = tpu.matmul %249, %251, %cst_158 {dimension_numbers = #tpu.dot_dimension_numbers<[1], [0], [0], [1], [0, 0, 1, 1], [], []>} : vector<8x128xf32>, vector<128x32xf32>, vector<8x32xf32> -> vector<8x32xf32>
    %253 = arith.addf %208, %252 : vector<8x32xf32>
    %c1_159 = arith.constant 1 : index
    %c0_160 = arith.constant 0 : index
    %c0_161 = arith.constant 0 : index
    %254 = vector.load %arg19[%c1_159, %c0_160, %c0_161] : memref<2x1x32xf32, #tpu.memory_space<vmem>>, vector<1x1x32xf32>
    %255 = vector.shape_cast %254 : vector<1x1x32xf32> to vector<1x32xf32>
    %256 = vector.broadcast %255 : vector<1x32xf32> to vector<8x32xf32>
    %257 = arith.addf %253, %256 : vector<8x32xf32>
    %c0_162 = arith.constant 0 : index
    %c0_163 = arith.constant 0 : index
    %258 = vector.load %arg20[%c0_162, %c0_163] : memref<1x32xf32, #tpu.memory_space<vmem>>, vector<1x32xf32>
    %c0_164 = arith.constant 0 : index
    %c0_165 = arith.constant 0 : index
    %259 = vector.load %arg21[%c0_164, %c0_165] : memref<1x32xf32, #tpu.memory_space<vmem>>, vector<1x32xf32>
    %cst_166 = arith.constant dense<0.000000e+00> : vector<8xf32>
    %260 = vector.multi_reduction <add>, %257, %cst_166 [1] : vector<8x32xf32> to vector<8xf32>
    %261 = vector.shape_cast %260 : vector<8xf32> to vector<8x1xf32>
    %cst_167 = arith.constant 3.200000e+01 : f32
    %262 = vector.broadcast %cst_167 : f32 to vector<8x1xf32>
    %263 = arith.divf %261, %262 : vector<8x1xf32>
    %264 = vector.broadcast %263 : vector<8x1xf32> to vector<8x32xf32>
    %265 = arith.subf %257, %264 : vector<8x32xf32>
    %266 = arith.mulf %265, %265 : vector<8x32xf32>
    %cst_168 = arith.constant dense<0.000000e+00> : vector<8xf32>
    %267 = vector.multi_reduction <add>, %266, %cst_168 [1] : vector<8x32xf32> to vector<8xf32>
    %268 = vector.shape_cast %267 : vector<8xf32> to vector<8x1xf32>
    %cst_169 = arith.constant 3.200000e+01 : f32
    %269 = vector.broadcast %cst_169 : f32 to vector<8x1xf32>
    %270 = arith.divf %268, %269 : vector<8x1xf32>
    %271 = vector.broadcast %263 : vector<8x1xf32> to vector<8x32xf32>
    %272 = arith.subf %257, %271 : vector<8x32xf32>
    %cst_170 = arith.constant 9.99999974E-6 : f32
    %273 = vector.broadcast %cst_170 : f32 to vector<8x1xf32>
    %274 = arith.addf %270, %273 : vector<8x1xf32>
    %275 = math.rsqrt %274 : vector<8x1xf32>
    %276 = vector.broadcast %275 : vector<8x1xf32> to vector<8x32xf32>
    %277 = arith.mulf %272, %276 : vector<8x32xf32>
    %278 = vector.broadcast %258 : vector<1x32xf32> to vector<8x32xf32>
    %279 = arith.mulf %277, %278 : vector<8x32xf32>
    %280 = vector.broadcast %259 : vector<1x32xf32> to vector<8x32xf32>
    %281 = arith.addf %279, %280 : vector<8x32xf32>
    %c0_171 = arith.constant 0 : index
    %c0_172 = arith.constant 0 : index
    %282 = vector.load %arg24[%c0_171, %c0_172] : memref<8x32xf32, #tpu.memory_space<vmem>>, vector<8x32xf32>
    tpu.vector_store %arg24[%c0_171, %c0_172], %281 {strides = array<i32>} : memref<8x32xf32, #tpu.memory_space<vmem>>, vector<8x32xf32>,
    %283 = arith.index_cast %arg0 : i32 to index
    %284 = memref.load %arg1[%283] : memref<2xi32, #tpu.memory_space<smem>>
    %285 = arith.index_cast %284 : i32 to index
    %c0_173 = arith.constant 0 : index
    %286 = vector.load %arg24[%285, %c0_173] : memref<8x32xf32, #tpu.memory_space<vmem>>, vector<1x32xf32>
    %c0_174 = arith.constant 0 : index
    %c0_175 = arith.constant 0 : index
    %287 = vector.load %arg22[%c0_174, %c0_175] : memref<32x32xf32, #tpu.memory_space<vmem>>, vector<32x32xf32>
    %cst_176 = arith.constant dense<0.000000e+00> : vector<1x32xf32>
    %288 = tpu.matmul %286, %287, %cst_176 {dimension_numbers = #tpu.dot_dimension_numbers<[1], [0], [0], [1], [0, 0, 1, 1], [], []>} : vector<1x32xf32>, vector<32x32xf32>, vector<1x32xf32> -> vector<1x32xf32>
    %c0_177 = arith.constant 0 : index
    %c0_178 = arith.constant 0 : index
    %c0_179 = arith.constant 0 : index
    %289 = vector.load %arg23[%c0_177, %c0_178, %c0_179] : memref<1x1x32xf32, #tpu.memory_space<vmem>>, vector<1x1x32xf32>
    %290 = vector.shape_cast %289 : vector<1x1x32xf32> to vector<1x32xf32>
    %291 = vector.shape_cast %288 : vector<1x32xf32> to vector<1x1x32xf32>
    tpu.vector_store %arg23[%c0_177, %c0_178, %c0_179], %291 {strides = array<i32>} : memref<1x1x32xf32, #tpu.memory_space<vmem>>, vector<1x1x32xf32>,
    return
  }
  func.func @transform_0(%arg0: i32, %arg1: memref<2xi32, #tpu.memory_space<smem>>) -> (i32, i32, i32) {
    %c0_i32 = arith.constant 0 : i32
    %c0_i32_0 = arith.constant 0 : i32
    %c0_i32_1 = arith.constant 0 : i32
    return %arg0, %c0_i32, %c0_i32_0 : i32, i32, i32
  }
  func.func @transform_1(%arg0: i32, %arg1: memref<2xi32, #tpu.memory_space<smem>>) -> (i32, i32) {
    %c0_i32 = arith.constant 0 : i32
    %c0_i32_0 = arith.constant 0 : i32
    %c0_i32_1 = arith.constant 0 : i32
    return %c0_i32, %c0_i32_0 : i32, i32
  }
  func.func @transform_2(%arg0: i32, %arg1: memref<2xi32, #tpu.memory_space<smem>>) -> (i32, i32, i32) {
    %c0_i32 = arith.constant 0 : i32
    %c0_i32_0 = arith.constant 0 : i32
    %c0_i32_1 = arith.constant 0 : i32
    %c0_i32_2 = arith.constant 0 : i32
    return %c0_i32, %c0_i32_0, %c0_i32_1 : i32, i32, i32
  }
  func.func @transform_3(%arg0: i32, %arg1: memref<2xi32, #tpu.memory_space<smem>>) -> (i32, i32, i32) {
    %c0_i32 = arith.constant 0 : i32
    %c0_i32_0 = arith.constant 0 : i32
    %c0_i32_1 = arith.constant 0 : i32
    %c0_i32_2 = arith.constant 0 : i32
    return %c0_i32, %c0_i32_0, %c0_i32_1 : i32, i32, i32
  }
  func.func @transform_4(%arg0: i32, %arg1: memref<2xi32, #tpu.memory_space<smem>>) -> (i32, i32, i32, i32) {
    %c0_i32 = arith.constant 0 : i32
    %c0_i32_0 = arith.constant 0 : i32
    %c0_i32_1 = arith.constant 0 : i32
    %c0_i32_2 = arith.constant 0 : i32
    %c0_i32_3 = arith.constant 0 : i32
    return %c0_i32, %c0_i32_0, %c0_i32_1, %c0_i32_2 : i32, i32, i32, i32
  }
  func.func @transform_5(%arg0: i32, %arg1: memref<2xi32, #tpu.memory_space<smem>>) -> (i32, i32, i32, i32) {
    %c0_i32 = arith.constant 0 : i32
    %c0_i32_0 = arith.constant 0 : i32
    %c0_i32_1 = arith.constant 0 : i32
    %c0_i32_2 = arith.constant 0 : i32
    %c0_i32_3 = arith.constant 0 : i32
    return %c0_i32, %c0_i32_0, %c0_i32_1, %c0_i32_2 : i32, i32, i32, i32
  }
  func.func @transform_6(%arg0: i32, %arg1: memref<2xi32, #tpu.memory_space<smem>>) -> (i32, i32, i32, i32) {
    %c0_i32 = arith.constant 0 : i32
    %c0_i32_0 = arith.constant 0 : i32
    %c0_i32_1 = arith.constant 0 : i32
    %c0_i32_2 = arith.constant 0 : i32
    %c0_i32_3 = arith.constant 0 : i32
    return %c0_i32, %c0_i32_0, %c0_i32_1, %c0_i32_2 : i32, i32, i32, i32
  }
  func.func @transform_7(%arg0: i32, %arg1: memref<2xi32, #tpu.memory_space<smem>>) -> (i32, i32, i32, i32) {
    %c0_i32 = arith.constant 0 : i32
    %c0_i32_0 = arith.constant 0 : i32
    %c0_i32_1 = arith.constant 0 : i32
    %c0_i32_2 = arith.constant 0 : i32
    %c0_i32_3 = arith.constant 0 : i32
    return %c0_i32, %c0_i32_0, %c0_i32_1, %c0_i32_2 : i32, i32, i32, i32
  }
  func.func @transform_8(%arg0: i32, %arg1: memref<2xi32, #tpu.memory_space<smem>>) -> (i32, i32, i32, i32) {
    %c0_i32 = arith.constant 0 : i32
    %c0_i32_0 = arith.constant 0 : i32
    %c0_i32_1 = arith.constant 0 : i32
    %c0_i32_2 = arith.constant 0 : i32
    %c0_i32_3 = arith.constant 0 : i32
    return %c0_i32, %c0_i32_0, %c0_i32_1, %c0_i32_2 : i32, i32, i32, i32
  }
  func.func @transform_9(%arg0: i32, %arg1: memref<2xi32, #tpu.memory_space<smem>>) -> (i32, i32, i32, i32) {
    %c0_i32 = arith.constant 0 : i32
    %c0_i32_0 = arith.constant 0 : i32
    %c0_i32_1 = arith.constant 0 : i32
    %c0_i32_2 = arith.constant 0 : i32
    %c0_i32_3 = arith.constant 0 : i32
    return %c0_i32, %c0_i32_0, %c0_i32_1, %c0_i32_2 : i32, i32, i32, i32
  }
  func.func @transform_10(%arg0: i32, %arg1: memref<2xi32, #tpu.memory_space<smem>>) -> (i32, i32, i32, i32) {
    %c0_i32 = arith.constant 0 : i32
    %c0_i32_0 = arith.constant 0 : i32
    %c0_i32_1 = arith.constant 0 : i32
    %c0_i32_2 = arith.constant 0 : i32
    %c0_i32_3 = arith.constant 0 : i32
    return %c0_i32, %c0_i32_0, %c0_i32_1, %c0_i32_2 : i32, i32, i32, i32
  }
  func.func @transform_11(%arg0: i32, %arg1: memref<2xi32, #tpu.memory_space<smem>>) -> (i32, i32, i32) {
    %c0_i32 = arith.constant 0 : i32
    %c0_i32_0 = arith.constant 0 : i32
    %c0_i32_1 = arith.constant 0 : i32
    %c0_i32_2 = arith.constant 0 : i32
    return %c0_i32, %c0_i32_0, %c0_i32_1 : i32, i32, i32
  }
  func.func @transform_12(%arg0: i32, %arg1: memref<2xi32, #tpu.memory_space<smem>>) -> (i32, i32, i32) {
    %c0_i32 = arith.constant 0 : i32
    %c0_i32_0 = arith.constant 0 : i32
    %c0_i32_1 = arith.constant 0 : i32
    %c0_i32_2 = arith.constant 0 : i32
    return %c0_i32, %c0_i32_0, %c0_i32_1 : i32, i32, i32
  }
  func.func @transform_13(%arg0: i32, %arg1: memref<2xi32, #tpu.memory_space<smem>>) -> (i32, i32, i32) {
    %c0_i32 = arith.constant 0 : i32
    %c0_i32_0 = arith.constant 0 : i32
    %c0_i32_1 = arith.constant 0 : i32
    %c0_i32_2 = arith.constant 0 : i32
    return %c0_i32, %c0_i32_0, %c0_i32_1 : i32, i32, i32
  }
  func.func @transform_14(%arg0: i32, %arg1: memref<2xi32, #tpu.memory_space<smem>>) -> (i32, i32, i32) {
    %c0_i32 = arith.constant 0 : i32
    %c0_i32_0 = arith.constant 0 : i32
    %c0_i32_1 = arith.constant 0 : i32
    %c0_i32_2 = arith.constant 0 : i32
    return %c0_i32, %c0_i32_0, %c0_i32_1 : i32, i32, i32
  }
  func.func @transform_15(%arg0: i32, %arg1: memref<2xi32, #tpu.memory_space<smem>>) -> (i32, i32, i32) {
    %c0_i32 = arith.constant 0 : i32
    %c0_i32_0 = arith.constant 0 : i32
    %c0_i32_1 = arith.constant 0 : i32
    %c0_i32_2 = arith.constant 0 : i32
    return %c0_i32, %c0_i32_0, %c0_i32_1 : i32, i32, i32
  }
  func.func @transform_16(%arg0: i32, %arg1: memref<2xi32, #tpu.memory_space<smem>>) -> (i32, i32, i32) {
    %c0_i32 = arith.constant 0 : i32
    %c0_i32_0 = arith.constant 0 : i32
    %c0_i32_1 = arith.constant 0 : i32
    %c0_i32_2 = arith.constant 0 : i32
    return %c0_i32, %c0_i32_0, %c0_i32_1 : i32, i32, i32
  }
  func.func @transform_17(%arg0: i32, %arg1: memref<2xi32, #tpu.memory_space<smem>>) -> (i32, i32, i32) {
    %c0_i32 = arith.constant 0 : i32
    %c0_i32_0 = arith.constant 0 : i32
    %c0_i32_1 = arith.constant 0 : i32
    %c0_i32_2 = arith.constant 0 : i32
    return %c0_i32, %c0_i32_0, %c0_i32_1 : i32, i32, i32
  }
  func.func @transform_18(%arg0: i32, %arg1: memref<2xi32, #tpu.memory_space<smem>>) -> (i32, i32) {
    %c0_i32 = arith.constant 0 : i32
    %c0_i32_0 = arith.constant 0 : i32
    %c0_i32_1 = arith.constant 0 : i32
    return %c0_i32, %c0_i32_0 : i32, i32
  }
  func.func @transform_19(%arg0: i32, %arg1: memref<2xi32, #tpu.memory_space<smem>>) -> (i32, i32) {
    %c0_i32 = arith.constant 0 : i32
    %c0_i32_0 = arith.constant 0 : i32
    %c0_i32_1 = arith.constant 0 : i32
    return %c0_i32, %c0_i32_0 : i32, i32
  }
  func.func @transform_20(%arg0: i32, %arg1: memref<2xi32, #tpu.memory_space<smem>>) -> (i32, i32) {
    %c0_i32 = arith.constant 0 : i32
    %c0_i32_0 = arith.constant 0 : i32
    %c0_i32_1 = arith.constant 0 : i32
    return %c0_i32, %c0_i32_0 : i32, i32
  }
  func.func @transform_21(%arg0: i32, %arg1: memref<2xi32, #tpu.memory_space<smem>>) -> (i32, i32, i32) {
    %c0_i32 = arith.constant 0 : i32
    %c0_i32_0 = arith.constant 0 : i32
    %c0_i32_1 = arith.constant 0 : i32
    return %arg0, %c0_i32, %c0_i32_0 : i32, i32, i32
  }
}

</mosaic_0001>

<llo_original>
// kernel: tpu_custom_call.1
$region0: #{tpu_custom_call.1}
  #allocation0 [shape = 'u32[]', space=smem, size = 0x4, offset = 0x4, fixed_abs, tag = 'smem constant byte address 0x4 - core index']
  #allocation1 [shape = 'u32[72,128]{1,0:T(1,128)}', space=vmem, size = 0x9000, scoped, tag = 'internal scratch']
  #allocation2 [shape = 'f32[8,32]{1,0:T(8,128)}', space=vmem, size = 0x1000, scoped, tag = 'scratch operand']
  #allocation3 [shape = 's32[1]{0}', space=sflag, size = 0x4, scoped, tag = 'scoped memory for tpu_custom_call.1']
  #allocation4 [shape = 'u8[512]{0}', space=smem, size = 0x200, scoped, tag = 'prefetched SMEM operand 0']
  %s0 = inlined_call_operand.vmem [shape: s32[2], index: 0, kind: input, shape index: {}]
  %s1 = inlined_call_operand.vmem [shape: f32[2,8,32], index: 1, kind: input, shape index: {}]
  %s2 = inlined_call_operand.vmem [shape: f32[8,32], index: 2, kind: input, shape index: {}]
  %s3 = inlined_call_operand.vmem [shape: f32[2,1,32], index: 3, kind: input, shape index: {}]
  %s4 = inlined_call_operand.vmem [shape: f32[2,1,32], index: 4, kind: input, shape index: {}]
  %s5 = inlined_call_operand.vmem [shape: f32[2,4,32,8], index: 5, kind: input, shape index: {}]
  %s6 = inlined_call_operand.vmem [shape: f32[2,4,1,8], index: 6, kind: input, shape index: {}]
  %s7 = inlined_call_operand.vmem [shape: f32[2,4,32,8], index: 7, kind: input, shape index: {}]
  %s8 = inlined_call_operand.vmem [shape: f32[2,4,1,8], index: 8, kind: input, shape index: {}]
  %s9 = inlined_call_operand.vmem [shape: f32[2,4,32,8], index: 9, kind: input, shape index: {}]
  %s10 = inlined_call_operand.vmem [shape: f32[2,4,1,8], index: 10, kind: input, shape index: {}]
  %s11 = inlined_call_operand.vmem [shape: f32[2,4,8,32], index: 11, kind: input, shape index: {}]
  %s12 = inlined_call_operand.vmem [shape: f32[2,1,32], index: 12, kind: input, shape index: {}]
  %s13 = inlined_call_operand.vmem [shape: f32[2,1,32], index: 13, kind: input, shape index: {}]
  %s14 = inlined_call_operand.vmem [shape: f32[2,1,32], index: 14, kind: input, shape index: {}]
  %s15 = inlined_call_operand.vmem [shape: f32[2,32,128], index: 15, kind: input, shape index: {}]
  %s16 = inlined_call_operand.vmem [shape: f32[2,1,128], index: 16, kind: input, shape index: {}]
  %s17 = inlined_call_operand.vmem [shape: f32[2,128,32], index: 17, kind: input, shape index: {}]
  %s18 = inlined_call_operand.vmem [shape: f32[2,1,32], index: 18, kind: input, shape index: {}]
  %s19 = inlined_call_operand.vmem [shape: f32[1,32], index: 19, kind: input, shape index: {}]
  %s20 = inlined_call_operand.vmem [shape: f32[1,32], index: 20, kind: input, shape index: {}]
  %s21 = inlined_call_operand.vmem [shape: f32[32,32], index: 21, kind: input, shape index: {}]
  %s22 = inlined_call_operand.hbm [shape: f32[2,1,32], index: 22, kind: output, shape index: {}]
  %s23 = sld [smem:[#allocation0]]
  $region117: #{tpu_custom_call.1} parent=0
    _
  %s25 = ssub.s32 1, %s23
  %s26 = scalar_select 0, %s25, %s23
  %s28 = sshll.u32 %s0, 4
  %s29 = int_to_ptr.vmem [resolvable:$true] %s28
  %31 = dma.vmem_to_smem %s29, 16, [#allocation4], [#allocation3]
  %33 = dma.done [#allocation3], 16
  %34 = sfence
  $region1: #{tpu_custom_call.1} parent=0
    #allocation5 [shape = 'u8[1024]{0}', space=vmem, size = 0x400, scoped, tag = 'output window, operand 0']
    #allocation6 [shape = 's32[2]{0}', space=sflag, size = 0x8, scoped, tag = 'scoped memory for tpu_custom_call.1']
    %35 = vsyncpa [#allocation6], 0
    %s36 = scalar_lea.sflag [#allocation6], 1
    %37 = vsyncpa %s36, 0
    loop: start=0, step=1, limit=4
    $region2: #{tpu_custom_call.1} parent=1 // loop_pre_header
      _
    $region3: #{tpu_custom_call.1} parent=1 // loop_header
      %s39 = sphi 0, %s43
      %p40 = scmp.ge.s32.totalorder %s39, 4
      %s49 = sphi 0, %s51
      %s52 = sphi 0, %s49
      %s53 = sphi 0, %s52
      %s69 = sphi 0, %s53
      %s73 = sphi 0, %s73
      %s75 = sphi 0, %s73
      %s76 = sphi 0, %s75
      %s90 = sphi 0, %s76
      %s94 = sphi 0, %s94
      %s96 = sphi 0, %s94
      %s97 = sphi 0, %s96
      %s111 = sphi 0, %s97
      %s115 = sphi 0, %s115
      %s117 = sphi 0, %s115
      %s118 = sphi 0, %s117
      %s132 = sphi 0, %s118
      %s136 = sphi 0, %s136
      %s138 = sphi 0, %s136
      %s139 = sphi 0, %s138
      %s153 = sphi 0, %s139
      %s157 = sphi 0, %s157
      %s159 = sphi 0, %s157
      %s160 = sphi 0, %s159
      %s174 = sphi 0, %s160
      %s178 = sphi 0, %s178
      %s180 = sphi 0, %s178
      %s181 = sphi 0, %s180
      %s195 = sphi 0, %s181
      %s199 = sphi 0, %s199
      %s201 = sphi 0, %s199
      %s202 = sphi 0, %s201
      %s216 = sphi 0, %s202
      %s220 = sphi 0, %s220
      %s222 = sphi 0, %s220
      %s223 = sphi 0, %s222
      %s237 = sphi 0, %s223
      %s241 = sphi 0, %s241
      %s243 = sphi 0, %s241
      %s244 = sphi 0, %s243
      %s258 = sphi 0, %s244
      %s262 = sphi 0, %s262
      %s264 = sphi 0, %s262
      %s265 = sphi 0, %s264
      %s279 = sphi 0, %s265
      %s283 = sphi 0, %s283
      %s285 = sphi 0, %s283
      %s286 = sphi 0, %s285
      %s300 = sphi 0, %s286
      %s304 = sphi 0, %s304
      %s306 = sphi 0, %s304
      %s307 = sphi 0, %s306
      %s321 = sphi 0, %s307
      %s325 = sphi 0, %s325
      %s327 = sphi 0, %s325
      %s328 = sphi 0, %s327
      %s342 = sphi 0, %s328
      %s346 = sphi 0, %s346
      %s348 = sphi 0, %s346
      %s349 = sphi 0, %s348
      %s363 = sphi 0, %s349
      %s367 = sphi 0, %s367
      %s369 = sphi 0, %s367
      %s370 = sphi 0, %s369
      %s384 = sphi 0, %s370
      %s388 = sphi 0, %s388
      %s390 = sphi 0, %s388
      %s391 = sphi 0, %s390
      %s405 = sphi 0, %s391
      %s409 = sphi 0, %s409
      %s411 = sphi 0, %s409
      %s412 = sphi 0, %s411
      %s426 = sphi 0, %s412
      %s430 = sphi 0, %s430
      %s432 = sphi 0, %s430
      %s433 = sphi 0, %s432
      %s447 = sphi 0, %s433
      %s451 = sphi 0, %s451
      %s453 = sphi 0, %s451
      %s454 = sphi 0, %s453
      %s468 = sphi 0, %s454
      %s472 = sphi 0, %s472
      %s474 = sphi 0, %s472
      %s475 = sphi 0, %s474
      %s489 = sphi 0, %s475
      %s495 = sphi 0, %s497
      %s498 = sphi 0, %s495
      %s499 = sphi 0, %s498
      %s515 = sphi 0, %s499
    $region4: #{tpu_custom_call.1} parent=1 // loop_header_branch
      %42 = sbr.rel (%p40) target = $region8
    $region5: #{tpu_custom_call.1} parent=1 // loop_body
      %s44 = ssub.s32 %s39, 1
      %s45 = ssub.s32 %s39, 2
      %s46 = sadd.s32 %s39, 1
      %s47 = ssub.s32 %s39, %s46
      %p48 = scmp.eq.s32.totalorder %s47, 0
      %s50 = sadd.s32 %s49, 1
      %s51 = scalar_select %p48, %s49, %s50
      %p54 = pneg %p48
      %p55 = scmp.eq.s32.totalorder %s39, 1
      %p56 = por %p54, %p55
      %p57 = scmp.ne.s32.totalorder %s49, %s52
      %p58 = scmp.eq.s32.totalorder %s39, 0
      %p59 = por %p57, %p58
      %p60 = scmp.ne.s32.totalorder %s49, %s52
      %p61 = scmp.eq.s32.totalorder %s44, 1
      %p62 = por %p60, %p61
      %p63 = scmp.ne.s32.totalorder %s52, %s53
      %p64 = scmp.eq.s32.totalorder %s44, 0
      %p65 = por %p63, %p64
      %p66 = scmp.ne.s32.totalorder %s52, %s53
      %p67 = scmp.eq.s32.totalorder %s45, 1
      %p68 = por %p66, %p67
      %p70 = scmp.ne.s32.totalorder %s53, %s69
      %p71 = scmp.eq.s32.totalorder %s45, 0
      %p72 = por %p70, %p71
      %s74 = sadd.s32 %s73, 1
      %p77 = scmp.eq.s32.totalorder %s39, 1
      %p78 = scmp.ne.s32.totalorder %s73, %s75
      %p79 = scmp.eq.s32.totalorder %s39, 0
      %p80 = por %p78, %p79
      %p81 = scmp.ne.s32.totalorder %s73, %s75
      %p82 = scmp.eq.s32.totalorder %s44, 1
      %p83 = por %p81, %p82
      %p84 = scmp.ne.s32.totalorder %s75, %s76
      %p85 = scmp.eq.s32.totalorder %s44, 0
      %p86 = por %p84, %p85
      %p87 = scmp.ne.s32.totalorder %s75, %s76
      %p88 = scmp.eq.s32.totalorder %s45, 1
      %p89 = por %p87, %p88
      %p91 = scmp.ne.s32.totalorder %s76, %s90
      %p92 = scmp.eq.s32.totalorder %s45, 0
      %p93 = por %p91, %p92
      %s95 = sadd.s32 %s94, 1
      %p98 = scmp.eq.s32.totalorder %s39, 1
      %p99 = scmp.ne.s32.totalorder %s94, %s96
      %p100 = scmp.eq.s32.totalorder %s39, 0
      %p101 = por %p99, %p100
      %p102 = scmp.ne.s32.totalorder %s94, %s96
      %p103 = scmp.eq.s32.totalorder %s44, 1
      %p104 = por %p102, %p103
      %p105 = scmp.ne.s32.totalorder %s96, %s97
      %p106 = scmp.eq.s32.totalorder %s44, 0
      %p107 = por %p105, %p106
      %p108 = scmp.ne.s32.totalorder %s96, %s97
      %p109 = scmp.eq.s32.totalorder %s45, 1
      %p110 = por %p108, %p109
      %p112 = scmp.ne.s32.totalorder %s97, %s111
      %p113 = scmp.eq.s32.totalorder %s45, 0
      %p114 = por %p112, %p113
      %s116 = sadd.s32 %s115, 1
      %p119 = scmp.eq.s32.totalorder %s39, 1
      %p120 = scmp.ne.s32.totalorder %s115, %s117
      %p121 = scmp.eq.s32.totalorder %s39, 0
      %p122 = por %p120, %p121
      %p123 = scmp.ne.s32.totalorder %s115, %s117
      %p124 = scmp.eq.s32.totalorder %s44, 1
      %p125 = por %p123, %p124
      %p126 = scmp.ne.s32.totalorder %s117, %s118
      %p127 = scmp.eq.s32.totalorder %s44, 0
      %p128 = por %p126, %p127
      %p129 = scmp.ne.s32.totalorder %s117, %s118
      %p130 = scmp.eq.s32.totalorder %s45, 1
      %p131 = por %p129, %p130
      %p133 = scmp.ne.s32.totalorder %s118, %s132
      %p134 = scmp.eq.s32.totalorder %s45, 0
      %p135 = por %p133, %p134
      %s137 = sadd.s32 %s136, 1
      %p140 = scmp.eq.s32.totalorder %s39, 1
      %p141 = scmp.ne.s32.totalorder %s136, %s138
      %p142 = scmp.eq.s32.totalorder %s39, 0
      %p143 = por %p141, %p142
      %p144 = scmp.ne.s32.totalorder %s136, %s138
      %p145 = scmp.eq.s32.totalorder %s44, 1
      %p146 = por %p144, %p145
      %p147 = scmp.ne.s32.totalorder %s138, %s139
      %p148 = scmp.eq.s32.totalorder %s44, 0
      %p149 = por %p147, %p148
      %p150 = scmp.ne.s32.totalorder %s138, %s139
      %p151 = scmp.eq.s32.totalorder %s45, 1
      %p152 = por %p150, %p151
      %p154 = scmp.ne.s32.totalorder %s139, %s153
      %p155 = scmp.eq.s32.totalorder %s45, 0
      %p156 = por %p154, %p155
      %s158 = sadd.s32 %s157, 1
      %p161 = scmp.eq.s32.totalorder %s39, 1
      %p162 = scmp.ne.s32.totalorder %s157, %s159
      %p163 = scmp.eq.s32.totalorder %s39, 0
      %p164 = por %p162, %p163
      %p165 = scmp.ne.s32.totalorder %s157, %s159
      %p166 = scmp.eq.s32.totalorder %s44, 1
      %p167 = por %p165, %p166
      %p168 = scmp.ne.s32.totalorder %s159, %s160
      %p169 = scmp.eq.s32.totalorder %s44, 0
      %p170 = por %p168, %p169
      %p171 = scmp.ne.s32.totalorder %s159, %s160
      %p172 = scmp.eq.s32.totalorder %s45, 1
      %p173 = por %p171, %p172
      %p175 = scmp.ne.s32.totalorder %s160, %s174
      %p176 = scmp.eq.s32.totalorder %s45, 0
      %p177 = por %p175, %p176
      %s179 = sadd.s32 %s178, 1
      %p182 = scmp.eq.s32.totalorder %s39, 1
      %p183 = scmp.ne.s32.totalorder %s178, %s180
      %p184 = scmp.eq.s32.totalorder %s39, 0
      %p185 = por %p183, %p184
      %p186 = scmp.ne.s32.totalorder %s178, %s180
      %p187 = scmp.eq.s32.totalorder %s44, 1
      %p188 = por %p186, %p187
      %p189 = scmp.ne.s32.totalorder %s180, %s181
      %p190 = scmp.eq.s32.totalorder %s44, 0
      %p191 = por %p189, %p190
      %p192 = scmp.ne.s32.totalorder %s180, %s181
      %p193 = scmp.eq.s32.totalorder %s45, 1
      %p194 = por %p192, %p193
      %p196 = scmp.ne.s32.totalorder %s181, %s195
      %p197 = scmp.eq.s32.totalorder %s45, 0
      %p198 = por %p196, %p197
      %s200 = sadd.s32 %s199, 1
      %p203 = scmp.eq.s32.totalorder %s39, 1
      %p204 = scmp.ne.s32.totalorder %s199, %s201
      %p205 = scmp.eq.s32.totalorder %s39, 0
      %p206 = por %p204, %p205
      %p207 = scmp.ne.s32.totalorder %s199, %s201
      %p208 = scmp.eq.s32.totalorder %s44, 1
      %p209 = por %p207, %p208
      %p210 = scmp.ne.s32.totalorder %s201, %s202
      %p211 = scmp.eq.s32.totalorder %s44, 0
      %p212 = por %p210, %p211
      %p213 = scmp.ne.s32.totalorder %s201, %s202
      %p214 = scmp.eq.s32.totalorder %s45, 1
      %p215 = por %p213, %p214
      %p217 = scmp.ne.s32.totalorder %s202, %s216
      %p218 = scmp.eq.s32.totalorder %s45, 0
      %p219 = por %p217, %p218
      %s221 = sadd.s32 %s220, 1
      %p224 = scmp.eq.s32.totalorder %s39, 1
      %p225 = scmp.ne.s32.totalorder %s220, %s222
      %p226 = scmp.eq.s32.totalorder %s39, 0
      %p227 = por %p225, %p226
      %p228 = scmp.ne.s32.totalorder %s220, %s222
      %p229 = scmp.eq.s32.totalorder %s44, 1
      %p230 = por %p228, %p229
      %p231 = scmp.ne.s32.totalorder %s222, %s223
      %p232 = scmp.eq.s32.totalorder %s44, 0
      %p233 = por %p231, %p232
      %p234 = scmp.ne.s32.totalorder %s222, %s223
      %p235 = scmp.eq.s32.totalorder %s45, 1
      %p236 = por %p234, %p235
      %p238 = scmp.ne.s32.totalorder %s223, %s237
      %p239 = scmp.eq.s32.totalorder %s45, 0
      %p240 = por %p238, %p239
      %s242 = sadd.s32 %s241, 1
      %p245 = scmp.eq.s32.totalorder %s39, 1
      %p246 = scmp.ne.s32.totalorder %s241, %s243
      %p247 = scmp.eq.s32.totalorder %s39, 0
      %p248 = por %p246, %p247
      %p249 = scmp.ne.s32.totalorder %s241, %s243
      %p250 = scmp.eq.s32.totalorder %s44, 1
      %p251 = por %p249, %p250
      %p252 = scmp.ne.s32.totalorder %s243, %s244
      %p253 = scmp.eq.s32.totalorder %s44, 0
      %p254 = por %p252, %p253
      %p255 = scmp.ne.s32.totalorder %s243, %s244
      %p256 = scmp.eq.s32.totalorder %s45, 1
      %p257 = por %p255, %p256
      %p259 = scmp.ne.s32.totalorder %s244, %s258
      %p260 = scmp.eq.s32.totalorder %s45, 0
      %p261 = por %p259, %p260
      %s263 = sadd.s32 %s262, 1
      %p266 = scmp.eq.s32.totalorder %s39, 1
      %p267 = scmp.ne.s32.totalorder %s262, %s264
      %p268 = scmp.eq.s32.totalorder %s39, 0
      %p269 = por %p267, %p268
      %p270 = scmp.ne.s32.totalorder %s262, %s264
      %p271 = scmp.eq.s32.totalorder %s44, 1
      %p272 = por %p270, %p271
      %p273 = scmp.ne.s32.totalorder %s264, %s265
      %p274 = scmp.eq.s32.totalorder %s44, 0
      %p275 = por %p273, %p274
      %p276 = scmp.ne.s32.totalorder %s264, %s265
      %p277 = scmp.eq.s32.totalorder %s45, 1
      %p278 = por %p276, %p277
      %p280 = scmp.ne.s32.totalorder %s265, %s279
      %p281 = scmp.eq.s32.totalorder %s45, 0
      %p282 = por %p280, %p281
      %s284 = sadd.s32 %s283, 1
      %p287 = scmp.eq.s32.totalorder %s39, 1
      %p288 = scmp.ne.s32.totalorder %s283, %s285
      %p289 = scmp.eq.s32.totalorder %s39, 0
      %p290 = por %p288, %p289
      %p291 = scmp.ne.s32.totalorder %s283, %s285
      %p292 = scmp.eq.s32.totalorder %s44, 1
      %p293 = por %p291, %p292
      %p294 = scmp.ne.s32.totalorder %s285, %s286
      %p295 = scmp.eq.s32.totalorder %s44, 0
      %p296 = por %p294, %p295
      %p297 = scmp.ne.s32.totalorder %s285, %s286
      %p298 = scmp.eq.s32.totalorder %s45, 1
      %p299 = por %p297, %p298
      %p301 = scmp.ne.s32.totalorder %s286, %s300
      %p302 = scmp.eq.s32.totalorder %s45, 0
      %p303 = por %p301, %p302
      %s305 = sadd.s32 %s304, 1
      %p308 = scmp.eq.s32.totalorder %s39, 1
      %p309 = scmp.ne.s32.totalorder %s304, %s306
      %p310 = scmp.eq.s32.totalorder %s39, 0
      %p311 = por %p309, %p310
      %p312 = scmp.ne.s32.totalorder %s304, %s306
      %p313 = scmp.eq.s32.totalorder %s44, 1
      %p314 = por %p312, %p313
      %p315 = scmp.ne.s32.totalorder %s306, %s307
      %p316 = scmp.eq.s32.totalorder %s44, 0
      %p317 = por %p315, %p316
      %p318 = scmp.ne.s32.totalorder %s306, %s307
      %p319 = scmp.eq.s32.totalorder %s45, 1
      %p320 = por %p318, %p319
      %p322 = scmp.ne.s32.totalorder %s307, %s321
      %p323 = scmp.eq.s32.totalorder %s45, 0
      %p324 = por %p322, %p323
      %s326 = sadd.s32 %s325, 1
      %p329 = scmp.eq.s32.totalorder %s39, 1
      %p330 = scmp.ne.s32.totalorder %s325, %s327
      %p331 = scmp.eq.s32.totalorder %s39, 0
      %p332 = por %p330, %p331
      %p333 = scmp.ne.s32.totalorder %s325, %s327
      %p334 = scmp.eq.s32.totalorder %s44, 1
      %p335 = por %p333, %p334
      %p336 = scmp.ne.s32.totalorder %s327, %s328
      %p337 = scmp.eq.s32.totalorder %s44, 0
      %p338 = por %p336, %p337
      %p339 = scmp.ne.s32.totalorder %s327, %s328
      %p340 = scmp.eq.s32.totalorder %s45, 1
      %p341 = por %p339, %p340
      %p343 = scmp.ne.s32.totalorder %s328, %s342
      %p344 = scmp.eq.s32.totalorder %s45, 0
      %p345 = por %p343, %p344
      %s347 = sadd.s32 %s346, 1
      %p350 = scmp.eq.s32.totalorder %s39, 1
      %p351 = scmp.ne.s32.totalorder %s346, %s348
      %p352 = scmp.eq.s32.totalorder %s39, 0
      %p353 = por %p351, %p352
      %p354 = scmp.ne.s32.totalorder %s346, %s348
      %p355 = scmp.eq.s32.totalorder %s44, 1
      %p356 = por %p354, %p355
      %p357 = scmp.ne.s32.totalorder %s348, %s349
      %p358 = scmp.eq.s32.totalorder %s44, 0
      %p359 = por %p357, %p358
      %p360 = scmp.ne.s32.totalorder %s348, %s349
      %p361 = scmp.eq.s32.totalorder %s45, 1
      %p362 = por %p360, %p361
      %p364 = scmp.ne.s32.totalorder %s349, %s363
      %p365 = scmp.eq.s32.totalorder %s45, 0
      %p366 = por %p364, %p365
      %s368 = sadd.s32 %s367, 1
      %p371 = scmp.eq.s32.totalorder %s39, 1
      %p372 = scmp.ne.s32.totalorder %s367, %s369
      %p373 = scmp.eq.s32.totalorder %s39, 0
      %p374 = por %p372, %p373
      %p375 = scmp.ne.s32.totalorder %s367, %s369
      %p376 = scmp.eq.s32.totalorder %s44, 1
      %p377 = por %p375, %p376
      %p378 = scmp.ne.s32.totalorder %s369, %s370
      %p379 = scmp.eq.s32.totalorder %s44, 0
      %p380 = por %p378, %p379
      %p381 = scmp.ne.s32.totalorder %s369, %s370
      %p382 = scmp.eq.s32.totalorder %s45, 1
      %p383 = por %p381, %p382
      %p385 = scmp.ne.s32.totalorder %s370, %s384
      %p386 = scmp.eq.s32.totalorder %s45, 0
      %p387 = por %p385, %p386
      %s389 = sadd.s32 %s388, 1
      %p392 = scmp.eq.s32.totalorder %s39, 1
      %p393 = scmp.ne.s32.totalorder %s388, %s390
      %p394 = scmp.eq.s32.totalorder %s39, 0
      %p395 = por %p393, %p394
      %p396 = scmp.ne.s32.totalorder %s388, %s390
      %p397 = scmp.eq.s32.totalorder %s44, 1
      %p398 = por %p396, %p397
      %p399 = scmp.ne.s32.totalorder %s390, %s391
      %p400 = scmp.eq.s32.totalorder %s44, 0
      %p401 = por %p399, %p400
      %p402 = scmp.ne.s32.totalorder %s390, %s391
      %p403 = scmp.eq.s32.totalorder %s45, 1
      %p404 = por %p402, %p403
      %p406 = scmp.ne.s32.totalorder %s391, %s405
      %p407 = scmp.eq.s32.totalorder %s45, 0
      %p408 = por %p406, %p407
      %s410 = sadd.s32 %s409, 1
      %p413 = scmp.eq.s32.totalorder %s39, 1
      %p414 = scmp.ne.s32.totalorder %s409, %s411
      %p415 = scmp.eq.s32.totalorder %s39, 0
      %p416 = por %p414, %p415
      %p417 = scmp.ne.s32.totalorder %s409, %s411
      %p418 = scmp.eq.s32.totalorder %s44, 1
      %p419 = por %p417, %p418
      %p420 = scmp.ne.s32.totalorder %s411, %s412
      %p421 = scmp.eq.s32.totalorder %s44, 0
      %p422 = por %p420, %p421
      %p423 = scmp.ne.s32.totalorder %s411, %s412
      %p424 = scmp.eq.s32.totalorder %s45, 1
      %p425 = por %p423, %p424
      %p427 = scmp.ne.s32.totalorder %s412, %s426
      %p428 = scmp.eq.s32.totalorder %s45, 0
      %p429 = por %p427, %p428
      %s431 = sadd.s32 %s430, 1
      %p434 = scmp.eq.s32.totalorder %s39, 1
      %p435 = scmp.ne.s32.totalorder %s430, %s432
      %p436 = scmp.eq.s32.totalorder %s39, 0
      %p437 = por %p435, %p436
      %p438 = scmp.ne.s32.totalorder %s430, %s432
      %p439 = scmp.eq.s32.totalorder %s44, 1
      %p440 = por %p438, %p439
      %p441 = scmp.ne.s32.totalorder %s432, %s433
      %p442 = scmp.eq.s32.totalorder %s44, 0
      %p443 = por %p441, %p442
      %p444 = scmp.ne.s32.totalorder %s432, %s433
      %p445 = scmp.eq.s32.totalorder %s45, 1
      %p446 = por %p444, %p445
      %p448 = scmp.ne.s32.totalorder %s433, %s447
      %p449 = scmp.eq.s32.totalorder %s45, 0
      %p450 = por %p448, %p449
      %s452 = sadd.s32 %s451, 1
      %p455 = scmp.eq.s32.totalorder %s39, 1
      %p456 = scmp.ne.s32.totalorder %s451, %s453
      %p457 = scmp.eq.s32.totalorder %s39, 0
      %p458 = por %p456, %p457
      %p459 = scmp.ne.s32.totalorder %s451, %s453
      %p460 = scmp.eq.s32.totalorder %s44, 1
      %p461 = por %p459, %p460
      %p462 = scmp.ne.s32.totalorder %s453, %s454
      %p463 = scmp.eq.s32.totalorder %s44, 0
      %p464 = por %p462, %p463
      %p465 = scmp.ne.s32.totalorder %s453, %s454
      %p466 = scmp.eq.s32.totalorder %s45, 1
      %p467 = por %p465, %p466
      %p469 = scmp.ne.s32.totalorder %s454, %s468
      %p470 = scmp.eq.s32.totalorder %s45, 0
      %p471 = por %p469, %p470
      %s473 = sadd.s32 %s472, 1
      %p476 = scmp.eq.s32.totalorder %s39, 1
      %p477 = scmp.ne.s32.totalorder %s472, %s474
      %p478 = scmp.eq.s32.totalorder %s39, 0
      %p479 = por %p477, %p478
      %p480 = scmp.ne.s32.totalorder %s472, %s474
      %p481 = scmp.eq.s32.totalorder %s44, 1
      %p482 = por %p480, %p481
      %p483 = scmp.ne.s32.totalorder %s474, %s475
      %p484 = scmp.eq.s32.totalorder %s44, 0
      %p485 = por %p483, %p484
      %p486 = scmp.ne.s32.totalorder %s474, %s475
      %p487 = scmp.eq.s32.totalorder %s45, 1
      %p488 = por %p486, %p487
      %p490 = scmp.ne.s32.totalorder %s475, %s489
      %p491 = scmp.eq.s32.totalorder %s45, 0
      %p492 = por %p490, %p491
      %s493 = ssub.s32 %s39, %s46
      %p494 = scmp.eq.s32.totalorder %s493, 0
      %s496 = sadd.s32 %s495, 1
      %s497 = scalar_select %p494, %s495, %s496
      %p500 = pneg %p494
      %p501 = scmp.eq.s32.totalorder %s39, 1
      %p502 = por %p500, %p501
      %p503 = scmp.ne.s32.totalorder %s495, %s498
      %p504 = scmp.eq.s32.totalorder %s39, 0
      %p505 = por %p503, %p504
      %p506 = scmp.ne.s32.totalorder %s495, %s498
      %p507 = scmp.eq.s32.totalorder %s44, 1
      %p508 = por %p506, %p507
      %p509 = scmp.ne.s32.totalorder %s498, %s499
      %p510 = scmp.eq.s32.totalorder %s44, 0
      %p511 = por %p509, %p510
      %p512 = scmp.ne.s32.totalorder %s498, %s499
      %p513 = scmp.eq.s32.totalorder %s45, 1
      %p514 = por %p512, %p513
      %p516 = scmp.ne.s32.totalorder %s499, %s515
      %p517 = scmp.eq.s32.totalorder %s45, 0
      %p518 = por %p516, %p517
      %p519 = scmp.le.s32.totalorder 1, %s39
      %p520 = scmp.lt.s32.totalorder %s39, 3
      %p521 = pnand %p519, %p520
      %p522 = pneg %p521
      // Predicated region
      $region9: #{tpu_custom_call.1} parent=5 // pred_check
        _
      $region10: #{tpu_custom_call.1} parent=5 // pred_check_branch
        %524 = sbr.rel (%p521) target = $region12
      $region11: #{tpu_custom_call.1} parent=5 // pred_region
        %s525 = ssub.s32 %s39, 1
        // Predicated region
        $region13: #{tpu_custom_call.1} parent=11 // pred_check
          %p526 = pneg %p86
        $region14: #{tpu_custom_call.1} parent=11 // pred_check_branch
          %528 = sbr.rel (%p526) target = $region16
        $region15: #{tpu_custom_call.1} parent=11 // pred_region
          _
        $region16: #{tpu_custom_call.1} parent=11 // pred_fallthru
          _
        // Predicated region
        $region17: #{tpu_custom_call.1} parent=11 // pred_check
          %p529 = pneg %p107
        $region18: #{tpu_custom_call.1} parent=11 // pred_check_branch
          %531 = sbr.rel (%p529) target = $region20
        $region19: #{tpu_custom_call.1} parent=11 // pred_region
          _
        $region20: #{tpu_custom_call.1} parent=11 // pred_fallthru
          _
        // Predicated region
        $region21: #{tpu_custom_call.1} parent=11 // pred_check
          %p532 = pneg %p128
        $region22: #{tpu_custom_call.1} parent=11 // pred_check_branch
          %534 = sbr.rel (%p532) target = $region24
        $region23: #{tpu_custom_call.1} parent=11 // pred_region
          _
        $region24: #{tpu_custom_call.1} parent=11 // pred_fallthru
          _
        // Predicated region
        $region25: #{tpu_custom_call.1} parent=11 // pred_check
          %p535 = pneg %p149
        $region26: #{tpu_custom_call.1} parent=11 // pred_check_branch
          %537 = sbr.rel (%p535) target = $region28
        $region27: #{tpu_custom_call.1} parent=11 // pred_region
          _
        $region28: #{tpu_custom_call.1} parent=11 // pred_fallthru
          _
        // Predicated region
        $region29: #{tpu_custom_call.1} parent=11 // pred_check
          %p538 = pneg %p170
        $region30: #{tpu_custom_call.1} parent=11 // pred_check_branch
          %540 = sbr.rel (%p538) target = $region32
        $region31: #{tpu_custom_call.1} parent=11 // pred_region
          _
        $region32: #{tpu_custom_call.1} parent=11 // pred_fallthru
          _
        // Predicated region
        $region33: #{tpu_custom_call.1} parent=11 // pred_check
          %p541 = pneg %p191
        $region34: #{tpu_custom_call.1} parent=11 // pred_check_branch
          %543 = sbr.rel (%p541) target = $region36
        $region35: #{tpu_custom_call.1} parent=11 // pred_region
          _
        $region36: #{tpu_custom_call.1} parent=11 // pred_fallthru
          _
        // Predicated region
        $region37: #{tpu_custom_call.1} parent=11 // pred_check
          %p544 = pneg %p212
        $region38: #{tpu_custom_call.1} parent=11 // pred_check_branch
          %546 = sbr.rel (%p544) target = $region40
        $region39: #{tpu_custom_call.1} parent=11 // pred_region
          _
        $region40: #{tpu_custom_call.1} parent=11 // pred_fallthru
          _
        // Predicated region
        $region41: #{tpu_custom_call.1} parent=11 // pred_check
          %p547 = pneg %p233
        $region42: #{tpu_custom_call.1} parent=11 // pred_check_branch
          %549 = sbr.rel (%p547) target = $region44
        $region43: #{tpu_custom_call.1} parent=11 // pred_region
          _
        $region44: #{tpu_custom_call.1} parent=11 // pred_fallthru
          _
        // Predicated region
        $region45: #{tpu_custom_call.1} parent=11 // pred_check
          %p550 = pneg %p254
        $region46: #{tpu_custom_call.1} parent=11 // pred_check_branch
          %552 = sbr.rel (%p550) target = $region48
        $region47: #{tpu_custom_call.1} parent=11 // pred_region
          _
        $region48: #{tpu_custom_call.1} parent=11 // pred_fallthru
          _
        // Predicated region
        $region49: #{tpu_custom_call.1} parent=11 // pred_check
          %p553 = pneg %p275
        $region50: #{tpu_custom_call.1} parent=11 // pred_check_branch
          %555 = sbr.rel (%p553) target = $region52
        $region51: #{tpu_custom_call.1} parent=11 // pred_region
          _
        $region52: #{tpu_custom_call.1} parent=11 // pred_fallthru
          _
        // Predicated region
        $region53: #{tpu_custom_call.1} parent=11 // pred_check
          %p556 = pneg %p296
        $region54: #{tpu_custom_call.1} parent=11 // pred_check_branch
          %558 = sbr.rel (%p556) target = $region56
        $region55: #{tpu_custom_call.1} parent=11 // pred_region
          _
        $region56: #{tpu_custom_call.1} parent=11 // pred_fallthru
          _
        // Predicated region
        $region57: #{tpu_custom_call.1} parent=11 // pred_check
          %p559 = pneg %p317
        $region58: #{tpu_custom_call.1} parent=11 // pred_check_branch
          %561 = sbr.rel (%p559) target = $region60
        $region59: #{tpu_custom_call.1} parent=11 // pred_region
          _
        $region60: #{tpu_custom_call.1} parent=11 // pred_fallthru
          _
        // Predicated region
        $region61: #{tpu_custom_call.1} parent=11 // pred_check
          %p562 = pneg %p338
        $region62: #{tpu_custom_call.1} parent=11 // pred_check_branch
          %564 = sbr.rel (%p562) target = $region64
        $region63: #{tpu_custom_call.1} parent=11 // pred_region
          _
        $region64: #{tpu_custom_call.1} parent=11 // pred_fallthru
          _
        // Predicated region
        $region65: #{tpu_custom_call.1} parent=11 // pred_check
          %p565 = pneg %p359
        $region66: #{tpu_custom_call.1} parent=11 // pred_check_branch
          %567 = sbr.rel (%p565) target = $region68
        $region67: #{tpu_custom_call.1} parent=11 // pred_region
          _
        $region68: #{tpu_custom_call.1} parent=11 // pred_fallthru
          _
        // Predicated region
        $region69: #{tpu_custom_call.1} parent=11 // pred_check
          %p568 = pneg %p380
        $region70: #{tpu_custom_call.1} parent=11 // pred_check_branch
          %570 = sbr.rel (%p568) target = $region72
        $region71: #{tpu_custom_call.1} parent=11 // pred_region
          _
        $region72: #{tpu_custom_call.1} parent=11 // pred_fallthru
          _
        // Predicated region
        $region73: #{tpu_custom_call.1} parent=11 // pred_check
          %p571 = pneg %p401
        $region74: #{tpu_custom_call.1} parent=11 // pred_check_branch
          %573 = sbr.rel (%p571) target = $region76
        $region75: #{tpu_custom_call.1} parent=11 // pred_region
          _
        $region76: #{tpu_custom_call.1} parent=11 // pred_fallthru
          _
        // Predicated region
        $region77: #{tpu_custom_call.1} parent=11 // pred_check
          %p574 = pneg %p422
        $region78: #{tpu_custom_call.1} parent=11 // pred_check_branch
          %576 = sbr.rel (%p574) target = $region80
        $region79: #{tpu_custom_call.1} parent=11 // pred_region
          _
        $region80: #{tpu_custom_call.1} parent=11 // pred_fallthru
          _
        // Predicated region
        $region81: #{tpu_custom_call.1} parent=11 // pred_check
          %p577 = pneg %p443
        $region82: #{tpu_custom_call.1} parent=11 // pred_check_branch
          %579 = sbr.rel (%p577) target = $region84
        $region83: #{tpu_custom_call.1} parent=11 // pred_region
          _
        $region84: #{tpu_custom_call.1} parent=11 // pred_fallthru
          _
        // Predicated region
        $region85: #{tpu_custom_call.1} parent=11 // pred_check
          %p580 = pneg %p464
        $region86: #{tpu_custom_call.1} parent=11 // pred_check_branch
          %582 = sbr.rel (%p580) target = $region88
        $region87: #{tpu_custom_call.1} parent=11 // pred_region
          _
        $region88: #{tpu_custom_call.1} parent=11 // pred_fallthru
          _
        // Predicated region
        $region89: #{tpu_custom_call.1} parent=11 // pred_check
          %p583 = pneg %p485
        $region90: #{tpu_custom_call.1} parent=11 // pred_check_branch
          %585 = sbr.rel (%p583) target = $region92
        $region91: #{tpu_custom_call.1} parent=11 // pred_region
          _
        $region92: #{tpu_custom_call.1} parent=11 // pred_fallthru
          _
      $region12: #{tpu_custom_call.1} parent=5 // pred_fallthru
        _
      %p586 = scmp.lt.s32.totalorder %s39, 2
      // Predicated region
      $region93: #{tpu_custom_call.1} parent=5 // pred_check
        %p587 = pneg %p586
      $region94: #{tpu_custom_call.1} parent=5 // pred_check_branch
        %589 = sbr.rel (%p587) target = $region96
      $region95: #{tpu_custom_call.1} parent=5 // pred_region
        // Predicated region
        $region97: #{tpu_custom_call.1} parent=95 // pred_check
          %p590 = pneg %p59
        $region98: #{tpu_custom_call.1} parent=95 // pred_check_branch
          %592 = sbr.rel (%p590) target = $region100
        $region99: #{tpu_custom_call.1} parent=95 // pred_region
          %p593 = scmp.lt.s32.totalorder %s39, 1
          %s594 = scalar_select %p593, %s39, 1
          %s595 = smul.addr %s594, 8
          %s596 = scalar_lea.vmem %s1, %s595
        $region100: #{tpu_custom_call.1} parent=95 // pred_fallthru
          _
      $region96: #{tpu_custom_call.1} parent=5 // pred_fallthru
        _
      %p597 = scmp.le.s32.totalorder 1, %s39
      %p598 = scmp.lt.s32.totalorder %s39, 3
      %p599 = pnand %p597, %p598
      %p600 = pneg %p599
      // Predicated region
      $region101: #{tpu_custom_call.1} parent=5 // pred_check
        _
      $region102: #{tpu_custom_call.1} parent=5 // pred_check_branch
        %602 = sbr.rel (%p599) target = $region104
      $region103: #{tpu_custom_call.1} parent=5 // pred_region
        %s603 = ssub.s32 %s39, 1
        %p604 = scmp.lt.s32.totalorder %s44, 1
        %s605 = scalar_select %p604, %s44, 1
        %s606 = smul.addr %s605, 8
        %s607 = scalar_lea.vmem %s1, %s606
        %p608 = pneg %p65
        %p609 = pneg %p62
        %p610 = pneg %p86
        %p611 = pneg %p83
        %p612 = pneg %p107
        %p613 = pneg %p104
        %p614 = pneg %p128
        %p615 = pneg %p125
        %p616 = pneg %p149
        %p617 = pneg %p146
        %p618 = pneg %p170
        %p619 = pneg %p167
        %p620 = pneg %p191
        %p621 = pneg %p188
        %p622 = pneg %p212
        %p623 = pneg %p209
        %p624 = pneg %p233
        %p625 = pneg %p230
        %p626 = pneg %p254
        %p627 = pneg %p251
        %p628 = pneg %p275
        %p629 = pneg %p272
        %p630 = pneg %p296
        %p631 = pneg %p293
        %p632 = pneg %p317
        %p633 = pneg %p314
        %p634 = pneg %p338
        %p635 = pneg %p335
        %p636 = pneg %p359
        %p637 = pneg %p356
        %p638 = pneg %p380
        %p639 = pneg %p377
        %p640 = pneg %p401
        %p641 = pneg %p398
        %p642 = pneg %p422
        %p643 = pneg %p419
        %p644 = pneg %p443
        %p645 = pneg %p440
        %p646 = pneg %p464
        %p647 = pneg %p461
        %p648 = pneg %p485
        %p649 = pneg %p482
        %p650 = pneg %p511
        %p651 = pneg %p508
        %s652 = sand.u32 %s498, 1
        %s653 = scalar_lea.sflag [#allocation6], %s652
        %s654 = sand.u32 %s498, 1
        %s655 = scalar_lea.vmem [#allocation5], %s654
        %p656 = scmp.lt.s32.totalorder %s44, 1
        %s657 = scalar_select %p656, %s44, 1
        %s658 = smul.addr %s657, 8
        %s659 = scalar_lea.vmem %s1, %s658
        %v660 = vld [vmem:[%s659] sm:$0xff]
        %v661 = vld [vmem:[%s2] sm:$0xff]
        %v662 = vadd.f32 %v660, %v661
        %v663 = vlaneseq
        %v664 = vshrl.u32 %v663, 7
        %v665 = vlaneseq
        %v666 = vand.u32 %v665, 127
        %vm667 = vcmp.le.s32.totalorder %v666, %v664
        %v668 = vld [vmem:[%s3] sm:$0x1]
        %v669 = vld [vmem:[%s4] sm:$0x1]
        %vm670 = vcmask 261120
        %v671 = vsel %vm670, %v662, 0.0
        %672 = vadd.xlane.f32.xlu0 %v671
        %v673 = vpop.xlane.xlu0 %672
        %v674 = vrcp.pop 32.0
        %v675 = vmul.f32 32.0, %v674
        %v676 = vsub.f32 1.0, %v675
        %v677 = vmul.f32 %v674, %v676
        %v678 = vadd.f32 %v674, %v677
        %vm679 = vweird.f32 %v674
        %v680 = vsel %vm679, %v674, %v678
        %v681 = vmul.f32 %v673, %v680
        %v682 = vsub.f32 %v662, %v681
        %v683 = vmul.f32 %v682, %v682
        %v684 = vsel %vm670, %v683, 0.0
        %685 = vadd.xlane.f32.xlu0 %v684
        %v686 = vpop.xlane.xlu0 %685
        %v687 = vmul.f32 %v686, %v680
        %v688 = vadd.f32 %v687, 1e-05
        %v689 = vrsqrt.pop %v688
        %v690 = vmul.f32 %v689, %v688
        %v691 = vmul.f32 %v690, %v689
        %v692 = vmul.f32 0.5, %v691
        %v693 = vsub.f32 1.5, %v692
        %v694 = vmul.f32 %v689, %v693
        %vm695 = vweird.f32 %v688
        %vm696 = vweird.f32 %v689
        %vm697 = vmor %vm695, %vm696
        %v698 = vsel %vm697, %v689, %v694
        %v699 = vmul.f32 %v682, %v698
        %v701 = vperm.slane %v668, 0
        %v703 = vmul.f32 %v699, %v701
        %v705 = vperm.slane %v669, 0
        %v707 = vadd.f32 %v703, %v705
        %v708 = vld [vmem:[%s5] sm:$0xff]
        %v709 = vld [vmem:[%s5 + $0x8] sm:$0xff]
        %v710 = vld [vmem:[%s5 + $0x10] sm:$0xff]
        %v711 = vld [vmem:[%s5 + $0x18] sm:$0xff]
        %v712 = vld [vmem:[%s5 + $0x20] sm:$0xff]
        %v713 = vld [vmem:[%s5 + $0x28] sm:$0xff]
        %v714 = vld [vmem:[%s5 + $0x30] sm:$0xff]
        %v715 = vld [vmem:[%s5 + $0x38] sm:$0xff]
        %v716 = vld [vmem:[%s5 + $0x40] sm:$0xff]
        %v717 = vld [vmem:[%s5 + $0x48] sm:$0xff]
        %v718 = vld [vmem:[%s5 + $0x50] sm:$0xff]
        %v719 = vld [vmem:[%s5 + $0x58] sm:$0xff]
        %v720 = vld [vmem:[%s5 + $0x60] sm:$0xff]
        %v721 = vld [vmem:[%s5 + $0x68] sm:$0xff]
        %v722 = vld [vmem:[%s5 + $0x70] sm:$0xff]
        %v723 = vld [vmem:[%s5 + $0x78] sm:$0xff]
        %v724 = vld [vmem:[%s6] sm:$0x1]
        %v725 = vld [vmem:[%s6 + $0x1] sm:$0x1]
        %v726 = vld [vmem:[%s6 + $0x2] sm:$0x1]
        %v727 = vld [vmem:[%s6 + $0x3] sm:$0x1]
        %v732 = vperm.slane %v724, 0
        %v733 = vperm.slane %v725, 0
        %v734 = vperm.slane %v726, 0
        %v735 = vperm.slane %v727, 0
        %v741 = vsel %vm670, %v707, 0
        %743 = vmatpush.msra.mxu0 0.0
        %744 = vmatpush.msra.mxu0 0.0
        %745 = vmatpush.msra.mxu0 0.0
        %746 = vmatpush.msra.mxu0 0.0
        %747 = vmatpush.msra.mxu0 0.0
        %748 = vmatpush.msra.mxu0 0.0
        %749 = vmatpush.msra.mxu0 0.0
        %750 = vmatpush.msra.mxu0 0.0
        %751 = vmatpush.msra.mxu0 0.0
        %752 = vmatpush.msra.mxu0 0.0
        %753 = vmatpush.msra.mxu0 0.0
        %754 = vmatpush.msra.mxu0 0.0
        %755 = vmatpush.msra.mxu0 %v711
        %756 = vmatpush.msra.mxu0 %v710
        %757 = vmatpush.msra.mxu0 %v709
        %758 = vmatpush.msra.mxu0 %v708
        %759 = vmatmul.f32.gmra.mxu0 %v741
        %v760 = vpop.f32.mrf.mxu0
        %v761 = vadd.f32 %v732, %v760
        %762 = vdwg.mxu0
        %763 = vmatpush.msra.mxu0 0.0
        %764 = vmatpush.msra.mxu0 0.0
        %765 = vmatpush.msra.mxu0 0.0
        %766 = vmatpush.msra.mxu0 0.0
        %767 = vmatpush.msra.mxu0 0.0
        %768 = vmatpush.msra.mxu0 0.0
        %769 = vmatpush.msra.mxu0 0.0
        %770 = vmatpush.msra.mxu0 0.0
        %771 = vmatpush.msra.mxu0 0.0
        %772 = vmatpush.msra.mxu0 0.0
        %773 = vmatpush.msra.mxu0 0.0
        %774 = vmatpush.msra.mxu0 0.0
        %775 = vmatpush.msra.mxu0 %v715
        %776 = vmatpush.msra.mxu0 %v714
        %777 = vmatpush.msra.mxu0 %v713
        %778 = vmatpush.msra.mxu0 %v712
        %779 = vmatmul.f32.gmra.mxu0 %v741
        %v780 = vpop.f32.mrf.mxu0
        %v781 = vadd.f32 %v733, %v780
        %782 = vdwg.mxu0
        %783 = vmatpush.msra.mxu0 0.0
        %784 = vmatpush.msra.mxu0 0.0
        %785 = vmatpush.msra.mxu0 0.0
        %786 = vmatpush.msra.mxu0 0.0
        %787 = vmatpush.msra.mxu0 0.0
        %788 = vmatpush.msra.mxu0 0.0
        %789 = vmatpush.msra.mxu0 0.0
        %790 = vmatpush.msra.mxu0 0.0
        %791 = vmatpush.msra.mxu0 0.0
        %792 = vmatpush.msra.mxu0 0.0
        %793 = vmatpush.msra.mxu0 0.0
        %794 = vmatpush.msra.mxu0 0.0
        %795 = vmatpush.msra.mxu0 %v719
        %796 = vmatpush.msra.mxu0 %v718
        %797 = vmatpush.msra.mxu0 %v717
        %798 = vmatpush.msra.mxu0 %v716
        %799 = vmatmul.f32.gmra.mxu0 %v741
        %v800 = vpop.f32.mrf.mxu0
        %v801 = vadd.f32 %v734, %v800
        %802 = vdwg.mxu0
        %803 = vmatpush.msra.mxu0 0.0
        %804 = vmatpush.msra.mxu0 0.0
        %805 = vmatpush.msra.mxu0 0.0
        %806 = vmatpush.msra.mxu0 0.0
        %807 = vmatpush.msra.mxu0 0.0
        %808 = vmatpush.msra.mxu0 0.0
        %809 = vmatpush.msra.mxu0 0.0
        %810 = vmatpush.msra.mxu0 0.0
        %811 = vmatpush.msra.mxu0 0.0
        %812 = vmatpush.msra.mxu0 0.0
        %813 = vmatpush.msra.mxu0 0.0
        %814 = vmatpush.msra.mxu0 0.0
        %815 = vmatpush.msra.mxu0 %v723
        %816 = vmatpush.msra.mxu0 %v722
        %817 = vmatpush.msra.mxu0 %v721
        %818 = vmatpush.msra.mxu0 %v720
        %819 = vmatmul.f32.gmra.mxu0 %v741
        %v820 = vpop.f32.mrf.mxu0
        %v821 = vadd.f32 %v735, %v820
        %822 = vdwg.mxu0
        %v823 = vld [vmem:[%s7] sm:$0xff]
        %v824 = vld [vmem:[%s7 + $0x8] sm:$0xff]
        %v825 = vld [vmem:[%s7 + $0x10] sm:$0xff]
        %v826 = vld [vmem:[%s7 + $0x18] sm:$0xff]
        %v827 = vld [vmem:[%s7 + $0x20] sm:$0xff]
        %v828 = vld [vmem:[%s7 + $0x28] sm:$0xff]
        %v829 = vld [vmem:[%s7 + $0x30] sm:$0xff]
        %v830 = vld [vmem:[%s7 + $0x38] sm:$0xff]
        %v831 = vld [vmem:[%s7 + $0x40] sm:$0xff]
        %v832 = vld [vmem:[%s7 + $0x48] sm:$0xff]
        %v833 = vld [vmem:[%s7 + $0x50] sm:$0xff]
        %v834 = vld [vmem:[%s7 + $0x58] sm:$0xff]
        %v835 = vld [vmem:[%s7 + $0x60] sm:$0xff]
        %v836 = vld [vmem:[%s7 + $0x68] sm:$0xff]
        %v837 = vld [vmem:[%s7 + $0x70] sm:$0xff]
        %v838 = vld [vmem:[%s7 + $0x78] sm:$0xff]
        %v839 = vld [vmem:[%s8] sm:$0x1]
        %v840 = vld [vmem:[%s8 + $0x1] sm:$0x1]
        %v841 = vld [vmem:[%s8 + $0x2] sm:$0x1]
        %v842 = vld [vmem:[%s8 + $0x3] sm:$0x1]
        %v847 = vperm.slane %v839, 0
        %v848 = vperm.slane %v840, 0
        %v849 = vperm.slane %v841, 0
        %v850 = vperm.slane %v842, 0
        %855 = vmatpush.msra.mxu0 0.0
        %856 = vmatpush.msra.mxu0 0.0
        %857 = vmatpush.msra.mxu0 0.0
        %858 = vmatpush.msra.mxu0 0.0
        %859 = vmatpush.msra.mxu0 0.0
        %860 = vmatpush.msra.mxu0 0.0
        %861 = vmatpush.msra.mxu0 0.0
        %862 = vmatpush.msra.mxu0 0.0
        %863 = vmatpush.msra.mxu0 0.0
        %864 = vmatpush.msra.mxu0 0.0
        %865 = vmatpush.msra.mxu0 0.0
        %866 = vmatpush.msra.mxu0 0.0
        %867 = vmatpush.msra.mxu0 %v826
        %868 = vmatpush.msra.mxu0 %v825
        %869 = vmatpush.msra.mxu0 %v824
        %870 = vmatpush.msra.mxu0 %v823
        %871 = vmatmul.f32.gmra.mxu0 %v741
        %v872 = vpop.f32.mrf.mxu0
        %v873 = vadd.f32 %v847, %v872
        %874 = vdwg.mxu0
        %875 = vmatpush.msra.mxu0 0.0
        %876 = vmatpush.msra.mxu0 0.0
        %877 = vmatpush.msra.mxu0 0.0
        %878 = vmatpush.msra.mxu0 0.0
        %879 = vmatpush.msra.mxu0 0.0
        %880 = vmatpush.msra.mxu0 0.0
        %881 = vmatpush.msra.mxu0 0.0
        %882 = vmatpush.msra.mxu0 0.0
        %883 = vmatpush.msra.mxu0 0.0
        %884 = vmatpush.msra.mxu0 0.0
        %885 = vmatpush.msra.mxu0 0.0
        %886 = vmatpush.msra.mxu0 0.0
        %887 = vmatpush.msra.mxu0 %v830
        %888 = vmatpush.msra.mxu0 %v829
        %889 = vmatpush.msra.mxu0 %v828
        %890 = vmatpush.msra.mxu0 %v827
        %891 = vmatmul.f32.gmra.mxu0 %v741
        %v892 = vpop.f32.mrf.mxu0
        %v893 = vadd.f32 %v848, %v892
        %894 = vdwg.mxu0
        %895 = vmatpush.msra.mxu0 0.0
        %896 = vmatpush.msra.mxu0 0.0
        %897 = vmatpush.msra.mxu0 0.0
        %898 = vmatpush.msra.mxu0 0.0
        %899 = vmatpush.msra.mxu0 0.0
        %900 = vmatpush.msra.mxu0 0.0
        %901 = vmatpush.msra.mxu0 0.0
        %902 = vmatpush.msra.mxu0 0.0
        %903 = vmatpush.msra.mxu0 0.0
        %904 = vmatpush.msra.mxu0 0.0
        %905 = vmatpush.msra.mxu0 0.0
        %906 = vmatpush.msra.mxu0 0.0
        %907 = vmatpush.msra.mxu0 %v834
        %908 = vmatpush.msra.mxu0 %v833
        %909 = vmatpush.msra.mxu0 %v832
        %910 = vmatpush.msra.mxu0 %v831
        %911 = vmatmul.f32.gmra.mxu0 %v741
        %v912 = vpop.f32.mrf.mxu0
        %v913 = vadd.f32 %v849, %v912
        %914 = vdwg.mxu0
        %915 = vmatpush.msra.mxu0 0.0
        %916 = vmatpush.msra.mxu0 0.0
        %917 = vmatpush.msra.mxu0 0.0
        %918 = vmatpush.msra.mxu0 0.0
        %919 = vmatpush.msra.mxu0 0.0
        %920 = vmatpush.msra.mxu0 0.0
        %921 = vmatpush.msra.mxu0 0.0
        %922 = vmatpush.msra.mxu0 0.0
        %923 = vmatpush.msra.mxu0 0.0
        %924 = vmatpush.msra.mxu0 0.0
        %925 = vmatpush.msra.mxu0 0.0
        %926 = vmatpush.msra.mxu0 0.0
        %927 = vmatpush.msra.mxu0 %v838
        %928 = vmatpush.msra.mxu0 %v837
        %929 = vmatpush.msra.mxu0 %v836
        %930 = vmatpush.msra.mxu0 %v835
        %931 = vmatmul.f32.gmra.mxu0 %v741
        %v932 = vpop.f32.mrf.mxu0
        %v933 = vadd.f32 %v850, %v932
        %934 = vdwg.mxu0
        %v935 = vld [vmem:[%s9] sm:$0xff]
        %v936 = vld [vmem:[%s9 + $0x8] sm:$0xff]
        %v937 = vld [vmem:[%s9 + $0x10] sm:$0xff]
        %v938 = vld [vmem:[%s9 + $0x18] sm:$0xff]
        %v939 = vld [vmem:[%s9 + $0x20] sm:$0xff]
        %v940 = vld [vmem:[%s9 + $0x28] sm:$0xff]
        %v941 = vld [vmem:[%s9 + $0x30] sm:$0xff]
        %v942 = vld [vmem:[%s9 + $0x38] sm:$0xff]
        %v943 = vld [vmem:[%s9 + $0x40] sm:$0xff]
        %v944 = vld [vmem:[%s9 + $0x48] sm:$0xff]
        %v945 = vld [vmem:[%s9 + $0x50] sm:$0xff]
        %v946 = vld [vmem:[%s9 + $0x58] sm:$0xff]
        %v947 = vld [vmem:[%s9 + $0x60] sm:$0xff]
        %v948 = vld [vmem:[%s9 + $0x68] sm:$0xff]
        %v949 = vld [vmem:[%s9 + $0x70] sm:$0xff]
        %v950 = vld [vmem:[%s9 + $0x78] sm:$0xff]
        %v951 = vld [vmem:[%s10] sm:$0x1]
        %v952 = vld [vmem:[%s10 + $0x1] sm:$0x1]
        %v953 = vld [vmem:[%s10 + $0x2] sm:$0x1]
        %v954 = vld [vmem:[%s10 + $0x3] sm:$0x1]
        %v959 = vperm.slane %v951, 0
        %v960 = vperm.slane %v952, 0
        %v961 = vperm.slane %v953, 0
        %v962 = vperm.slane %v954, 0
        %967 = vmatpush.msra.mxu0 0.0
        %968 = vmatpush.msra.mxu0 0.0
        %969 = vmatpush.msra.mxu0 0.0
        %970 = vmatpush.msra.mxu0 0.0
        %971 = vmatpush.msra.mxu0 0.0
        %972 = vmatpush.msra.mxu0 0.0
        %973 = vmatpush.msra.mxu0 0.0
        %974 = vmatpush.msra.mxu0 0.0
        %975 = vmatpush.msra.mxu0 0.0
        %976 = vmatpush.msra.mxu0 0.0
        %977 = vmatpush.msra.mxu0 0.0
        %978 = vmatpush.msra.mxu0 0.0
        %979 = vmatpush.msra.mxu0 %v938
        %980 = vmatpush.msra.mxu0 %v937
        %981 = vmatpush.msra.mxu0 %v936
        %982 = vmatpush.msra.mxu0 %v935
        %983 = vmatmul.f32.gmra.mxu0 %v741
        %v984 = vpop.f32.mrf.mxu0
        %v985 = vadd.f32 %v959, %v984
        %986 = vdwg.mxu0
        %987 = vmatpush.msra.mxu0 0.0
        %988 = vmatpush.msra.mxu0 0.0
        %989 = vmatpush.msra.mxu0 0.0
        %990 = vmatpush.msra.mxu0 0.0
        %991 = vmatpush.msra.mxu0 0.0
        %992 = vmatpush.msra.mxu0 0.0
        %993 = vmatpush.msra.mxu0 0.0
        %994 = vmatpush.msra.mxu0 0.0
        %995 = vmatpush.msra.mxu0 0.0
        %996 = vmatpush.msra.mxu0 0.0
        %997 = vmatpush.msra.mxu0 0.0
        %998 = vmatpush.msra.mxu0 0.0
        %999 = vmatpush.msra.mxu0 %v942
        %1000 = vmatpush.msra.mxu0 %v941
        %1001 = vmatpush.msra.mxu0 %v940
        %1002 = vmatpush.msra.mxu0 %v939
        %1003 = vmatmul.f32.gmra.mxu0 %v741
        %v1004 = vpop.f32.mrf.mxu0
        %v1005 = vadd.f32 %v960, %v1004
        %1006 = vdwg.mxu0
        %1007 = vmatpush.msra.mxu0 0.0
        %1008 = vmatpush.msra.mxu0 0.0
        %1009 = vmatpush.msra.mxu0 0.0
        %1010 = vmatpush.msra.mxu0 0.0
        %1011 = vmatpush.msra.mxu0 0.0
        %1012 = vmatpush.msra.mxu0 0.0
        %1013 = vmatpush.msra.mxu0 0.0
        %1014 = vmatpush.msra.mxu0 0.0
        %1015 = vmatpush.msra.mxu0 0.0
        %1016 = vmatpush.msra.mxu0 0.0
        %1017 = vmatpush.msra.mxu0 0.0
        %1018 = vmatpush.msra.mxu0 0.0
        %1019 = vmatpush.msra.mxu0 %v946
        %1020 = vmatpush.msra.mxu0 %v945
        %1021 = vmatpush.msra.mxu0 %v944
        %1022 = vmatpush.msra.mxu0 %v943
        %1023 = vmatmul.f32.gmra.mxu0 %v741
        %v1024 = vpop.f32.mrf.mxu0
        %v1025 = vadd.f32 %v961, %v1024
        %1026 = vdwg.mxu0
        %1027 = vmatpush.msra.mxu0 0.0
        %1028 = vmatpush.msra.mxu0 0.0
        %1029 = vmatpush.msra.mxu0 0.0
        %1030 = vmatpush.msra.mxu0 0.0
        %1031 = vmatpush.msra.mxu0 0.0
        %1032 = vmatpush.msra.mxu0 0.0
        %1033 = vmatpush.msra.mxu0 0.0
        %1034 = vmatpush.msra.mxu0 0.0
        %1035 = vmatpush.msra.mxu0 0.0
        %1036 = vmatpush.msra.mxu0 0.0
        %1037 = vmatpush.msra.mxu0 0.0
        %1038 = vmatpush.msra.mxu0 0.0
        %1039 = vmatpush.msra.mxu0 %v950
        %1040 = vmatpush.msra.mxu0 %v949
        %1041 = vmatpush.msra.mxu0 %v948
        %1042 = vmatpush.msra.mxu0 %v947
        %1043 = vmatmul.f32.gmra.mxu0 %v741
        %v1044 = vpop.f32.mrf.mxu0
        %v1045 = vadd.f32 %v962, %v1044
        %1046 = vdwg.mxu0
        %vm1047 = vcmask 64512
        %v1049 = vsel %vm1047, %v761, 0
        %v1052 = vsel %vm1047, %v873, 0
        %1054 = vmatpush.xpose.msra.mxu0 0.0
        %1055 = vmatpush.xpose.msra.mxu0 0.0
        %1056 = vmatpush.xpose.msra.mxu0 0.0
        %1057 = vmatpush.xpose.msra.mxu0 0.0
        %1058 = vmatpush.xpose.msra.mxu0 0.0
        %1059 = vmatpush.xpose.msra.mxu0 0.0
        %1060 = vmatpush.xpose.msra.mxu0 0.0
        %1061 = vmatpush.xpose.msra.mxu0 0.0
        %1062 = vmatpush.xpose.msra.mxu0 0.0
        %1063 = vmatpush.xpose.msra.mxu0 0.0
        %1064 = vmatpush.xpose.msra.mxu0 0.0
        %1065 = vmatpush.xpose.msra.mxu0 0.0
        %1066 = vmatpush.xpose.msra.mxu0 0.0
        %1067 = vmatpush.xpose.msra.mxu0 0.0
        %1068 = vmatpush.xpose.msra.mxu0 0.0
        %1069 = vmatpush.xpose.msra.mxu0 %v1052
        %1070 = vmatmul.f32.gmra.mxu0 %v1049
        %v1071 = vpop.f32.mrf.mxu0
        %v1072 = vadd.f32 0.0, %v1071
        %1073 = vdwg.mxu0
        %v1075 = vsel %vm1047, %v781, 0
        %v1078 = vsel %vm1047, %v893, 0
        %1080 = vmatpush.xpose.msra.mxu0 0.0
        %1081 = vmatpush.xpose.msra.mxu0 0.0
        %1082 = vmatpush.xpose.msra.mxu0 0.0
        %1083 = vmatpush.xpose.msra.mxu0 0.0
        %1084 = vmatpush.xpose.msra.mxu0 0.0
        %1085 = vmatpush.xpose.msra.mxu0 0.0
        %1086 = vmatpush.xpose.msra.mxu0 0.0
        %1087 = vmatpush.xpose.msra.mxu0 0.0
        %1088 = vmatpush.xpose.msra.mxu0 0.0
        %1089 = vmatpush.xpose.msra.mxu0 0.0
        %1090 = vmatpush.xpose.msra.mxu0 0.0
        %1091 = vmatpush.xpose.msra.mxu0 0.0
        %1092 = vmatpush.xpose.msra.mxu0 0.0
        %1093 = vmatpush.xpose.msra.mxu0 0.0
        %1094 = vmatpush.xpose.msra.mxu0 0.0
        %1095 = vmatpush.xpose.msra.mxu0 %v1078
        %1096 = vmatmul.f32.gmra.mxu0 %v1075
        %v1097 = vpop.f32.mrf.mxu0
        %v1098 = vadd.f32 0.0, %v1097
        %1099 = vdwg.mxu0
        %v1101 = vsel %vm1047, %v801, 0
        %v1104 = vsel %vm1047, %v913, 0
        %1106 = vmatpush.xpose.msra.mxu0 0.0
        %1107 = vmatpush.xpose.msra.mxu0 0.0
        %1108 = vmatpush.xpose.msra.mxu0 0.0
        %1109 = vmatpush.xpose.msra.mxu0 0.0
        %1110 = vmatpush.xpose.msra.mxu0 0.0
        %1111 = vmatpush.xpose.msra.mxu0 0.0
        %1112 = vmatpush.xpose.msra.mxu0 0.0
        %1113 = vmatpush.xpose.msra.mxu0 0.0
        %1114 = vmatpush.xpose.msra.mxu0 0.0
        %1115 = vmatpush.xpose.msra.mxu0 0.0
        %1116 = vmatpush.xpose.msra.mxu0 0.0
        %1117 = vmatpush.xpose.msra.mxu0 0.0
        %1118 = vmatpush.xpose.msra.mxu0 0.0
        %1119 = vmatpush.xpose.msra.mxu0 0.0
        %1120 = vmatpush.xpose.msra.mxu0 0.0
        %1121 = vmatpush.xpose.msra.mxu0 %v1104
        %1122 = vmatmul.f32.gmra.mxu0 %v1101
        %v1123 = vpop.f32.mrf.mxu0
        %v1124 = vadd.f32 0.0, %v1123
        %1125 = vdwg.mxu0
        %v1127 = vsel %vm1047, %v821, 0
        %v1130 = vsel %vm1047, %v933, 0
        %1132 = vmatpush.xpose.msra.mxu0 0.0
        %1133 = vmatpush.xpose.msra.mxu0 0.0
        %1134 = vmatpush.xpose.msra.mxu0 0.0
        %1135 = vmatpush.xpose.msra.mxu0 0.0
        %1136 = vmatpush.xpose.msra.mxu0 0.0
        %1137 = vmatpush.xpose.msra.mxu0 0.0
        %1138 = vmatpush.xpose.msra.mxu0 0.0
        %1139 = vmatpush.xpose.msra.mxu0 0.0
        %1140 = vmatpush.xpose.msra.mxu0 0.0
        %1141 = vmatpush.xpose.msra.mxu0 0.0
        %1142 = vmatpush.xpose.msra.mxu0 0.0
        %1143 = vmatpush.xpose.msra.mxu0 0.0
        %1144 = vmatpush.xpose.msra.mxu0 0.0
        %1145 = vmatpush.xpose.msra.mxu0 0.0
        %1146 = vmatpush.xpose.msra.mxu0 0.0
        %1147 = vmatpush.xpose.msra.mxu0 %v1130
        %1148 = vmatmul.f32.gmra.mxu0 %v1127
        %v1149 = vpop.f32.mrf.mxu0
        %v1150 = vadd.f32 0.0, %v1149
        %1151 = vdwg.mxu0
        %v1152 = vmul.f32 %v1072, 0.35355338
        %v1153 = vmul.f32 %v1098, 0.35355338
        %v1154 = vmul.f32 %v1124, 0.35355338
        %v1155 = vmul.f32 %v1150, 0.35355338
        %v1156 = vsel %vm667, 1, 0
        %vm1157 = vcmp.eq.s32.totalorder %v1156, 1
        %v1158 = vsel %vm1157, %v1152, -1e+30
        %v1159 = vsel %vm1157, %v1153, -1e+30
        %v1160 = vsel %vm1157, %v1154, -1e+30
        %v1161 = vsel %vm1157, %v1155, -1e+30
        %v1162 = vsel %vm1047, %v1158, -inf
        %1163 = vmax.xlane.f32.xlu0 %v1162
        %v1164 = vpop.xlane.xlu0 %1163
        %v1165 = vsel %vm1047, %v1159, -inf
        %1166 = vmax.xlane.f32.xlu0 %v1165
        %v1167 = vpop.xlane.xlu0 %1166
        %v1168 = vsel %vm1047, %v1160, -inf
        %1169 = vmax.xlane.f32.xlu0 %v1168
        %v1170 = vpop.xlane.xlu0 %1169
        %v1171 = vsel %vm1047, %v1161, -inf
        %1172 = vmax.xlane.f32.xlu0 %v1171
        %v1173 = vpop.xlane.xlu0 %1172
        %v1174 = vsub.f32 %v1158, %v1164
        %v1175 = vsub.f32 %v1159, %v1167
        %v1176 = vsub.f32 %v1160, %v1170
        %v1177 = vsub.f32 %v1161, %v1173
        %v1178 = vmul.f32 %v1174, 1.442695
        %v1179 = vpow.pop %v1178
        %v1180 = vmul.f32 %v1175, 1.442695
        %v1181 = vpow.pop %v1180
        %v1182 = vmul.f32 %v1176, 1.442695
        %v1183 = vpow.pop %v1182
        %v1184 = vmul.f32 %v1177, 1.442695
        %v1185 = vpow.pop %v1184
        %v1186 = vsel %vm1047, %v1179, 0.0
        %1187 = vadd.xlane.f32.xlu0 %v1186
        %v1188 = vpop.xlane.xlu0 %1187
        %v1189 = vsel %vm1047, %v1181, 0.0
        %1190 = vadd.xlane.f32.xlu0 %v1189
        %v1191 = vpop.xlane.xlu0 %1190
        %v1192 = vsel %vm1047, %v1183, 0.0
        %1193 = vadd.xlane.f32.xlu0 %v1192
        %v1194 = vpop.xlane.xlu0 %1193
        %v1195 = vsel %vm1047, %v1185, 0.0
        %1196 = vadd.xlane.f32.xlu0 %v1195
        %v1197 = vpop.xlane.xlu0 %1196
        %v1198 = vrcp.pop %v1188
        %v1199 = vrcp.pop %v1191
        %v1200 = vrcp.pop %v1194
        %v1201 = vrcp.pop %v1197
        %v1202 = vmul.f32 %v1179, %v1198
        %v1203 = vmul.f32 %v1181, %v1199
        %v1204 = vmul.f32 %v1183, %v1200
        %v1205 = vmul.f32 %v1185, %v1201
        %v1207 = vsel %vm1047, %v1202, 0
        %1209 = vmatpush.msra.mxu0 0.0
        %1210 = vmatpush.msra.mxu0 0.0
        %1211 = vmatpush.msra.mxu0 0.0
        %1212 = vmatpush.msra.mxu0 0.0
        %1213 = vmatpush.msra.mxu0 0.0
        %1214 = vmatpush.msra.mxu0 0.0
        %1215 = vmatpush.msra.mxu0 0.0
        %1216 = vmatpush.msra.mxu0 0.0
        %1217 = vmatpush.msra.mxu0 0.0
        %1218 = vmatpush.msra.mxu0 0.0
        %1219 = vmatpush.msra.mxu0 0.0
        %1220 = vmatpush.msra.mxu0 0.0
        %1221 = vmatpush.msra.mxu0 0.0
        %1222 = vmatpush.msra.mxu0 0.0
        %1223 = vmatpush.msra.mxu0 0.0
        %1224 = vmatpush.msra.mxu0 %v985
        %1225 = vmatmul.f32.gmra.mxu0 %v1207
        %v1226 = vpop.f32.mrf.mxu0
        %v1227 = vadd.f32 0.0, %v1226
        %1228 = vdwg.mxu0
        %v1230 = vsel %vm1047, %v1203, 0
        %1232 = vmatpush.msra.mxu0 0.0
        %1233 = vmatpush.msra.mxu0 0.0
        %1234 = vmatpush.msra.mxu0 0.0
        %1235 = vmatpush.msra.mxu0 0.0
        %1236 = vmatpush.msra.mxu0 0.0
        %1237 = vmatpush.msra.mxu0 0.0
        %1238 = vmatpush.msra.mxu0 0.0
        %1239 = vmatpush.msra.mxu0 0.0
        %1240 = vmatpush.msra.mxu0 0.0
        %1241 = vmatpush.msra.mxu0 0.0
        %1242 = vmatpush.msra.mxu0 0.0
        %1243 = vmatpush.msra.mxu0 0.0
        %1244 = vmatpush.msra.mxu0 0.0
        %1245 = vmatpush.msra.mxu0 0.0
        %1246 = vmatpush.msra.mxu0 0.0
        %1247 = vmatpush.msra.mxu0 %v1005
        %1248 = vmatmul.f32.gmra.mxu0 %v1230
        %v1249 = vpop.f32.mrf.mxu0
        %v1250 = vadd.f32 0.0, %v1249
        %1251 = vdwg.mxu0
        %v1253 = vsel %vm1047, %v1204, 0
        %1255 = vmatpush.msra.mxu0 0.0
        %1256 = vmatpush.msra.mxu0 0.0
        %1257 = vmatpush.msra.mxu0 0.0
        %1258 = vmatpush.msra.mxu0 0.0
        %1259 = vmatpush.msra.mxu0 0.0
        %1260 = vmatpush.msra.mxu0 0.0
        %1261 = vmatpush.msra.mxu0 0.0
        %1262 = vmatpush.msra.mxu0 0.0
        %1263 = vmatpush.msra.mxu0 0.0
        %1264 = vmatpush.msra.mxu0 0.0
        %1265 = vmatpush.msra.mxu0 0.0
        %1266 = vmatpush.msra.mxu0 0.0
        %1267 = vmatpush.msra.mxu0 0.0
        %1268 = vmatpush.msra.mxu0 0.0
        %1269 = vmatpush.msra.mxu0 0.0
        %1270 = vmatpush.msra.mxu0 %v1025
        %1271 = vmatmul.f32.gmra.mxu0 %v1253
        %v1272 = vpop.f32.mrf.mxu0
        %v1273 = vadd.f32 0.0, %v1272
        %1274 = vdwg.mxu0
        %v1276 = vsel %vm1047, %v1205, 0
        %1278 = vmatpush.msra.mxu0 0.0
        %1279 = vmatpush.msra.mxu0 0.0
        %1280 = vmatpush.msra.mxu0 0.0
        %1281 = vmatpush.msra.mxu0 0.0
        %1282 = vmatpush.msra.mxu0 0.0
        %1283 = vmatpush.msra.mxu0 0.0
        %1284 = vmatpush.msra.mxu0 0.0
        %1285 = vmatpush.msra.mxu0 0.0
        %1286 = vmatpush.msra.mxu0 0.0
        %1287 = vmatpush.msra.mxu0 0.0
        %1288 = vmatpush.msra.mxu0 0.0
        %1289 = vmatpush.msra.mxu0 0.0
        %1290 = vmatpush.msra.mxu0 0.0
        %1291 = vmatpush.msra.mxu0 0.0
        %1292 = vmatpush.msra.mxu0 0.0
        %1293 = vmatpush.msra.mxu0 %v1045
        %1294 = vmatmul.f32.gmra.mxu0 %v1276
        %v1295 = vpop.f32.mrf.mxu0
        %v1296 = vadd.f32 0.0, %v1295
        %1297 = vdwg.mxu0
        %v1298 = vld [vmem:[%s11] sm:$0xff]
        %v1299 = vld [vmem:[%s11 + $0x8] sm:$0xff]
        %v1300 = vld [vmem:[%s11 + $0x10] sm:$0xff]
        %v1301 = vld [vmem:[%s11 + $0x18] sm:$0xff]
        %v1303 = vsel %vm1047, %v1227, 0
        %1305 = vmatpush.msra.mxu0 0.0
        %1306 = vmatpush.msra.mxu0 0.0
        %1307 = vmatpush.msra.mxu0 0.0
        %1308 = vmatpush.msra.mxu0 0.0
        %1309 = vmatpush.msra.mxu0 0.0
        %1310 = vmatpush.msra.mxu0 0.0
        %1311 = vmatpush.msra.mxu0 0.0
        %1312 = vmatpush.msra.mxu0 0.0
        %1313 = vmatpush.msra.mxu0 0.0
        %1314 = vmatpush.msra.mxu0 0.0
        %1315 = vmatpush.msra.mxu0 0.0
        %1316 = vmatpush.msra.mxu0 0.0
        %1317 = vmatpush.msra.mxu0 0.0
        %1318 = vmatpush.msra.mxu0 0.0
        %1319 = vmatpush.msra.mxu0 0.0
        %1320 = vmatpush.msra.mxu0 %v1298
        %1321 = vmatmul.f32.gmra.mxu0 %v1303
        %v1322 = vpop.f32.mrf.mxu0
        %v1323 = vadd.f32 0.0, %v1322
        %1324 = vdwg.mxu0
        %v1326 = vsel %vm1047, %v1250, 0
        %1328 = vmatpush.msra.mxu0 0.0
        %1329 = vmatpush.msra.mxu0 0.0
        %1330 = vmatpush.msra.mxu0 0.0
        %1331 = vmatpush.msra.mxu0 0.0
        %1332 = vmatpush.msra.mxu0 0.0
        %1333 = vmatpush.msra.mxu0 0.0
        %1334 = vmatpush.msra.mxu0 0.0
        %1335 = vmatpush.msra.mxu0 0.0
        %1336 = vmatpush.msra.mxu0 0.0
        %1337 = vmatpush.msra.mxu0 0.0
        %1338 = vmatpush.msra.mxu0 0.0
        %1339 = vmatpush.msra.mxu0 0.0
        %1340 = vmatpush.msra.mxu0 0.0
        %1341 = vmatpush.msra.mxu0 0.0
        %1342 = vmatpush.msra.mxu0 0.0
        %1343 = vmatpush.msra.mxu0 %v1299
        %1344 = vmatmul.f32.gmra.mxu0 %v1326
        %v1345 = vpop.f32.mrf.mxu0
        %v1346 = vadd.f32 0.0, %v1345
        %1347 = vdwg.mxu0
        %v1349 = vsel %vm1047, %v1273, 0
        %1351 = vmatpush.msra.mxu0 0.0
        %1352 = vmatpush.msra.mxu0 0.0
        %1353 = vmatpush.msra.mxu0 0.0
        %1354 = vmatpush.msra.mxu0 0.0
        %1355 = vmatpush.msra.mxu0 0.0
        %1356 = vmatpush.msra.mxu0 0.0
        %1357 = vmatpush.msra.mxu0 0.0
        %1358 = vmatpush.msra.mxu0 0.0
        %1359 = vmatpush.msra.mxu0 0.0
        %1360 = vmatpush.msra.mxu0 0.0
        %1361 = vmatpush.msra.mxu0 0.0
        %1362 = vmatpush.msra.mxu0 0.0
        %1363 = vmatpush.msra.mxu0 0.0
        %1364 = vmatpush.msra.mxu0 0.0
        %1365 = vmatpush.msra.mxu0 0.0
        %1366 = vmatpush.msra.mxu0 %v1300
        %1367 = vmatmul.f32.gmra.mxu0 %v1349
        %v1368 = vpop.f32.mrf.mxu0
        %v1369 = vadd.f32 0.0, %v1368
        %1370 = vdwg.mxu0
        %v1372 = vsel %vm1047, %v1296, 0
        %1374 = vmatpush.msra.mxu0 0.0
        %1375 = vmatpush.msra.mxu0 0.0
        %1376 = vmatpush.msra.mxu0 0.0
        %1377 = vmatpush.msra.mxu0 0.0
        %1378 = vmatpush.msra.mxu0 0.0
        %1379 = vmatpush.msra.mxu0 0.0
        %1380 = vmatpush.msra.mxu0 0.0
        %1381 = vmatpush.msra.mxu0 0.0
        %1382 = vmatpush.msra.mxu0 0.0
        %1383 = vmatpush.msra.mxu0 0.0
        %1384 = vmatpush.msra.mxu0 0.0
        %1385 = vmatpush.msra.mxu0 0.0
        %1386 = vmatpush.msra.mxu0 0.0
        %1387 = vmatpush.msra.mxu0 0.0
        %1388 = vmatpush.msra.mxu0 0.0
        %1389 = vmatpush.msra.mxu0 %v1301
        %1390 = vmatmul.f32.gmra.mxu0 %v1372
        %v1391 = vpop.f32.mrf.mxu0
        %v1392 = vadd.f32 0.0, %v1391
        %1393 = vdwg.mxu0
        %v1394 = vsel %vm670, %v1323, 0.0
        %v1395 = vsel %vm670, %v1346, 0.0
        %v1396 = vadd.f32 %v1394, %v1395
        %v1397 = vsel %vm670, %v1369, 0.0
        %v1398 = vadd.f32 %v1396, %v1397
        %v1399 = vsel %vm670, %v1392, 0.0
        %v1400 = vadd.f32 %v1398, %v1399
        %v1401 = vadd.f32 %v662, %v1400
        %v1402 = vld [vmem:[%s12] sm:$0x1]
        %v1404 = vperm.slane %v1402, 0
        %v1406 = vadd.f32 %v1401, %v1404
        %v1407 = vld [vmem:[%s13] sm:$0x1]
        %v1408 = vld [vmem:[%s14] sm:$0x1]
        %v1409 = vsel %vm670, %v1406, 0.0
        %1410 = vadd.xlane.f32.xlu0 %v1409
        %v1411 = vpop.xlane.xlu0 %1410
        %v1412 = vmul.f32 %v1411, %v680
        %v1413 = vsub.f32 %v1406, %v1412
        %v1414 = vmul.f32 %v1413, %v1413
        %v1415 = vsel %vm670, %v1414, 0.0
        %1416 = vadd.xlane.f32.xlu0 %v1415
        %v1417 = vpop.xlane.xlu0 %1416
        %v1418 = vmul.f32 %v1417, %v680
        %v1419 = vadd.f32 %v1418, 1e-05
        %v1420 = vrsqrt.pop %v1419
        %v1421 = vmul.f32 %v1420, %v1419
        %v1422 = vmul.f32 %v1421, %v1420
        %v1423 = vmul.f32 0.5, %v1422
        %v1424 = vsub.f32 1.5, %v1423
        %v1425 = vmul.f32 %v1420, %v1424
        %vm1426 = vweird.f32 %v1419
        %vm1427 = vweird.f32 %v1420
        %vm1428 = vmor %vm1426, %vm1427
        %v1429 = vsel %vm1428, %v1420, %v1425
        %v1430 = vmul.f32 %v1413, %v1429
        %v1432 = vperm.slane %v1407, 0
        %v1434 = vmul.f32 %v1430, %v1432
        %v1436 = vperm.slane %v1408, 0
        %v1438 = vadd.f32 %v1434, %v1436
        %v1439 = vld [vmem:[%s15] sm:$0xff]
        %v1440 = vld [vmem:[%s15 + $0x8] sm:$0xff]
        %v1441 = vld [vmem:[%s15 + $0x10] sm:$0xff]
        %v1442 = vld [vmem:[%s15 + $0x18] sm:$0xff]
        %v1443 = vld [vmem:[%s16] sm:$0x1]
        %v1445 = vperm.slane %v1443, 0
        %v1448 = vsel %vm670, %v1438, 0
        %1450 = vmatpush.msra.mxu0 0.0
        %1451 = vmatpush.msra.mxu0 0.0
        %1452 = vmatpush.msra.mxu0 0.0
        %1453 = vmatpush.msra.mxu0 0.0
        %1454 = vmatpush.msra.mxu0 0.0
        %1455 = vmatpush.msra.mxu0 0.0
        %1456 = vmatpush.msra.mxu0 0.0
        %1457 = vmatpush.msra.mxu0 0.0
        %1458 = vmatpush.msra.mxu0 0.0
        %1459 = vmatpush.msra.mxu0 0.0
        %1460 = vmatpush.msra.mxu0 0.0
        %1461 = vmatpush.msra.mxu0 0.0
        %1462 = vmatpush.msra.mxu0 %v1442
        %1463 = vmatpush.msra.mxu0 %v1441
        %1464 = vmatpush.msra.mxu0 %v1440
        %1465 = vmatpush.msra.mxu0 %v1439
        %1466 = vmatmul.f32.gmra.mxu0 %v1448
        %v1467 = vpop.f32.mrf.mxu0
        %v1468 = vadd.f32 %v1445, %v1467
        %1469 = vdwg.mxu0
        %v1470 = vmul.f32 %v1468, 1.702
        %v1471 = vxor.u32 %v1470, 2147483648
        %v1472 = vmul.f32 %v1471, 1.442695
        %v1473 = vpow.pop %v1472
        %v1474 = vadd.f32 %v1473, 1.0
        %v1475 = vrcp.pop %v1474
        %v1476 = vmul.f32 %v1474, %v1475
        %v1477 = vsub.f32 1.0, %v1476
        %v1478 = vmul.f32 %v1475, %v1477
        %v1479 = vadd.f32 %v1475, %v1478
        %vm1480 = vweird.f32 %v1474
        %vm1481 = vweird.f32 %v1475
        %vm1482 = vmor %vm1480, %vm1481
        %v1483 = vsel %vm1482, %v1475, %v1479
        %v1484 = vand.u32 2147483647, %v1474
        %vm1485 = vcmp.eq.f32.partialorder %v1484, 8.507059e+37
        %v1486 = vand.u32 %v1474, 2147483648
        %v1487 = vor.u32 1.1754944e-38, %v1486
        %v1488 = vsel %vm1485, %v1487, %v1483
        %v1489 = vmul.f32 1.0, %v1488
        %v1490 = vmul.f32 %v1468, %v1489
        %v1491 = vld [vmem:[%s17] sm:$0xff]
        %v1492 = vld [vmem:[%s17 + $0x8] sm:$0xff]
        %v1493 = vld [vmem:[%s17 + $0x10] sm:$0xff]
        %v1494 = vld [vmem:[%s17 + $0x18] sm:$0xff]
        %v1495 = vld [vmem:[%s17 + $0x20] sm:$0xff]
        %v1496 = vld [vmem:[%s17 + $0x28] sm:$0xff]
        %v1497 = vld [vmem:[%s17 + $0x30] sm:$0xff]
        %v1498 = vld [vmem:[%s17 + $0x38] sm:$0xff]
        %v1499 = vld [vmem:[%s17 + $0x40] sm:$0xff]
        %v1500 = vld [vmem:[%s17 + $0x48] sm:$0xff]
        %v1501 = vld [vmem:[%s17 + $0x50] sm:$0xff]
        %v1502 = vld [vmem:[%s17 + $0x58] sm:$0xff]
        %v1503 = vld [vmem:[%s17 + $0x60] sm:$0xff]
        %v1504 = vld [vmem:[%s17 + $0x68] sm:$0xff]
        %v1505 = vld [vmem:[%s17 + $0x70] sm:$0xff]
        %v1506 = vld [vmem:[%s17 + $0x78] sm:$0xff]
        %1507 = vmatpush.msra.mxu0 %v1506
        %1508 = vmatpush.msra.mxu0 %v1505
        %1509 = vmatpush.msra.mxu0 %v1504
        %1510 = vmatpush.msra.mxu0 %v1503
        %1511 = vmatpush.msra.mxu0 %v1502
        %1512 = vmatpush.msra.mxu0 %v1501
        %1513 = vmatpush.msra.mxu0 %v1500
        %1514 = vmatpush.msra.mxu0 %v1499
        %1515 = vmatpush.msra.mxu0 %v1498
        %1516 = vmatpush.msra.mxu0 %v1497
        %1517 = vmatpush.msra.mxu0 %v1496
        %1518 = vmatpush.msra.mxu0 %v1495
        %1519 = vmatpush.msra.mxu0 %v1494
        %1520 = vmatpush.msra.mxu0 %v1493
        %1521 = vmatpush.msra.mxu0 %v1492
        %1522 = vmatpush.msra.mxu0 %v1491
        %1523 = vmatmul.f32.gmra.mxu0 %v1490
        %v1524 = vpop.f32.mrf.mxu0
        %v1525 = vadd.f32 0.0, %v1524
        %1526 = vdwg.mxu0
        %v1527 = vadd.f32 %v1406, %v1525
        %v1528 = vld [vmem:[%s18] sm:$0x1]
        %v1530 = vperm.slane %v1528, 0
        %v1532 = vadd.f32 %v1527, %v1530
        %s1533 = scalar_lea.vmem %s3, 1
        %v1534 = vld [vmem:[%s1533] sm:$0x1]
        %s1535 = scalar_lea.vmem %s4, 1
        %v1536 = vld [vmem:[%s1535] sm:$0x1]
        %v1537 = vsel %vm670, %v1532, 0.0
        %1538 = vadd.xlane.f32.xlu0 %v1537
        %v1539 = vpop.xlane.xlu0 %1538
        %v1540 = vmul.f32 %v1539, %v680
        %v1541 = vsub.f32 %v1532, %v1540
        %v1542 = vmul.f32 %v1541, %v1541
        %v1543 = vsel %vm670, %v1542, 0.0
        %1544 = vadd.xlane.f32.xlu0 %v1543
        %v1545 = vpop.xlane.xlu0 %1544
        %v1546 = vmul.f32 %v1545, %v680
        %v1547 = vadd.f32 %v1546, 1e-05
        %v1548 = vrsqrt.pop %v1547
        %v1549 = vmul.f32 %v1548, %v1547
        %v1550 = vmul.f32 %v1549, %v1548
        %v1551 = vmul.f32 0.5, %v1550
        %v1552 = vsub.f32 1.5, %v1551
        %v1553 = vmul.f32 %v1548, %v1552
        %vm1554 = vweird.f32 %v1547
        %vm1555 = vweird.f32 %v1548
        %vm1556 = vmor %vm1554, %vm1555
        %v1557 = vsel %vm1556, %v1548, %v1553
        %v1558 = vmul.f32 %v1541, %v1557
        %v1560 = vperm.slane %v1534, 0
        %v1562 = vmul.f32 %v1558, %v1560
        %v1564 = vperm.slane %v1536, 0
        %v1566 = vadd.f32 %v1562, %v1564
        %s1567 = scalar_lea.vmem %s5, 128
        %v1568 = vld [vmem:[%s1567] sm:$0xff]
        %v1569 = vld [vmem:[%s1567 + $0x8] sm:$0xff]
        %v1570 = vld [vmem:[%s1567 + $0x10] sm:$0xff]
        %v1571 = vld [vmem:[%s1567 + $0x18] sm:$0xff]
        %v1572 = vld [vmem:[%s1567 + $0x20] sm:$0xff]
        %v1573 = vld [vmem:[%s1567 + $0x28] sm:$0xff]
        %v1574 = vld [vmem:[%s1567 + $0x30] sm:$0xff]
        %v1575 = vld [vmem:[%s1567 + $0x38] sm:$0xff]
        %v1576 = vld [vmem:[%s1567 + $0x40] sm:$0xff]
        %v1577 = vld [vmem:[%s1567 + $0x48] sm:$0xff]
        %v1578 = vld [vmem:[%s1567 + $0x50] sm:$0xff]
        %v1579 = vld [vmem:[%s1567 + $0x58] sm:$0xff]
        %v1580 = vld [vmem:[%s1567 + $0x60] sm:$0xff]
        %v1581 = vld [vmem:[%s1567 + $0x68] sm:$0xff]
        %v1582 = vld [vmem:[%s1567 + $0x70] sm:$0xff]
        %v1583 = vld [vmem:[%s1567 + $0x78] sm:$0xff]
        %s1584 = scalar_lea.vmem %s6, 4
        %v1585 = vld [vmem:[%s1584] sm:$0x1]
        %v1586 = vld [vmem:[%s1584 + $0x1] sm:$0x1]
        %v1587 = vld [vmem:[%s1584 + $0x2] sm:$0x1]
        %v1588 = vld [vmem:[%s1584 + $0x3] sm:$0x1]
        %v1593 = vperm.slane %v1585, 0
        %v1594 = vperm.slane %v1586, 0
        %v1595 = vperm.slane %v1587, 0
        %v1596 = vperm.slane %v1588, 0
        %v1602 = vsel %vm670, %v1566, 0
        %1604 = vmatpush.msra.mxu0 0.0
        %1605 = vmatpush.msra.mxu0 0.0
        %1606 = vmatpush.msra.mxu0 0.0
        %1607 = vmatpush.msra.mxu0 0.0
        %1608 = vmatpush.msra.mxu0 0.0
        %1609 = vmatpush.msra.mxu0 0.0
        %1610 = vmatpush.msra.mxu0 0.0
        %1611 = vmatpush.msra.mxu0 0.0
        %1612 = vmatpush.msra.mxu0 0.0
        %1613 = vmatpush.msra.mxu0 0.0
        %1614 = vmatpush.msra.mxu0 0.0
        %1615 = vmatpush.msra.mxu0 0.0
        %1616 = vmatpush.msra.mxu0 %v1571
        %1617 = vmatpush.msra.mxu0 %v1570
        %1618 = vmatpush.msra.mxu0 %v1569
        %1619 = vmatpush.msra.mxu0 %v1568
        %1620 = vmatmul.f32.gmra.mxu0 %v1602
        %v1621 = vpop.f32.mrf.mxu0
        %v1622 = vadd.f32 %v1593, %v1621
        %1623 = vdwg.mxu0
        %1624 = vmatpush.msra.mxu0 0.0
        %1625 = vmatpush.msra.mxu0 0.0
        %1626 = vmatpush.msra.mxu0 0.0
        %1627 = vmatpush.msra.mxu0 0.0
        %1628 = vmatpush.msra.mxu0 0.0
        %1629 = vmatpush.msra.mxu0 0.0
        %1630 = vmatpush.msra.mxu0 0.0
        %1631 = vmatpush.msra.mxu0 0.0
        %1632 = vmatpush.msra.mxu0 0.0
        %1633 = vmatpush.msra.mxu0 0.0
        %1634 = vmatpush.msra.mxu0 0.0
        %1635 = vmatpush.msra.mxu0 0.0
        %1636 = vmatpush.msra.mxu0 %v1575
        %1637 = vmatpush.msra.mxu0 %v1574
        %1638 = vmatpush.msra.mxu0 %v1573
        %1639 = vmatpush.msra.mxu0 %v1572
        %1640 = vmatmul.f32.gmra.mxu0 %v1602
        %v1641 = vpop.f32.mrf.mxu0
        %v1642 = vadd.f32 %v1594, %v1641
        %1643 = vdwg.mxu0
        %1644 = vmatpush.msra.mxu0 0.0
        %1645 = vmatpush.msra.mxu0 0.0
        %1646 = vmatpush.msra.mxu0 0.0
        %1647 = vmatpush.msra.mxu0 0.0
        %1648 = vmatpush.msra.mxu0 0.0
        %1649 = vmatpush.msra.mxu0 0.0
        %1650 = vmatpush.msra.mxu0 0.0
        %1651 = vmatpush.msra.mxu0 0.0
        %1652 = vmatpush.msra.mxu0 0.0
        %1653 = vmatpush.msra.mxu0 0.0
        %1654 = vmatpush.msra.mxu0 0.0
        %1655 = vmatpush.msra.mxu0 0.0
        %1656 = vmatpush.msra.mxu0 %v1579
        %1657 = vmatpush.msra.mxu0 %v1578
        %1658 = vmatpush.msra.mxu0 %v1577
        %1659 = vmatpush.msra.mxu0 %v1576
        %1660 = vmatmul.f32.gmra.mxu0 %v1602
        %v1661 = vpop.f32.mrf.mxu0
        %v1662 = vadd.f32 %v1595, %v1661
        %1663 = vdwg.mxu0
        %1664 = vmatpush.msra.mxu0 0.0
        %1665 = vmatpush.msra.mxu0 0.0
        %1666 = vmatpush.msra.mxu0 0.0
        %1667 = vmatpush.msra.mxu0 0.0
        %1668 = vmatpush.msra.mxu0 0.0
        %1669 = vmatpush.msra.mxu0 0.0
        %1670 = vmatpush.msra.mxu0 0.0
        %1671 = vmatpush.msra.mxu0 0.0
        %1672 = vmatpush.msra.mxu0 0.0
        %1673 = vmatpush.msra.mxu0 0.0
        %1674 = vmatpush.msra.mxu0 0.0
        %1675 = vmatpush.msra.mxu0 0.0
        %1676 = vmatpush.msra.mxu0 %v1583
        %1677 = vmatpush.msra.mxu0 %v1582
        %1678 = vmatpush.msra.mxu0 %v1581
        %1679 = vmatpush.msra.mxu0 %v1580
        %1680 = vmatmul.f32.gmra.mxu0 %v1602
        %v1681 = vpop.f32.mrf.mxu0
        %v1682 = vadd.f32 %v1596, %v1681
        %1683 = vdwg.mxu0
        %s1684 = scalar_lea.vmem %s7, 128
        %v1685 = vld [vmem:[%s1684] sm:$0xff]
        %v1686 = vld [vmem:[%s1684 + $0x8] sm:$0xff]
        %v1687 = vld [vmem:[%s1684 + $0x10] sm:$0xff]
        %v1688 = vld [vmem:[%s1684 + $0x18] sm:$0xff]
        %v1689 = vld [vmem:[%s1684 + $0x20] sm:$0xff]
        %v1690 = vld [vmem:[%s1684 + $0x28] sm:$0xff]
        %v1691 = vld [vmem:[%s1684 + $0x30] sm:$0xff]
        %v1692 = vld [vmem:[%s1684 + $0x38] sm:$0xff]
        %v1693 = vld [vmem:[%s1684 + $0x40] sm:$0xff]
        %v1694 = vld [vmem:[%s1684 + $0x48] sm:$0xff]
        %v1695 = vld [vmem:[%s1684 + $0x50] sm:$0xff]
        %v1696 = vld [vmem:[%s1684 + $0x58] sm:$0xff]
        %v1697 = vld [vmem:[%s1684 + $0x60] sm:$0xff]
        %v1698 = vld [vmem:[%s1684 + $0x68] sm:$0xff]
        %v1699 = vld [vmem:[%s1684 + $0x70] sm:$0xff]
        %v1700 = vld [vmem:[%s1684 + $0x78] sm:$0xff]
        %s1701 = scalar_lea.vmem %s8, 4
        %v1702 = vld [vmem:[%s1701] sm:$0x1]
        %v1703 = vld [vmem:[%s1701 + $0x1] sm:$0x1]
        %v1704 = vld [vmem:[%s1701 + $0x2] sm:$0x1]
        %v1705 = vld [vmem:[%s1701 + $0x3] sm:$0x1]
        %v1710 = vperm.slane %v1702, 0
        %v1711 = vperm.slane %v1703, 0
        %v1712 = vperm.slane %v1704, 0
        %v1713 = vperm.slane %v1705, 0
        %1718 = vmatpush.msra.mxu0 0.0
        %1719 = vmatpush.msra.mxu0 0.0
        %1720 = vmatpush.msra.mxu0 0.0
        %1721 = vmatpush.msra.mxu0 0.0
        %1722 = vmatpush.msra.mxu0 0.0
        %1723 = vmatpush.msra.mxu0 0.0
        %1724 = vmatpush.msra.mxu0 0.0
        %1725 = vmatpush.msra.mxu0 0.0
        %1726 = vmatpush.msra.mxu0 0.0
        %1727 = vmatpush.msra.mxu0 0.0
        %1728 = vmatpush.msra.mxu0 0.0
        %1729 = vmatpush.msra.mxu0 0.0
        %1730 = vmatpush.msra.mxu0 %v1688
        %1731 = vmatpush.msra.mxu0 %v1687
        %1732 = vmatpush.msra.mxu0 %v1686
        %1733 = vmatpush.msra.mxu0 %v1685
        %1734 = vmatmul.f32.gmra.mxu0 %v1602
        %v1735 = vpop.f32.mrf.mxu0
        %v1736 = vadd.f32 %v1710, %v1735
        %1737 = vdwg.mxu0
        %1738 = vmatpush.msra.mxu0 0.0
        %1739 = vmatpush.msra.mxu0 0.0
        %1740 = vmatpush.msra.mxu0 0.0
        %1741 = vmatpush.msra.mxu0 0.0
        %1742 = vmatpush.msra.mxu0 0.0
        %1743 = vmatpush.msra.mxu0 0.0
        %1744 = vmatpush.msra.mxu0 0.0
        %1745 = vmatpush.msra.mxu0 0.0
        %1746 = vmatpush.msra.mxu0 0.0
        %1747 = vmatpush.msra.mxu0 0.0
        %1748 = vmatpush.msra.mxu0 0.0
        %1749 = vmatpush.msra.mxu0 0.0
        %1750 = vmatpush.msra.mxu0 %v1692
        %1751 = vmatpush.msra.mxu0 %v1691
        %1752 = vmatpush.msra.mxu0 %v1690
        %1753 = vmatpush.msra.mxu0 %v1689
        %1754 = vmatmul.f32.gmra.mxu0 %v1602
        %v1755 = vpop.f32.mrf.mxu0
        %v1756 = vadd.f32 %v1711, %v1755
        %1757 = vdwg.mxu0
        %1758 = vmatpush.msra.mxu0 0.0
        %1759 = vmatpush.msra.mxu0 0.0
        %1760 = vmatpush.msra.mxu0 0.0
        %1761 = vmatpush.msra.mxu0 0.0
        %1762 = vmatpush.msra.mxu0 0.0
        %1763 = vmatpush.msra.mxu0 0.0
        %1764 = vmatpush.msra.mxu0 0.0
        %1765 = vmatpush.msra.mxu0 0.0
        %1766 = vmatpush.msra.mxu0 0.0
        %1767 = vmatpush.msra.mxu0 0.0
        %1768 = vmatpush.msra.mxu0 0.0
        %1769 = vmatpush.msra.mxu0 0.0
        %1770 = vmatpush.msra.mxu0 %v1696
        %1771 = vmatpush.msra.mxu0 %v1695
        %1772 = vmatpush.msra.mxu0 %v1694
        %1773 = vmatpush.msra.mxu0 %v1693
        %1774 = vmatmul.f32.gmra.mxu0 %v1602
        %v1775 = vpop.f32.mrf.mxu0
        %v1776 = vadd.f32 %v1712, %v1775
        %1777 = vdwg.mxu0
        %1778 = vmatpush.msra.mxu0 0.0
        %1779 = vmatpush.msra.mxu0 0.0
        %1780 = vmatpush.msra.mxu0 0.0
        %1781 = vmatpush.msra.mxu0 0.0
        %1782 = vmatpush.msra.mxu0 0.0
        %1783 = vmatpush.msra.mxu0 0.0
        %1784 = vmatpush.msra.mxu0 0.0
        %1785 = vmatpush.msra.mxu0 0.0
        %1786 = vmatpush.msra.mxu0 0.0
        %1787 = vmatpush.msra.mxu0 0.0
        %1788 = vmatpush.msra.mxu0 0.0
        %1789 = vmatpush.msra.mxu0 0.0
        %1790 = vmatpush.msra.mxu0 %v1700
        %1791 = vmatpush.msra.mxu0 %v1699
        %1792 = vmatpush.msra.mxu0 %v1698
        %1793 = vmatpush.msra.mxu0 %v1697
        %1794 = vmatmul.f32.gmra.mxu0 %v1602
        %v1795 = vpop.f32.mrf.mxu0
        %v1796 = vadd.f32 %v1713, %v1795
        %1797 = vdwg.mxu0
        %s1798 = scalar_lea.vmem %s9, 128
        %v1799 = vld [vmem:[%s1798] sm:$0xff]
        %v1800 = vld [vmem:[%s1798 + $0x8] sm:$0xff]
        %v1801 = vld [vmem:[%s1798 + $0x10] sm:$0xff]
        %v1802 = vld [vmem:[%s1798 + $0x18] sm:$0xff]
        %v1803 = vld [vmem:[%s1798 + $0x20] sm:$0xff]
        %v1804 = vld [vmem:[%s1798 + $0x28] sm:$0xff]
        %v1805 = vld [vmem:[%s1798 + $0x30] sm:$0xff]
        %v1806 = vld [vmem:[%s1798 + $0x38] sm:$0xff]
        %v1807 = vld [vmem:[%s1798 + $0x40] sm:$0xff]
        %v1808 = vld [vmem:[%s1798 + $0x48] sm:$0xff]
        %v1809 = vld [vmem:[%s1798 + $0x50] sm:$0xff]
        %v1810 = vld [vmem:[%s1798 + $0x58] sm:$0xff]
        %v1811 = vld [vmem:[%s1798 + $0x60] sm:$0xff]
        %v1812 = vld [vmem:[%s1798 + $0x68] sm:$0xff]
        %v1813 = vld [vmem:[%s1798 + $0x70] sm:$0xff]
        %v1814 = vld [vmem:[%s1798 + $0x78] sm:$0xff]
        %s1815 = scalar_lea.vmem %s10, 4
        %v1816 = vld [vmem:[%s1815] sm:$0x1]
        %v1817 = vld [vmem:[%s1815 + $0x1] sm:$0x1]
        %v1818 = vld [vmem:[%s1815 + $0x2] sm:$0x1]
        %v1819 = vld [vmem:[%s1815 + $0x3] sm:$0x1]
        %v1824 = vperm.slane %v1816, 0
        %v1825 = vperm.slane %v1817, 0
        %v1826 = vperm.slane %v1818, 0
        %v1827 = vperm.slane %v1819, 0
        %1832 = vmatpush.msra.mxu0 0.0
        %1833 = vmatpush.msra.mxu0 0.0
        %1834 = vmatpush.msra.mxu0 0.0
        %1835 = vmatpush.msra.mxu0 0.0
        %1836 = vmatpush.msra.mxu0 0.0
        %1837 = vmatpush.msra.mxu0 0.0
        %1838 = vmatpush.msra.mxu0 0.0
        %1839 = vmatpush.msra.mxu0 0.0
        %1840 = vmatpush.msra.mxu0 0.0
        %1841 = vmatpush.msra.mxu0 0.0
        %1842 = vmatpush.msra.mxu0 0.0
        %1843 = vmatpush.msra.mxu0 0.0
        %1844 = vmatpush.msra.mxu0 %v1802
        %1845 = vmatpush.msra.mxu0 %v1801
        %1846 = vmatpush.msra.mxu0 %v1800
        %1847 = vmatpush.msra.mxu0 %v1799
        %1848 = vmatmul.f32.gmra.mxu0 %v1602
        %v1849 = vpop.f32.mrf.mxu0
        %v1850 = vadd.f32 %v1824, %v1849
        %1851 = vdwg.mxu0
        %1852 = vmatpush.msra.mxu0 0.0
        %1853 = vmatpush.msra.mxu0 0.0
        %1854 = vmatpush.msra.mxu0 0.0
        %1855 = vmatpush.msra.mxu0 0.0
        %1856 = vmatpush.msra.mxu0 0.0
        %1857 = vmatpush.msra.mxu0 0.0
        %1858 = vmatpush.msra.mxu0 0.0
        %1859 = vmatpush.msra.mxu0 0.0
        %1860 = vmatpush.msra.mxu0 0.0
        %1861 = vmatpush.msra.mxu0 0.0
        %1862 = vmatpush.msra.mxu0 0.0
        %1863 = vmatpush.msra.mxu0 0.0
        %1864 = vmatpush.msra.mxu0 %v1806
        %1865 = vmatpush.msra.mxu0 %v1805
        %1866 = vmatpush.msra.mxu0 %v1804
        %1867 = vmatpush.msra.mxu0 %v1803
        %1868 = vmatmul.f32.gmra.mxu0 %v1602
        %v1869 = vpop.f32.mrf.mxu0
        %v1870 = vadd.f32 %v1825, %v1869
        %1871 = vdwg.mxu0
        %1872 = vmatpush.msra.mxu0 0.0
        %1873 = vmatpush.msra.mxu0 0.0
        %1874 = vmatpush.msra.mxu0 0.0
        %1875 = vmatpush.msra.mxu0 0.0
        %1876 = vmatpush.msra.mxu0 0.0
        %1877 = vmatpush.msra.mxu0 0.0
        %1878 = vmatpush.msra.mxu0 0.0
        %1879 = vmatpush.msra.mxu0 0.0
        %1880 = vmatpush.msra.mxu0 0.0
        %1881 = vmatpush.msra.mxu0 0.0
        %1882 = vmatpush.msra.mxu0 0.0
        %1883 = vmatpush.msra.mxu0 0.0
        %1884 = vmatpush.msra.mxu0 %v1810
        %1885 = vmatpush.msra.mxu0 %v1809
        %1886 = vmatpush.msra.mxu0 %v1808
        %1887 = vmatpush.msra.mxu0 %v1807
        %1888 = vmatmul.f32.gmra.mxu0 %v1602
        %v1889 = vpop.f32.mrf.mxu0
        %v1890 = vadd.f32 %v1826, %v1889
        %1891 = vdwg.mxu0
        %1892 = vmatpush.msra.mxu0 0.0
        %1893 = vmatpush.msra.mxu0 0.0
        %1894 = vmatpush.msra.mxu0 0.0
        %1895 = vmatpush.msra.mxu0 0.0
        %1896 = vmatpush.msra.mxu0 0.0
        %1897 = vmatpush.msra.mxu0 0.0
        %1898 = vmatpush.msra.mxu0 0.0
        %1899 = vmatpush.msra.mxu0 0.0
        %1900 = vmatpush.msra.mxu0 0.0
        %1901 = vmatpush.msra.mxu0 0.0
        %1902 = vmatpush.msra.mxu0 0.0
        %1903 = vmatpush.msra.mxu0 0.0
        %1904 = vmatpush.msra.mxu0 %v1814
        %1905 = vmatpush.msra.mxu0 %v1813
        %1906 = vmatpush.msra.mxu0 %v1812
        %1907 = vmatpush.msra.mxu0 %v1811
        %1908 = vmatmul.f32.gmra.mxu0 %v1602
        %v1909 = vpop.f32.mrf.mxu0
        %v1910 = vadd.f32 %v1827, %v1909
        %1911 = vdwg.mxu0
        %v1913 = vsel %vm1047, %v1622, 0
        %v1916 = vsel %vm1047, %v1736, 0
        %1918 = vmatpush.xpose.msra.mxu0 0.0
        %1919 = vmatpush.xpose.msra.mxu0 0.0
        %1920 = vmatpush.xpose.msra.mxu0 0.0
        %1921 = vmatpush.xpose.msra.mxu0 0.0
        %1922 = vmatpush.xpose.msra.mxu0 0.0
        %1923 = vmatpush.xpose.msra.mxu0 0.0
        %1924 = vmatpush.xpose.msra.mxu0 0.0
        %1925 = vmatpush.xpose.msra.mxu0 0.0
        %1926 = vmatpush.xpose.msra.mxu0 0.0
        %1927 = vmatpush.xpose.msra.mxu0 0.0
        %1928 = vmatpush.xpose.msra.mxu0 0.0
        %1929 = vmatpush.xpose.msra.mxu0 0.0
        %1930 = vmatpush.xpose.msra.mxu0 0.0
        %1931 = vmatpush.xpose.msra.mxu0 0.0
        %1932 = vmatpush.xpose.msra.mxu0 0.0
        %1933 = vmatpush.xpose.msra.mxu0 %v1916
        %1934 = vmatmul.f32.gmra.mxu0 %v1913
        %v1935 = vpop.f32.mrf.mxu0
        %v1936 = vadd.f32 0.0, %v1935
        %1937 = vdwg.mxu0
        %v1939 = vsel %vm1047, %v1642, 0
        %v1942 = vsel %vm1047, %v1756, 0
        %1944 = vmatpush.xpose.msra.mxu0 0.0
        %1945 = vmatpush.xpose.msra.mxu0 0.0
        %1946 = vmatpush.xpose.msra.mxu0 0.0
        %1947 = vmatpush.xpose.msra.mxu0 0.0
        %1948 = vmatpush.xpose.msra.mxu0 0.0
        %1949 = vmatpush.xpose.msra.mxu0 0.0
        %1950 = vmatpush.xpose.msra.mxu0 0.0
        %1951 = vmatpush.xpose.msra.mxu0 0.0
        %1952 = vmatpush.xpose.msra.mxu0 0.0
        %1953 = vmatpush.xpose.msra.mxu0 0.0
        %1954 = vmatpush.xpose.msra.mxu0 0.0
        %1955 = vmatpush.xpose.msra.mxu0 0.0
        %1956 = vmatpush.xpose.msra.mxu0 0.0
        %1957 = vmatpush.xpose.msra.mxu0 0.0
        %1958 = vmatpush.xpose.msra.mxu0 0.0
        %1959 = vmatpush.xpose.msra.mxu0 %v1942
        %1960 = vmatmul.f32.gmra.mxu0 %v1939
        %v1961 = vpop.f32.mrf.mxu0
        %v1962 = vadd.f32 0.0, %v1961
        %1963 = vdwg.mxu0
        %v1965 = vsel %vm1047, %v1662, 0
        %v1968 = vsel %vm1047, %v1776, 0
        %1970 = vmatpush.xpose.msra.mxu0 0.0
        %1971 = vmatpush.xpose.msra.mxu0 0.0
        %1972 = vmatpush.xpose.msra.mxu0 0.0
        %1973 = vmatpush.xpose.msra.mxu0 0.0
        %1974 = vmatpush.xpose.msra.mxu0 0.0
        %1975 = vmatpush.xpose.msra.mxu0 0.0
        %1976 = vmatpush.xpose.msra.mxu0 0.0
        %1977 = vmatpush.xpose.msra.mxu0 0.0
        %1978 = vmatpush.xpose.msra.mxu0 0.0
        %1979 = vmatpush.xpose.msra.mxu0 0.0
        %1980 = vmatpush.xpose.msra.mxu0 0.0
        %1981 = vmatpush.xpose.msra.mxu0 0.0
        %1982 = vmatpush.xpose.msra.mxu0 0.0
        %1983 = vmatpush.xpose.msra.mxu0 0.0
        %1984 = vmatpush.xpose.msra.mxu0 0.0
        %1985 = vmatpush.xpose.msra.mxu0 %v1968
        %1986 = vmatmul.f32.gmra.mxu0 %v1965
        %v1987 = vpop.f32.mrf.mxu0
        %v1988 = vadd.f32 0.0, %v1987
        %1989 = vdwg.mxu0
        %v1991 = vsel %vm1047, %v1682, 0
        %v1994 = vsel %vm1047, %v1796, 0
        %1996 = vmatpush.xpose.msra.mxu0 0.0
        %1997 = vmatpush.xpose.msra.mxu0 0.0
        %1998 = vmatpush.xpose.msra.mxu0 0.0
        %1999 = vmatpush.xpose.msra.mxu0 0.0
        %2000 = vmatpush.xpose.msra.mxu0 0.0
        %2001 = vmatpush.xpose.msra.mxu0 0.0
        %2002 = vmatpush.xpose.msra.mxu0 0.0
        %2003 = vmatpush.xpose.msra.mxu0 0.0
        %2004 = vmatpush.xpose.msra.mxu0 0.0
        %2005 = vmatpush.xpose.msra.mxu0 0.0
        %2006 = vmatpush.xpose.msra.mxu0 0.0
        %2007 = vmatpush.xpose.msra.mxu0 0.0
        %2008 = vmatpush.xpose.msra.mxu0 0.0
        %2009 = vmatpush.xpose.msra.mxu0 0.0
        %2010 = vmatpush.xpose.msra.mxu0 0.0
        %2011 = vmatpush.xpose.msra.mxu0 %v1994
        %2012 = vmatmul.f32.gmra.mxu0 %v1991
        %v2013 = vpop.f32.mrf.mxu0
        %v2014 = vadd.f32 0.0, %v2013
        %2015 = vdwg.mxu0
        %v2016 = vmul.f32 %v1936, 0.35355338
        %v2017 = vmul.f32 %v1962, 0.35355338
        %v2018 = vmul.f32 %v1988, 0.35355338
        %v2019 = vmul.f32 %v2014, 0.35355338
        %v2020 = vsel %vm1157, %v2016, -1e+30
        %v2021 = vsel %vm1157, %v2017, -1e+30
        %v2022 = vsel %vm1157, %v2018, -1e+30
        %v2023 = vsel %vm1157, %v2019, -1e+30
        %v2024 = vsel %vm1047, %v2020, -inf
        %2025 = vmax.xlane.f32.xlu0 %v2024
        %v2026 = vpop.xlane.xlu0 %2025
        %v2027 = vsel %vm1047, %v2021, -inf
        %2028 = vmax.xlane.f32.xlu0 %v2027
        %v2029 = vpop.xlane.xlu0 %2028
        %v2030 = vsel %vm1047, %v2022, -inf
        %2031 = vmax.xlane.f32.xlu0 %v2030
        %v2032 = vpop.xlane.xlu0 %2031
        %v2033 = vsel %vm1047, %v2023, -inf
        %2034 = vmax.xlane.f32.xlu0 %v2033
        %v2035 = vpop.xlane.xlu0 %2034
        %v2036 = vsub.f32 %v2020, %v2026
        %v2037 = vsub.f32 %v2021, %v2029
        %v2038 = vsub.f32 %v2022, %v2032
        %v2039 = vsub.f32 %v2023, %v2035
        %v2040 = vmul.f32 %v2036, 1.442695
        %v2041 = vpow.pop %v2040
        %v2042 = vmul.f32 %v2037, 1.442695
        %v2043 = vpow.pop %v2042
        %v2044 = vmul.f32 %v2038, 1.442695
        %v2045 = vpow.pop %v2044
        %v2046 = vmul.f32 %v2039, 1.442695
        %v2047 = vpow.pop %v2046
        %v2048 = vsel %vm1047, %v2041, 0.0
        %2049 = vadd.xlane.f32.xlu0 %v2048
        %v2050 = vpop.xlane.xlu0 %2049
        %v2051 = vsel %vm1047, %v2043, 0.0
        %2052 = vadd.xlane.f32.xlu0 %v2051
        %v2053 = vpop.xlane.xlu0 %2052
        %v2054 = vsel %vm1047, %v2045, 0.0
        %2055 = vadd.xlane.f32.xlu0 %v2054
        %v2056 = vpop.xlane.xlu0 %2055
        %v2057 = vsel %vm1047, %v2047, 0.0
        %2058 = vadd.xlane.f32.xlu0 %v2057
        %v2059 = vpop.xlane.xlu0 %2058
        %v2060 = vrcp.pop %v2050
        %v2061 = vrcp.pop %v2053
        %v2062 = vrcp.pop %v2056
        %v2063 = vrcp.pop %v2059
        %v2064 = vmul.f32 %v2041, %v2060
        %v2065 = vmul.f32 %v2043, %v2061
        %v2066 = vmul.f32 %v2045, %v2062
        %v2067 = vmul.f32 %v2047, %v2063
        %v2069 = vsel %vm1047, %v2064, 0
        %2071 = vmatpush.msra.mxu0 0.0
        %2072 = vmatpush.msra.mxu0 0.0
        %2073 = vmatpush.msra.mxu0 0.0
        %2074 = vmatpush.msra.mxu0 0.0
        %2075 = vmatpush.msra.mxu0 0.0
        %2076 = vmatpush.msra.mxu0 0.0
        %2077 = vmatpush.msra.mxu0 0.0
        %2078 = vmatpush.msra.mxu0 0.0
        %2079 = vmatpush.msra.mxu0 0.0
        %2080 = vmatpush.msra.mxu0 0.0
        %2081 = vmatpush.msra.mxu0 0.0
        %2082 = vmatpush.msra.mxu0 0.0
        %2083 = vmatpush.msra.mxu0 0.0
        %2084 = vmatpush.msra.mxu0 0.0
        %2085 = vmatpush.msra.mxu0 0.0
        %2086 = vmatpush.msra.mxu0 %v1850
        %2087 = vmatmul.f32.gmra.mxu0 %v2069
        %v2088 = vpop.f32.mrf.mxu0
        %v2089 = vadd.f32 0.0, %v2088
        %2090 = vdwg.mxu0
        %v2092 = vsel %vm1047, %v2065, 0
        %2094 = vmatpush.msra.mxu0 0.0
        %2095 = vmatpush.msra.mxu0 0.0
        %2096 = vmatpush.msra.mxu0 0.0
        %2097 = vmatpush.msra.mxu0 0.0
        %2098 = vmatpush.msra.mxu0 0.0
        %2099 = vmatpush.msra.mxu0 0.0
        %2100 = vmatpush.msra.mxu0 0.0
        %2101 = vmatpush.msra.mxu0 0.0
        %2102 = vmatpush.msra.mxu0 0.0
        %2103 = vmatpush.msra.mxu0 0.0
        %2104 = vmatpush.msra.mxu0 0.0
        %2105 = vmatpush.msra.mxu0 0.0
        %2106 = vmatpush.msra.mxu0 0.0
        %2107 = vmatpush.msra.mxu0 0.0
        %2108 = vmatpush.msra.mxu0 0.0
        %2109 = vmatpush.msra.mxu0 %v1870
        %2110 = vmatmul.f32.gmra.mxu0 %v2092
        %v2111 = vpop.f32.mrf.mxu0
        %v2112 = vadd.f32 0.0, %v2111
        %2113 = vdwg.mxu0
        %v2115 = vsel %vm1047, %v2066, 0
        %2117 = vmatpush.msra.mxu0 0.0
        %2118 = vmatpush.msra.mxu0 0.0
        %2119 = vmatpush.msra.mxu0 0.0
        %2120 = vmatpush.msra.mxu0 0.0
        %2121 = vmatpush.msra.mxu0 0.0
        %2122 = vmatpush.msra.mxu0 0.0
        %2123 = vmatpush.msra.mxu0 0.0
        %2124 = vmatpush.msra.mxu0 0.0
        %2125 = vmatpush.msra.mxu0 0.0
        %2126 = vmatpush.msra.mxu0 0.0
        %2127 = vmatpush.msra.mxu0 0.0
        %2128 = vmatpush.msra.mxu0 0.0
        %2129 = vmatpush.msra.mxu0 0.0
        %2130 = vmatpush.msra.mxu0 0.0
        %2131 = vmatpush.msra.mxu0 0.0
        %2132 = vmatpush.msra.mxu0 %v1890
        %2133 = vmatmul.f32.gmra.mxu0 %v2115
        %v2134 = vpop.f32.mrf.mxu0
        %v2135 = vadd.f32 0.0, %v2134
        %2136 = vdwg.mxu0
        %v2138 = vsel %vm1047, %v2067, 0
        %2140 = vmatpush.msra.mxu0 0.0
        %2141 = vmatpush.msra.mxu0 0.0
        %2142 = vmatpush.msra.mxu0 0.0
        %2143 = vmatpush.msra.mxu0 0.0
        %2144 = vmatpush.msra.mxu0 0.0
        %2145 = vmatpush.msra.mxu0 0.0
        %2146 = vmatpush.msra.mxu0 0.0
        %2147 = vmatpush.msra.mxu0 0.0
        %2148 = vmatpush.msra.mxu0 0.0
        %2149 = vmatpush.msra.mxu0 0.0
        %2150 = vmatpush.msra.mxu0 0.0
        %2151 = vmatpush.msra.mxu0 0.0
        %2152 = vmatpush.msra.mxu0 0.0
        %2153 = vmatpush.msra.mxu0 0.0
        %2154 = vmatpush.msra.mxu0 0.0
        %2155 = vmatpush.msra.mxu0 %v1910
        %2156 = vmatmul.f32.gmra.mxu0 %v2138
        %v2157 = vpop.f32.mrf.mxu0
        %v2158 = vadd.f32 0.0, %v2157
        %2159 = vdwg.mxu0
        %s2160 = scalar_lea.vmem %s11, 32
        %v2161 = vld [vmem:[%s2160] sm:$0xff]
        %v2162 = vld [vmem:[%s2160 + $0x8] sm:$0xff]
        %v2163 = vld [vmem:[%s2160 + $0x10] sm:$0xff]
        %v2164 = vld [vmem:[%s2160 + $0x18] sm:$0xff]
        %v2166 = vsel %vm1047, %v2089, 0
        %2168 = vmatpush.msra.mxu0 0.0
        %2169 = vmatpush.msra.mxu0 0.0
        %2170 = vmatpush.msra.mxu0 0.0
        %2171 = vmatpush.msra.mxu0 0.0
        %2172 = vmatpush.msra.mxu0 0.0
        %2173 = vmatpush.msra.mxu0 0.0
        %2174 = vmatpush.msra.mxu0 0.0
        %2175 = vmatpush.msra.mxu0 0.0
        %2176 = vmatpush.msra.mxu0 0.0
        %2177 = vmatpush.msra.mxu0 0.0
        %2178 = vmatpush.msra.mxu0 0.0
        %2179 = vmatpush.msra.mxu0 0.0
        %2180 = vmatpush.msra.mxu0 0.0
        %2181 = vmatpush.msra.mxu0 0.0
        %2182 = vmatpush.msra.mxu0 0.0
        %2183 = vmatpush.msra.mxu0 %v2161
        %2184 = vmatmul.f32.gmra.mxu0 %v2166
        %v2185 = vpop.f32.mrf.mxu0
        %v2186 = vadd.f32 0.0, %v2185
        %2187 = vdwg.mxu0
        %v2189 = vsel %vm1047, %v2112, 0
        %2191 = vmatpush.msra.mxu0 0.0
        %2192 = vmatpush.msra.mxu0 0.0
        %2193 = vmatpush.msra.mxu0 0.0
        %2194 = vmatpush.msra.mxu0 0.0
        %2195 = vmatpush.msra.mxu0 0.0
        %2196 = vmatpush.msra.mxu0 0.0
        %2197 = vmatpush.msra.mxu0 0.0
        %2198 = vmatpush.msra.mxu0 0.0
        %2199 = vmatpush.msra.mxu0 0.0
        %2200 = vmatpush.msra.mxu0 0.0
        %2201 = vmatpush.msra.mxu0 0.0
        %2202 = vmatpush.msra.mxu0 0.0
        %2203 = vmatpush.msra.mxu0 0.0
        %2204 = vmatpush.msra.mxu0 0.0
        %2205 = vmatpush.msra.mxu0 0.0
        %2206 = vmatpush.msra.mxu0 %v2162
        %2207 = vmatmul.f32.gmra.mxu0 %v2189
        %v2208 = vpop.f32.mrf.mxu0
        %v2209 = vadd.f32 0.0, %v2208
        %2210 = vdwg.mxu0
        %v2212 = vsel %vm1047, %v2135, 0
        %2214 = vmatpush.msra.mxu0 0.0
        %2215 = vmatpush.msra.mxu0 0.0
        %2216 = vmatpush.msra.mxu0 0.0
        %2217 = vmatpush.msra.mxu0 0.0
        %2218 = vmatpush.msra.mxu0 0.0
        %2219 = vmatpush.msra.mxu0 0.0
        %2220 = vmatpush.msra.mxu0 0.0
        %2221 = vmatpush.msra.mxu0 0.0
        %2222 = vmatpush.msra.mxu0 0.0
        %2223 = vmatpush.msra.mxu0 0.0
        %2224 = vmatpush.msra.mxu0 0.0
        %2225 = vmatpush.msra.mxu0 0.0
        %2226 = vmatpush.msra.mxu0 0.0
        %2227 = vmatpush.msra.mxu0 0.0
        %2228 = vmatpush.msra.mxu0 0.0
        %2229 = vmatpush.msra.mxu0 %v2163
        %2230 = vmatmul.f32.gmra.mxu0 %v2212
        %v2231 = vpop.f32.mrf.mxu0
        %v2232 = vadd.f32 0.0, %v2231
        %2233 = vdwg.mxu0
        %v2235 = vsel %vm1047, %v2158, 0
        %2237 = vmatpush.msra.mxu0 0.0
        %2238 = vmatpush.msra.mxu0 0.0
        %2239 = vmatpush.msra.mxu0 0.0
        %2240 = vmatpush.msra.mxu0 0.0
        %2241 = vmatpush.msra.mxu0 0.0
        %2242 = vmatpush.msra.mxu0 0.0
        %2243 = vmatpush.msra.mxu0 0.0
        %2244 = vmatpush.msra.mxu0 0.0
        %2245 = vmatpush.msra.mxu0 0.0
        %2246 = vmatpush.msra.mxu0 0.0
        %2247 = vmatpush.msra.mxu0 0.0
        %2248 = vmatpush.msra.mxu0 0.0
        %2249 = vmatpush.msra.mxu0 0.0
        %2250 = vmatpush.msra.mxu0 0.0
        %2251 = vmatpush.msra.mxu0 0.0
        %2252 = vmatpush.msra.mxu0 %v2164
        %2253 = vmatmul.f32.gmra.mxu0 %v2235
        %v2254 = vpop.f32.mrf.mxu0
        %v2255 = vadd.f32 0.0, %v2254
        %2256 = vdwg.mxu0
        %v2257 = vsel %vm670, %v2186, 0.0
        %v2258 = vsel %vm670, %v2209, 0.0
        %v2259 = vadd.f32 %v2257, %v2258
        %v2260 = vsel %vm670, %v2232, 0.0
        %v2261 = vadd.f32 %v2259, %v2260
        %v2262 = vsel %vm670, %v2255, 0.0
        %v2263 = vadd.f32 %v2261, %v2262
        %v2264 = vadd.f32 %v1532, %v2263
        %s2265 = scalar_lea.vmem %s12, 1
        %v2266 = vld [vmem:[%s2265] sm:$0x1]
        %v2268 = vperm.slane %v2266, 0
        %v2270 = vadd.f32 %v2264, %v2268
        %s2271 = scalar_lea.vmem %s13, 1
        %v2272 = vld [vmem:[%s2271] sm:$0x1]
        %s2273 = scalar_lea.vmem %s14, 1
        %v2274 = vld [vmem:[%s2273] sm:$0x1]
        %v2275 = vsel %vm670, %v2270, 0.0
        %2276 = vadd.xlane.f32.xlu0 %v2275
        %v2277 = vpop.xlane.xlu0 %2276
        %v2278 = vmul.f32 %v2277, %v680
        %v2279 = vsub.f32 %v2270, %v2278
        %v2280 = vmul.f32 %v2279, %v2279
        %v2281 = vsel %vm670, %v2280, 0.0
        %2282 = vadd.xlane.f32.xlu0 %v2281
        %v2283 = vpop.xlane.xlu0 %2282
        %v2284 = vmul.f32 %v2283, %v680
        %v2285 = vadd.f32 %v2284, 1e-05
        %v2286 = vrsqrt.pop %v2285
        %v2287 = vmul.f32 %v2286, %v2285
        %v2288 = vmul.f32 %v2287, %v2286
        %v2289 = vmul.f32 0.5, %v2288
        %v2290 = vsub.f32 1.5, %v2289
        %v2291 = vmul.f32 %v2286, %v2290
        %vm2292 = vweird.f32 %v2285
        %vm2293 = vweird.f32 %v2286
        %vm2294 = vmor %vm2292, %vm2293
        %v2295 = vsel %vm2294, %v2286, %v2291
        %v2296 = vmul.f32 %v2279, %v2295
        %v2298 = vperm.slane %v2272, 0
        %v2300 = vmul.f32 %v2296, %v2298
        %v2302 = vperm.slane %v2274, 0
        %v2304 = vadd.f32 %v2300, %v2302
        %s2305 = scalar_lea.vmem %s15, 32
        %v2306 = vld [vmem:[%s2305] sm:$0xff]
        %v2307 = vld [vmem:[%s2305 + $0x8] sm:$0xff]
        %v2308 = vld [vmem:[%s2305 + $0x10] sm:$0xff]
        %v2309 = vld [vmem:[%s2305 + $0x18] sm:$0xff]
        %s2310 = scalar_lea.vmem %s16, 1
        %v2311 = vld [vmem:[%s2310] sm:$0x1]
        %v2313 = vperm.slane %v2311, 0
        %v2316 = vsel %vm670, %v2304, 0
        %2318 = vmatpush.msra.mxu0 0.0
        %2319 = vmatpush.msra.mxu0 0.0
        %2320 = vmatpush.msra.mxu0 0.0
        %2321 = vmatpush.msra.mxu0 0.0
        %2322 = vmatpush.msra.mxu0 0.0
        %2323 = vmatpush.msra.mxu0 0.0
        %2324 = vmatpush.msra.mxu0 0.0
        %2325 = vmatpush.msra.mxu0 0.0
        %2326 = vmatpush.msra.mxu0 0.0
        %2327 = vmatpush.msra.mxu0 0.0
        %2328 = vmatpush.msra.mxu0 0.0
        %2329 = vmatpush.msra.mxu0 0.0
        %2330 = vmatpush.msra.mxu0 %v2309
        %2331 = vmatpush.msra.mxu0 %v2308
        %2332 = vmatpush.msra.mxu0 %v2307
        %2333 = vmatpush.msra.mxu0 %v2306
        %2334 = vmatmul.f32.gmra.mxu0 %v2316
        %v2335 = vpop.f32.mrf.mxu0
        %v2336 = vadd.f32 %v2313, %v2335
        %2337 = vdwg.mxu0
        %v2338 = vmul.f32 %v2336, 1.702
        %v2339 = vxor.u32 %v2338, 2147483648
        %v2340 = vmul.f32 %v2339, 1.442695
        %v2341 = vpow.pop %v2340
        %v2342 = vadd.f32 %v2341, 1.0
        %v2343 = vrcp.pop %v2342
        %v2344 = vmul.f32 %v2342, %v2343
        %v2345 = vsub.f32 1.0, %v2344
        %v2346 = vmul.f32 %v2343, %v2345
        %v2347 = vadd.f32 %v2343, %v2346
        %vm2348 = vweird.f32 %v2342
        %vm2349 = vweird.f32 %v2343
        %vm2350 = vmor %vm2348, %vm2349
        %v2351 = vsel %vm2350, %v2343, %v2347
        %v2352 = vand.u32 2147483647, %v2342
        %vm2353 = vcmp.eq.f32.partialorder %v2352, 8.507059e+37
        %v2354 = vand.u32 %v2342, 2147483648
        %v2355 = vor.u32 1.1754944e-38, %v2354
        %v2356 = vsel %vm2353, %v2355, %v2351
        %v2357 = vmul.f32 1.0, %v2356
        %v2358 = vmul.f32 %v2336, %v2357
        %s2359 = scalar_lea.vmem %s17, 128
        %v2360 = vld [vmem:[%s2359] sm:$0xff]
        %v2361 = vld [vmem:[%s2359 + $0x8] sm:$0xff]
        %v2362 = vld [vmem:[%s2359 + $0x10] sm:$0xff]
        %v2363 = vld [vmem:[%s2359 + $0x18] sm:$0xff]
        %v2364 = vld [vmem:[%s2359 + $0x20] sm:$0xff]
        %v2365 = vld [vmem:[%s2359 + $0x28] sm:$0xff]
        %v2366 = vld [vmem:[%s2359 + $0x30] sm:$0xff]
        %v2367 = vld [vmem:[%s2359 + $0x38] sm:$0xff]
        %v2368 = vld [vmem:[%s2359 + $0x40] sm:$0xff]
        %v2369 = vld [vmem:[%s2359 + $0x48] sm:$0xff]
        %v2370 = vld [vmem:[%s2359 + $0x50] sm:$0xff]
        %v2371 = vld [vmem:[%s2359 + $0x58] sm:$0xff]
        %v2372 = vld [vmem:[%s2359 + $0x60] sm:$0xff]
        %v2373 = vld [vmem:[%s2359 + $0x68] sm:$0xff]
        %v2374 = vld [vmem:[%s2359 + $0x70] sm:$0xff]
        %v2375 = vld [vmem:[%s2359 + $0x78] sm:$0xff]
        %2376 = vmatpush.msra.mxu0 %v2375
        %2377 = vmatpush.msra.mxu0 %v2374
        %2378 = vmatpush.msra.mxu0 %v2373
        %2379 = vmatpush.msra.mxu0 %v2372
        %2380 = vmatpush.msra.mxu0 %v2371
        %2381 = vmatpush.msra.mxu0 %v2370
        %2382 = vmatpush.msra.mxu0 %v2369
        %2383 = vmatpush.msra.mxu0 %v2368
        %2384 = vmatpush.msra.mxu0 %v2367
        %2385 = vmatpush.msra.mxu0 %v2366
        %2386 = vmatpush.msra.mxu0 %v2365
        %2387 = vmatpush.msra.mxu0 %v2364
        %2388 = vmatpush.msra.mxu0 %v2363
        %2389 = vmatpush.msra.mxu0 %v2362
        %2390 = vmatpush.msra.mxu0 %v2361
        %2391 = vmatpush.msra.mxu0 %v2360
        %2392 = vmatmul.f32.gmra.mxu0 %v2358
        %v2393 = vpop.f32.mrf.mxu0
        %v2394 = vadd.f32 0.0, %v2393
        %2395 = vdwg.mxu0
        %v2396 = vadd.f32 %v2270, %v2394
        %s2397 = scalar_lea.vmem %s18, 1
        %v2398 = vld [vmem:[%s2397] sm:$0x1]
        %v2400 = vperm.slane %v2398, 0
        %v2402 = vadd.f32 %v2396, %v2400
        %v2403 = vld [vmem:[%s19] sm:$0x1]
        %v2404 = vld [vmem:[%s20] sm:$0x1]
        %v2405 = vsel %vm670, %v2402, 0.0
        %2406 = vadd.xlane.f32.xlu0 %v2405
        %v2407 = vpop.xlane.xlu0 %2406
        %v2408 = vmul.f32 %v2407, %v680
        %v2409 = vsub.f32 %v2402, %v2408
        %v2410 = vmul.f32 %v2409, %v2409
        %v2411 = vsel %vm670, %v2410, 0.0
        %2412 = vadd.xlane.f32.xlu0 %v2411
        %v2413 = vpop.xlane.xlu0 %2412
        %v2414 = vmul.f32 %v2413, %v680
        %v2415 = vadd.f32 %v2414, 1e-05
        %v2416 = vrsqrt.pop %v2415
        %v2417 = vmul.f32 %v2416, %v2415
        %v2418 = vmul.f32 %v2417, %v2416
        %v2419 = vmul.f32 0.5, %v2418
        %v2420 = vsub.f32 1.5, %v2419
        %v2421 = vmul.f32 %v2416, %v2420
        %vm2422 = vweird.f32 %v2415
        %vm2423 = vweird.f32 %v2416
        %vm2424 = vmor %vm2422, %vm2423
        %v2425 = vsel %vm2424, %v2416, %v2421
        %v2426 = vmul.f32 %v2409, %v2425
        %v2428 = vperm.slane %v2403, 0
        %v2430 = vmul.f32 %v2426, %v2428
        %v2432 = vperm.slane %v2404, 0
        %v2434 = vadd.f32 %v2430, %v2432
        %2435 = vst.msk [vmem:[#allocation2] sm:$0xff] %vm670, %v2434
        %s2436 = sld [smem:[#allocation4 + %s44]]
        %s2437 = scalar_lea.vmem [#allocation2], %s2436
        %v2438 = vld [vmem:[%s2437] sm:$0x1]
        %v2439 = vld [vmem:[%s21] sm:$0xff]
        %v2440 = vld [vmem:[%s21 + $0x8] sm:$0xff]
        %v2441 = vld [vmem:[%s21 + $0x10] sm:$0xff]
        %v2442 = vld [vmem:[%s21 + $0x18] sm:$0xff]
        %v2444 = vsel %vm670, %v2438, 0
        %2446 = vmatpush.msra.mxu0 0.0
        %2447 = vmatpush.msra.mxu0 0.0
        %2448 = vmatpush.msra.mxu0 0.0
        %2449 = vmatpush.msra.mxu0 0.0
        %2450 = vmatpush.msra.mxu0 0.0
        %2451 = vmatpush.msra.mxu0 0.0
        %2452 = vmatpush.msra.mxu0 0.0
        %2453 = vmatpush.msra.mxu0 0.0
        %2454 = vmatpush.msra.mxu0 0.0
        %2455 = vmatpush.msra.mxu0 0.0
        %2456 = vmatpush.msra.mxu0 0.0
        %2457 = vmatpush.msra.mxu0 0.0
        %2458 = vmatpush.msra.mxu0 %v2442
        %2459 = vmatpush.msra.mxu0 %v2441
        %2460 = vmatpush.msra.mxu0 %v2440
        %2461 = vmatpush.msra.mxu0 %v2439
        %2462 = vmatmul.f32.gmra.mxu0 %v2444
        %v2463 = vpop.f32.mrf.mxu0
        %v2464 = vadd.f32 0.0, %v2463
        %2465 = vdwg.mxu0
        %vm2466 = vcmask 253952
        %2467 = vst.msk [vmem:[%s655] sm:$0x1] %vm2466, %v2464
        %s2468 = sand.u32 %s498, 1
        %s2469 = scalar_lea.sflag [#allocation6], %s2468
        %s2470 = sand.u32 %s498, 1
        %s2471 = scalar_lea.vmem [#allocation5], %s2470
        // Predicated region
        $region105: #{tpu_custom_call.1} parent=103 // pred_check
          %p2472 = pneg %p508
        $region106: #{tpu_custom_call.1} parent=103 // pred_check_branch
          %2474 = sbr.rel (%p2472) target = $region108
        $region107: #{tpu_custom_call.1} parent=103 // pred_region
          %2476 = vsyncadd %s2469, 0
          %s2477 = scalar_lea.hbm %s22, %s44
          %s2479 = sshll.u32 %s2471, 4
          %s2480 = int_to_ptr.vmem [resolvable:$true] %s2479
          %s2481 = sshll.u32 %s2477, 4
          %s2482 = int_to_ptr.hbm [resolvable:$true] %s2481
          %2484 = dma.vmem_to_hbm [thread:$0]  %s2480, 16, %s2482, %s2469
        $region108: #{tpu_custom_call.1} parent=103 // pred_fallthru
          _
      $region104: #{tpu_custom_call.1} parent=5 // pred_fallthru
        _
      %p2485 = scmp.le.s32.totalorder 2, %s39
      // Predicated region
      $region109: #{tpu_custom_call.1} parent=5 // pred_check
        %p2486 = pneg %p2485
      $region110: #{tpu_custom_call.1} parent=5 // pred_check_branch
        %2488 = sbr.rel (%p2486) target = $region112
      $region111: #{tpu_custom_call.1} parent=5 // pred_region
        %s2489 = ssub.s32 %s39, 2
        // Predicated region
        $region113: #{tpu_custom_call.1} parent=111 // pred_check
          %p2490 = pneg %p514
        $region114: #{tpu_custom_call.1} parent=111 // pred_check_branch
          %2492 = sbr.rel (%p2490) target = $region116
        $region115: #{tpu_custom_call.1} parent=111 // pred_region
          %s2493 = sand.u32 %s499, 1
          %s2494 = scalar_lea.sflag [#allocation6], %s2493
          %s2495 = sand.u32 %s499, 1
          %s2496 = scalar_lea.vmem [#allocation5], %s2495
          %2498 = dma.done %s2494, 16
        $region116: #{tpu_custom_call.1} parent=111 // pred_fallthru
          _
      $region112: #{tpu_custom_call.1} parent=5 // pred_fallthru
        _
    $region6: #{tpu_custom_call.1} parent=1 // loop_footer
      %s43 = sadd.s32 1, %s39
    $region7: #{tpu_custom_call.1} parent=1 // loop_footer_branch
      %38 = sbr.rel target = $region3
    $region8: #{tpu_custom_call.1} parent=1 // loop_exit
      _
    %2499 = vsyncpa [#allocation6], 1
    %s2500 = scalar_lea.sflag [#allocation6], 1
    %2501 = vsyncpa %s2500, 1

</llo_original>
